<compile_context>
chip_gen: v7x
topology: tpu7x:2x2x1
jax: 0.10.0
libtpu: 0.0.40
codegen_flags: <defaults>
</compile_context>

<pallas_src>
import jax
import jax.numpy as jnp
from jax import lax
from jax.experimental import pallas as pl
from jax.experimental.pallas import tpu as pltpu

LATENT = 128           # latent_dim
HIDDEN = 128           # hidden_num (SIREN width)
HYPER_HIDDEN = 256     # hyper_hidden_features
OMEGA = 30.0           # SIREN sine frequency
TN = 256               # points per tile in the SIREN kernel (fills MXU M dim)
HYPER_TILE_O = 4096    # w3-stream tile: 4 MiB/block, 8 MiB double-buffered
                       # (fits v5e's 16 MiB scoped VMEM default; fine on v6e/v7x)

# Deform-net parameter list: w0,b0,w1,b1,w2,b2,w3,b3,w4,b4
DEFORM_SHAPES = [(HIDDEN, 3), (HIDDEN,), (HIDDEN, HIDDEN), (HIDDEN,),
                 (HIDDEN, HIDDEN), (HIDDEN,), (HIDDEN, HIDDEN), (HIDDEN,),
                 (4, HIDDEN), (4,)]
BIG_IDX = (2, 4, 6)                 # the three (128,128) hidden weights
SMALL_IDX = (0, 1, 3, 5, 7, 8, 9)   # everything else (numel <= 512)


# ----------------------------------------------------------------------------
# Kernel 1: HyperNetwork final layer (the big W3 stream), fused over the three
# large per-parameter hyper nets.  out[g, :, tile] = h2[g] @ W3[g, tile]^T + b3.
# ----------------------------------------------------------------------------
def _hyper_w3_kernel(h2_ref, w3_ref, b3_ref, out_ref):
    # h2: (1, B, HH)   w3: (1, to, HH)   b3: (1, 1, to)   out: (1, B, to)
    out_ref[0] = lax.dot_general(
        h2_ref[0], w3_ref[0], (((1,), (1,)), ((), ())),
        preferred_element_type=jnp.float32) + b3_ref[0]


def hyper_w3_stream(h2, w3, b3, tile_o=HYPER_TILE_O):
    """h2: (G, B, HH); w3: (G, numel, HH); b3: (G, numel) -> (G, B, numel)."""
    G, B, HH = h2.shape
    numel = w3.shape[1]
    to = min(tile_o, numel)
    assert numel % to == 0
    b3 = b3.reshape(G, 1, numel)
    grid = (G, numel // to)
    return pl.pallas_call(
        _hyper_w3_kernel,
        out_shape=jax.ShapeDtypeStruct((G, B, numel), jnp.float32),
        grid_spec=pltpu.PrefetchScalarGridSpec(
            num_scalar_prefetch=0,
            grid=grid,
            in_specs=[
                pl.BlockSpec((1, B, HH), lambda g, t: (g, 0, 0)),
                pl.BlockSpec((1, to, HH), lambda g, t: (g, t, 0)),
                pl.BlockSpec((1, 1, to), lambda g, t: (g, 0, t)),
            ],
            out_specs=pl.BlockSpec((1, B, to), lambda g, t: (g, 0, t)),
        ),
        # no carried state -> both axes parallel (lets v7x split over 2 TCs)
        compiler_params=pltpu.CompilerParams(
            dimension_semantics=("parallel", "parallel")),
    )(h2, w3, b3)


# ----------------------------------------------------------------------------
# Kernel 2: SIREN forward + analytic Jacobian w.r.t. the 3 input coordinates.
# Value rows and the 3 Jacobian row-blocks are stacked into one (4*TN, H) VMEM
# scratch so each hidden layer is a single fused matmul.  Weights stay in
# PyTorch (out, in) layout; dots contract the last dims of both operands.
# ----------------------------------------------------------------------------
def _siren_fwd_jac_kernel(x_ref, w0t_ref, b0_ref, w1_ref, b1_ref, w2_ref, b2_ref,
                          w3_ref, b3_ref, w4_ref, b4t_ref, out_ref, jac_ref, s_ref):
    tn = x_ref.shape[1]
    x = x_ref[0]                        # (tn, 3)
    w0t = w0t_ref[0]                    # (3, H)  (pre-transposed in the wrapper)

    # Layer 0: h = sin(30*(x @ W0^T + b0));  dh/dx_k = 30*cos(.) * W0[:, k]^T
    pre = jnp.dot(x, w0t, preferred_element_type=jnp.float32) + b0_ref[0]
    s_ref[0:tn, :] = jnp.sin(OMEGA * pre)
    cos_s = OMEGA * jnp.cos(OMEGA * pre)
    s_ref[tn:2 * tn, :] = cos_s * w0t[0:1, :]
    s_ref[2 * tn:3 * tn, :] = cos_s * w0t[1:2, :]
    s_ref[3 * tn:4 * tn, :] = cos_s * w0t[2:3, :]

    # Hidden layers: one fused (4*tn, H) x (H, H) matmul per layer.
    for w_ref, b_ref in ((w1_ref, b1_ref), (w2_ref, b2_ref), (w3_ref, b3_ref)):
        w = w_ref[0]                    # (H, H), PyTorch (out, in)
        pre = lax.dot_general(s_ref[...], w, (((1,), (1,)), ((), ())),
                              preferred_element_type=jnp.float32)   # (4*tn, H)
        hp = pre[0:tn, :] + b_ref[0]
        s_ref[0:tn, :] = jnp.sin(OMEGA * hp)
        cos_s = OMEGA * jnp.cos(OMEGA * hp)
        s_ref[tn:2 * tn, :] = cos_s * pre[tn:2 * tn, :]
        s_ref[2 * tn:3 * tn, :] = cos_s * pre[2 * tn:3 * tn, :]
        s_ref[3 * tn:4 * tn, :] = cos_s * pre[3 * tn:4 * tn, :]

    # Final linear layer, computed with W4 as LHS so the result tiles are
    # lane-dense (O, tn) -> unmasked full-lane stores.
    w4 = w4_ref[0]                      # (O, H)
    outj = lax.dot_general(w4, s_ref[...], (((1,), (1,)), ((), ())),
                           preferred_element_type=jnp.float32)       # (O, 4*tn)
    out_ref[0] = outj[:, 0:tn] + b4t_ref[0]
    jac_ref[0, 0] = outj[:, tn:2 * tn]
    jac_ref[0, 1] = outj[:, 2 * tn:3 * tn]
    jac_ref[0, 2] = outj[:, 3 * tn:4 * tn]


def siren_fwd_jac(coords, params, *, shared=False, tn=TN):
    """SIREN forward + Jacobian w.r.t. the 3 input coordinates.

    coords: (B, N, 3).
    params = [w0,b0,w1,b1,w2,b2,w3,b3,w4,b4]
      shared=False (per-sample / hypo): weights (B,out,in), biases (B,1,out)
      shared=True  (template)         : weights (out,in),   biases (out,)
    Returns out (B, N, O) and jac (B, N, O, 3) with jac[b,n,o,k] = d out_o / d x_k.
    """
    B, N, _ = coords.shape
    w0, b0, w1, b1, w2, b2, w3, b3, w4, b4 = params
    if shared:
        # Leading singleton batch dim + constant index_map: weights stay resident
        # in VMEM for the whole grid (no B-fold HBM broadcast, no per-b re-DMA).
        w0, w1, w2, w3, w4 = (w[None] for w in (w0, w1, w2, w3, w4))
        b0, b1, b2, b3, b4 = (b[None, None, :] for b in (b0, b1, b2, b3, b4))
    H = w1.shape[-1]
    O = w4.shape[-2]
    # cheap one-time layout massaging in XLA (no in-kernel transposes)
    w0t = jnp.transpose(w0, (0, 2, 1))      # (Bw, 3, H)
    b4t = jnp.transpose(b4, (0, 2, 1))      # (Bw, O, 1)
    assert N % tn == 0
    grid = (B, N // tn)

    widx = (lambda b, t: (0, 0, 0)) if shared else (lambda b, t: (b, 0, 0))

    def wspec(arr):
        return pl.BlockSpec((1,) + arr.shape[1:], widx)

    in_specs = [pl.BlockSpec((1, tn, 3), lambda b, t: (b, t, 0)),
                wspec(w0t), wspec(b0), wspec(w1), wspec(b1), wspec(w2), wspec(b2),
                wspec(w3), wspec(b3), wspec(w4), wspec(b4t)]
    out_specs = [
        pl.BlockSpec((1, O, tn), lambda b, t: (b, 0, t)),
        pl.BlockSpec((1, 3, O, tn), lambda b, t: (b, 0, 0, t)),
    ]
    out_shapes = [
        jax.ShapeDtypeStruct((B, O, N), jnp.float32),
        jax.ShapeDtypeStruct((B, 3, O, N), jnp.float32),
    ]
    out, jac = pl.pallas_call(
        _siren_fwd_jac_kernel,
        out_shape=out_shapes,
        grid_spec=pltpu.PrefetchScalarGridSpec(
            num_scalar_prefetch=0, grid=grid,
            in_specs=in_specs, out_specs=out_specs,
            scratch_shapes=[pltpu.VMEM((4 * tn, H), jnp.float32)]),
        compiler_params=pltpu.CompilerParams(
            dimension_semantics=("parallel", "parallel")),
    )(coords, w0t, b0, w1, b1, w2, b2, w3, b3, w4, b4t)
    # back to channel-last for the (tiny) downstream glue
    out = jnp.transpose(out, (0, 2, 1))          # (B, N, O)
    jac = jnp.transpose(jac, (0, 3, 2, 1))       # (B, N, O, 3)
    return out, jac


# ----------------------------------------------------------------------------
# Deterministic parameter initialization (synthetic, no checkpoint loading)
# ----------------------------------------------------------------------------
def init_siren(key, in_f, hidden, out_f, num_hidden_layers=3):
    dims = [(hidden, in_f)] + [(hidden, hidden)] * num_hidden_layers + [(out_f, hidden)]
    keys = jax.random.split(key, 2 * len(dims))
    params = []
    for li, (fout, fin) in enumerate(dims):
        wb = (1.0 / fin) if li == 0 else ((6.0 / fin) ** 0.5 / OMEGA)
        w = jax.random.uniform(keys[2 * li], (fout, fin), jnp.float32, -wb, wb)
        b = jax.random.uniform(keys[2 * li + 1], (fout,), jnp.float32,
                               -1.0 / fin ** 0.5, 1.0 / fin ** 0.5)
        params += [w, b]
    return params


def init_dif_decoder(key):
    k_tpl, k_dfm, k_hyp = jax.random.split(key, 3)
    template = init_siren(k_tpl, 3, HIDDEN, 1, num_hidden_layers=3)
    deform_init = init_siren(k_dfm, 3, HIDDEN, 4, num_hidden_layers=3)
    n = len(deform_init)
    hkeys = jax.random.split(k_hyp, 3 * n)

    w1s, b1s, w2s, b2s, w3s, b3s = [], [], [], [], [], []
    for i, p in enumerate(deform_init):
        k1, k2, k3 = hkeys[3 * i], hkeys[3 * i + 1], hkeys[3 * i + 2]
        numel = p.size
        w1s.append(jax.random.normal(k1, (HYPER_HIDDEN, LATENT), jnp.float32)
                   * (2.0 / LATENT) ** 0.5)
        b1s.append(jnp.zeros((HYPER_HIDDEN,), jnp.float32))
        w2s.append(jax.random.normal(k2, (HYPER_HIDDEN, HYPER_HIDDEN), jnp.float32)
                   * (2.0 / HYPER_HIDDEN) ** 0.5)
        b2s.append(jnp.zeros((HYPER_HIDDEN,), jnp.float32))
        # hyper-init: small last-layer weights, bias = a sane SIREN init of the param
        w3s.append(jax.random.normal(k3, (numel, HYPER_HIDDEN), jnp.float32)
                   * 1e-2 * (1.0 / HYPER_HIDDEN) ** 0.5)
        b3s.append(p.reshape(-1).astype(jnp.float32))

    return {
        'template': template,
        'hyper_w1': jnp.stack(w1s), 'hyper_b1': jnp.stack(b1s),
        'hyper_w2': jnp.stack(w2s), 'hyper_b2': jnp.stack(b2s),
        'hyper_w3_big': jnp.stack([w3s[i] for i in BIG_IDX]),
        'hyper_b3_big': jnp.stack([b3s[i] for i in BIG_IDX]),
        'hyper_w3_small': [w3s[i] for i in SMALL_IDX],
        'hyper_b3_small': [b3s[i] for i in SMALL_IDX],
    }


# ----------------------------------------------------------------------------
# Loss (plain-JAX glue; cheap elementwise reductions)
# ----------------------------------------------------------------------------
# TODO(synk): deform_implicit_loss is not defined in the provided snippet; this
# reproduces the reference DIF-Net loss.
def _cosine_similarity(a, b, eps=1e-8):
    num = jnp.sum(a * b, axis=-1)
    den = (jnp.maximum(jnp.linalg.norm(a, axis=-1), eps) *
           jnp.maximum(jnp.linalg.norm(b, axis=-1), eps))
    return num / den


def deform_implicit_loss(model_output, gt, loss_grad_deform=5.0,
                         loss_grad_temp=1e2, loss_correct=1e2):
    gt_sdf = gt['sdf']
    gt_normals = gt['normals']
    pred_sdf = model_output['model_out']
    gradient_sdf = model_output['grad_sdf']
    gradient_deform = model_output['grad_deform']
    gradient_temp = model_output['grad_temp']
    sdf_correct = model_output['sdf_correct']
    embeddings = model_output['latent_vec']

    zeros1 = jnp.zeros_like(pred_sdf)
    sdf_constraint = jnp.where(gt_sdf != -1,
                               jnp.clip(pred_sdf, -0.5, 0.5) - jnp.clip(gt_sdf, -0.5, 0.5),
                               zeros1)
    inter_constraint = jnp.where(gt_sdf != -1, zeros1,
                                 jnp.exp(-1e2 * jnp.abs(pred_sdf)))
    normal_constraint = jnp.where(
        gt_sdf == 0,
        (1.0 - _cosine_similarity(gradient_sdf, gt_normals))[..., None],
        jnp.zeros_like(gradient_sdf[..., :1]))
    grad_constraint = jnp.abs(jnp.linalg.norm(gradient_sdf, axis=-1) - 1.0)
    grad_deform_constraint = jnp.linalg.norm(gradient_deform, axis=-1)
    grad_temp_constraint = jnp.where(
        gt_sdf == 0,
        (1.0 - _cosine_similarity(gradient_temp, gt_normals))[..., None],
        jnp.zeros_like(gradient_temp[..., :1]))
    sdf_correct_constraint = jnp.abs(sdf_correct)
    embeddings_constraint = jnp.mean(embeddings ** 2)

    return {
        'sdf': jnp.mean(jnp.abs(sdf_constraint)) * 3e3,
        'inter': jnp.mean(inter_constraint) * 5e2,
        'normal_constraint': jnp.mean(normal_constraint) * 3e2,
        'grad_constraint': jnp.mean(grad_constraint) * 5e1,
        'embeddings_constraint': embeddings_constraint * 1e6,
        'grad_temp_constraint': jnp.mean(grad_temp_constraint) * loss_grad_temp,
        'grad_deform_constraint': jnp.mean(grad_deform_constraint) * loss_grad_deform,
        'sdf_correct_constraint': jnp.mean(sdf_correct_constraint) * loss_correct,
    }


# ----------------------------------------------------------------------------
# DIFDecoder.forward
# ----------------------------------------------------------------------------
def dif_decoder_forward(params, model_input, gt):
    emb = model_input['embedding']          # (B, LATENT)
    coords = model_input['coords']          # (B, N, 3)
    B, N, _ = coords.shape

    # ---- hyper_net: embedding -> per-sample deform-net parameters -------------
    # Tiny hidden layers (10 nets x 256x128 / 256x256) batched in plain XLA.
    h1 = jax.nn.relu(jnp.einsum('bl,nhl->nbh', emb, params['hyper_w1'])
                     + params['hyper_b1'][:, None, :])
    h2 = jax.nn.relu(jnp.einsum('nbh,ngh->nbg', h1, params['hyper_w2'])
                     + params['hyper_b2'][:, None, :])           # (10, B, 256)

    flat = [None] * len(DEFORM_SHAPES)
    # the three big (16384 x 256) output matrices: one fused Pallas stream
    h2_big = jnp.stack([h2[i] for i in BIG_IDX])
    big_flat = hyper_w3_stream(h2_big, params['hyper_w3_big'],
                               params['hyper_b3_big'])           # (3, B, 16384)
    for j, i in enumerate(BIG_IDX):
        flat[i] = big_flat[j]
    # the seven tiny heads (numel <= 512): plain XLA
    for j, i in enumerate(SMALL_IDX):
        w3 = params['hyper_w3_small'][j]
        b3 = params['hyper_b3_small'][j]
        flat[i] = jnp.einsum('bh,oh->bo', h2[i], w3) + b3[None, :]

    hypo = []
    for i, shape in enumerate(DEFORM_SHAPES):
        if len(shape) == 2:
            hypo.append(flat[i].reshape((B,) + shape))           # (B, out, in)
        else:
            hypo.append(flat[i].reshape((B, 1) + shape))         # (B, 1, out)

    # ---- deform_net forward + Jacobian w.r.t. input coords (Pallas) -----------
    out_d, jac_d = siren_fwd_jac(coords, hypo, shared=False)     # (B,N,4), (B,N,4,3)
    deformation = out_d[:, :, :3]
    correction = out_d[:, :, 3:]
    new_coords = coords + deformation
    grad_deform = jac_d[:, :, :3, :]        # (B,N,3,3): [b,n,i,k] = d deform_i / d x_k
    grad_correction = jac_d[:, :, 3, :]     # (B,N,3)

    # ---- template_field forward + Jacobian (Pallas, shared/resident weights) --
    sdf, jac_t = siren_fwd_jac(new_coords, params['template'], shared=True)
    grad_temp = jac_t[:, :, 0, :]           # (B,N,3): d sdf / d new_coords

    sdf_final = sdf + correction
    # chain rule through new_coords = x + deformation(x) plus correction(x):
    #   d sdf_final / dx = grad_temp @ (I + J_deform) + grad_correction
    # TODO(synk): the identity term assumes SingleBVPNet passes coords through
    # without clone/detach (x === coords); drop `grad_temp +` if it re-leafs x.
    grad_sdf = (grad_temp
                + jnp.einsum('bnj,bnjk->bnk', grad_temp, grad_deform)
                + grad_correction)

    model_out = {
        'model_in': coords,
        'grad_temp': grad_temp,
        'grad_deform': grad_deform,
        'model_out': sdf_final,
        'latent_vec': emb,
        'grad_sdf': grad_sdf,
        'sdf_correct': correction,
    }
    return deform_implicit_loss(model_out, gt,
                                loss_grad_deform=5.0,
                                loss_grad_temp=100.0,
                                loss_correct=50.0)


if __name__ == "__main__":
    key = jax.random.PRNGKey(0)
    B, N = 2, 512
    k_c, k_e, k_s, k_n, k_p = jax.random.split(key, 5)

    coords = jax.random.uniform(k_c, (B, N, 3), jnp.float32, -1.0, 1.0)
    embedding = jax.random.normal(k_e, (B, LATENT), jnp.float32) * 0.01
    # on-surface points: gt sdf == 0 (with normals); off-surface: gt sdf == -1
    on_surface = jax.random.uniform(k_s, (B, N, 1)) < 0.5
    gt_sdf = jnp.where(on_surface, 0.0, -1.0).astype(jnp.float32)
    normals = jax.random.normal(k_n, (B, N, 3), jnp.float32)
    normals = normals / jnp.linalg.norm(normals, axis=-1, keepdims=True)

    params = init_dif_decoder(k_p)
    model_input = {'coords': coords, 'embedding': embedding}
    gt = {'sdf': gt_sdf, 'normals': normals}

    losses = dif_decoder_forward(params, model_input, gt)
    losses = jax.block_until_ready(losses)
    assert all(bool(jnp.isfinite(v)) for v in jax.tree_util.tree_leaves(losses))
    print("KERNEL_OK")
</pallas_src>

<mosaic_0001>
module attributes {stable_mosaic.version = 11 : i64} {
  func.func @_hyper_w3_kernel(%arg0: i32, %arg1: i32, %arg2: memref<1x2x256xf32, #tpu.memory_space<vmem>>, %arg3: memref<1x4096x256xf32, #tpu.memory_space<vmem>>, %arg4: memref<1x1x4096xf32, #tpu.memory_space<vmem>>, %arg5: memref<1x2x4096xf32, #tpu.memory_space<vmem>>) attributes {dimension_semantics = [#tpu.dimension_semantics<parallel>, #tpu.dimension_semantics<parallel>], iteration_bounds = array<i64: 3, 4>, scalar_prefetch = 0 : i64, scratch_operands = 0 : i64, tpu.core_type = #tpu.core_type<tc>, window_params = [{transform_indices = @transform_0, window_bounds = array<i64: 1, 2, 256>}, {transform_indices = @transform_1, window_bounds = array<i64: 1, 4096, 256>}, {transform_indices = @transform_2, window_bounds = array<i64: 1, 1, 4096>}, {transform_indices = @transform_3, window_bounds = array<i64: 1, 2, 4096>}]} {
    %c0 = arith.constant 0 : index
    %c0_0 = arith.constant 0 : index
    %c0_1 = arith.constant 0 : index
    %0 = vector.load %arg2[%c0, %c0_0, %c0_1] : memref<1x2x256xf32, #tpu.memory_space<vmem>>, vector<1x2x256xf32>
    %1 = vector.shape_cast %0 : vector<1x2x256xf32> to vector<2x256xf32>
    %c0_2 = arith.constant 0 : index
    %c0_3 = arith.constant 0 : index
    %c0_4 = arith.constant 0 : index
    %2 = vector.load %arg3[%c0_2, %c0_3, %c0_4] : memref<1x4096x256xf32, #tpu.memory_space<vmem>>, vector<1x4096x256xf32>
    %3 = vector.shape_cast %2 : vector<1x4096x256xf32> to vector<4096x256xf32>
    %cst = arith.constant dense<0.000000e+00> : vector<2x4096xf32>
    %4 = tpu.matmul %1, %3, %cst {dimension_numbers = #tpu.dot_dimension_numbers<[1], [1], [0], [0], [0, 0, 1, 0], [], []>} : vector<2x256xf32>, vector<4096x256xf32>, vector<2x4096xf32> -> vector<2x4096xf32>
    %c0_5 = arith.constant 0 : index
    %c0_6 = arith.constant 0 : index
    %c0_7 = arith.constant 0 : index
    %5 = vector.load %arg4[%c0_5, %c0_6, %c0_7] : memref<1x1x4096xf32, #tpu.memory_space<vmem>>, vector<1x1x4096xf32>
    %6 = vector.shape_cast %5 : vector<1x1x4096xf32> to vector<1x4096xf32>
    %7 = vector.broadcast %6 : vector<1x4096xf32> to vector<2x4096xf32>
    %8 = arith.addf %4, %7 : vector<2x4096xf32>
    %c0_8 = arith.constant 0 : index
    %c0_9 = arith.constant 0 : index
    %c0_10 = arith.constant 0 : index
    %9 = vector.load %arg5[%c0_8, %c0_9, %c0_10] : memref<1x2x4096xf32, #tpu.memory_space<vmem>>, vector<1x2x4096xf32>
    %10 = vector.shape_cast %9 : vector<1x2x4096xf32> to vector<2x4096xf32>
    %11 = vector.shape_cast %8 : vector<2x4096xf32> to vector<1x2x4096xf32>
    tpu.vector_store %arg5[%c0_8, %c0_9, %c0_10], %11 {strides = array<i32>} : memref<1x2x4096xf32, #tpu.memory_space<vmem>>, vector<1x2x4096xf32>,
    return
  }
  func.func @transform_0(%arg0: i32, %arg1: i32) -> (i32, i32, i32) {
    %c0_i32 = arith.constant 0 : i32
    %c0_i32_0 = arith.constant 0 : i32
    %c0_i32_1 = arith.constant 0 : i32
    return %arg0, %c0_i32, %c0_i32_0 : i32, i32, i32
  }
  func.func @transform_1(%arg0: i32, %arg1: i32) -> (i32, i32, i32) {
    %c0_i32 = arith.constant 0 : i32
    %c0_i32_0 = arith.constant 0 : i32
    return %arg0, %arg1, %c0_i32 : i32, i32, i32
  }
  func.func @transform_2(%arg0: i32, %arg1: i32) -> (i32, i32, i32) {
    %c0_i32 = arith.constant 0 : i32
    %c0_i32_0 = arith.constant 0 : i32
    return %arg0, %c0_i32, %arg1 : i32, i32, i32
  }
  func.func @transform_3(%arg0: i32, %arg1: i32) -> (i32, i32, i32) {
    %c0_i32 = arith.constant 0 : i32
    %c0_i32_0 = arith.constant 0 : i32
    return %arg0, %c0_i32, %arg1 : i32, i32, i32
  }
}

</mosaic_0001>

<llo_original>
// kernel: tpu_custom_call.1
$region0: #{tpu_custom_call.1}
  #allocation0 [shape = 'u32[]', space=smem, size = 0x4, offset = 0x4, fixed_abs, tag = 'smem constant byte address 0x4 - core index']
  #allocation1 [shape = 'u32[144,128]{1,0:T(1,128)}', space=vmem, size = 0x12000, scoped, tag = 'internal scratch']
  %s0 = inlined_call_operand.hbm [shape: f32[3,2,256], index: 0, kind: input, shape index: {}]
  %s1 = inlined_call_operand.hbm [shape: f32[3,16384,256], index: 1, kind: input, shape index: {}]
  %s2 = inlined_call_operand.hbm [shape: f32[3,1,16384], index: 2, kind: input, shape index: {}]
  %s3 = inlined_call_operand.hbm [shape: f32[3,2,16384], index: 3, kind: output, shape index: {}]
  %s4 = sld [smem:[#allocation0]]
  $region57: #{tpu_custom_call.1} parent=0
    _
  %s6 = ssub.s32 1, %s4
  %s7 = scalar_select 0, %s6, %s4
  $region1: #{tpu_custom_call.1} parent=0
    #allocation2 [shape = 'u8[4096]{0}', space=vmem, size = 0x1000, scoped, tag = 'input window, operand 0']
    #allocation3 [shape = 's32[2]{0}', space=sflag, size = 0x8, scoped, tag = 'scoped memory for tpu_custom_call.1']
    #allocation4 [shape = 's32[2]{0}', space=sflag, size = 0x8, scoped, tag = 'scoped memory for tpu_custom_call.1']
    #allocation5 [shape = 'u8[8388608]{0}', space=vmem, size = 0x800000, scoped, tag = 'input window, operand 1']
    #allocation6 [shape = 's32[2]{0}', space=sflag, size = 0x8, scoped, tag = 'scoped memory for tpu_custom_call.1']
    #allocation7 [shape = 'u8[32768]{0}', space=vmem, size = 0x8000, scoped, tag = 'input window, operand 2']
    #allocation8 [shape = 'u8[65536]{0}', space=vmem, size = 0x10000, scoped, tag = 'output window, operand 0']
    %8 = vsyncpa [#allocation3], 0
    %s9 = scalar_lea.sflag [#allocation3], 1
    %10 = vsyncpa %s9, 0
    %11 = vsyncpa [#allocation6], 0
    %s12 = scalar_lea.sflag [#allocation6], 1
    %13 = vsyncpa %s12, 0
    %14 = vsyncpa [#allocation4], 0
    %s15 = scalar_lea.sflag [#allocation4], 1
    %16 = vsyncpa %s15, 0
    loop: start=0, step=1, limit=14
    $region2: #{tpu_custom_call.1} parent=1 // loop_pre_header
      _
    $region3: #{tpu_custom_call.1} parent=1 // loop_header
      %s18 = sphi 0, %s22
      %p19 = scmp.ge.s32.totalorder %s18, 14
      %s25 = sphi 0, %s37
      %s26 = sphi 0, %s33
      %s27 = sphi 0, %s25
      %s28 = sphi 0, %s26
      %s29 = sphi 0, %s27
      %s30 = sphi 0, %s28
      %s40 = sphi 0, %s42
      %s43 = sphi 0, %s40
      %s44 = sphi 0, %s43
      %s60 = sphi 0, %s44
      %s68 = sphi 0, %s70
      %s71 = sphi 0, %s68
      %s72 = sphi 0, %s71
      %s88 = sphi 0, %s72
      %s96 = sphi 0, %s98
      %s99 = sphi 0, %s96
      %s100 = sphi 0, %s99
      %s116 = sphi 0, %s100
      %s124 = sphi 0, %s126
      %s127 = sphi 0, %s124
      %s128 = sphi 0, %s127
      %s144 = sphi 0, %s128
    $region4: #{tpu_custom_call.1} parent=1 // loop_header_branch
      %21 = sbr.rel (%p19) target = $region8
    $region5: #{tpu_custom_call.1} parent=1 // loop_body
      %s23 = ssub.s32 %s18, 1
      %s24 = ssub.s32 %s18, 2
      %s31 = sadd.s32 1, %s26
      %p32 = scmp.ge.s32.totalorder %s31, 4
      %s33 = scalar_select %p32, 0, %s31
      %s34 = sadd.s32 1, %s25
      %s35 = scalar_select %p32, %s34, %s25
      %p36 = scmp.ge.s32.totalorder %s35, 3
      %s37 = scalar_select %p36, 0, %s35
      %s38 = ssub.s32 %s25, %s37
      %p39 = scmp.eq.s32.totalorder %s38, 0
      %s41 = sadd.s32 %s40, 1
      %s42 = scalar_select %p39, %s40, %s41
      %p45 = pneg %p39
      %p46 = scmp.eq.s32.totalorder %s18, 11
      %p47 = por %p45, %p46
      %p48 = scmp.ne.s32.totalorder %s40, %s43
      %p49 = scmp.eq.s32.totalorder %s18, 0
      %p50 = por %p48, %p49
      %p51 = scmp.ne.s32.totalorder %s40, %s43
      %p52 = scmp.eq.s32.totalorder %s23, 11
      %p53 = por %p51, %p52
      %p54 = scmp.ne.s32.totalorder %s43, %s44
      %p55 = scmp.eq.s32.totalorder %s23, 0
      %p56 = por %p54, %p55
      %p57 = scmp.ne.s32.totalorder %s43, %s44
      %p58 = scmp.eq.s32.totalorder %s24, 11
      %p59 = por %p57, %p58
      %p61 = scmp.ne.s32.totalorder %s44, %s60
      %p62 = scmp.eq.s32.totalorder %s24, 0
      %p63 = por %p61, %p62
      %s64 = ssub.s32 %s25, %s37
      %s65 = ssub.s32 %s26, %s33
      %s66 = sor.u32 %s64, %s65
      %p67 = scmp.eq.s32.totalorder %s66, 0
      %s69 = sadd.s32 %s68, 1
      %s70 = scalar_select %p67, %s68, %s69
      %p73 = pneg %p67
      %p74 = scmp.eq.s32.totalorder %s18, 11
      %p75 = por %p73, %p74
      %p76 = scmp.ne.s32.totalorder %s68, %s71
      %p77 = scmp.eq.s32.totalorder %s18, 0
      %p78 = por %p76, %p77
      %p79 = scmp.ne.s32.totalorder %s68, %s71
      %p80 = scmp.eq.s32.totalorder %s23, 11
      %p81 = por %p79, %p80
      %p82 = scmp.ne.s32.totalorder %s71, %s72
      %p83 = scmp.eq.s32.totalorder %s23, 0
      %p84 = por %p82, %p83
      %p85 = scmp.ne.s32.totalorder %s71, %s72
      %p86 = scmp.eq.s32.totalorder %s24, 11
      %p87 = por %p85, %p86
      %p89 = scmp.ne.s32.totalorder %s72, %s88
      %p90 = scmp.eq.s32.totalorder %s24, 0
      %p91 = por %p89, %p90
      %s92 = ssub.s32 %s25, %s37
      %s93 = ssub.s32 %s26, %s33
      %s94 = sor.u32 %s92, %s93
      %p95 = scmp.eq.s32.totalorder %s94, 0
      %s97 = sadd.s32 %s96, 1
      %s98 = scalar_select %p95, %s96, %s97
      %p101 = pneg %p95
      %p102 = scmp.eq.s32.totalorder %s18, 11
      %p103 = por %p101, %p102
      %p104 = scmp.ne.s32.totalorder %s96, %s99
      %p105 = scmp.eq.s32.totalorder %s18, 0
      %p106 = por %p104, %p105
      %p107 = scmp.ne.s32.totalorder %s96, %s99
      %p108 = scmp.eq.s32.totalorder %s23, 11
      %p109 = por %p107, %p108
      %p110 = scmp.ne.s32.totalorder %s99, %s100
      %p111 = scmp.eq.s32.totalorder %s23, 0
      %p112 = por %p110, %p111
      %p113 = scmp.ne.s32.totalorder %s99, %s100
      %p114 = scmp.eq.s32.totalorder %s24, 11
      %p115 = por %p113, %p114
      %p117 = scmp.ne.s32.totalorder %s100, %s116
      %p118 = scmp.eq.s32.totalorder %s24, 0
      %p119 = por %p117, %p118
      %s120 = ssub.s32 %s25, %s37
      %s121 = ssub.s32 %s26, %s33
      %s122 = sor.u32 %s120, %s121
      %p123 = scmp.eq.s32.totalorder %s122, 0
      %s125 = sadd.s32 %s124, 1
      %s126 = scalar_select %p123, %s124, %s125
      %p129 = pneg %p123
      %p130 = scmp.eq.s32.totalorder %s18, 11
      %p131 = por %p129, %p130
      %p132 = scmp.ne.s32.totalorder %s124, %s127
      %p133 = scmp.eq.s32.totalorder %s18, 0
      %p134 = por %p132, %p133
      %p135 = scmp.ne.s32.totalorder %s124, %s127
      %p136 = scmp.eq.s32.totalorder %s23, 11
      %p137 = por %p135, %p136
      %p138 = scmp.ne.s32.totalorder %s127, %s128
      %p139 = scmp.eq.s32.totalorder %s23, 0
      %p140 = por %p138, %p139
      %p141 = scmp.ne.s32.totalorder %s127, %s128
      %p142 = scmp.eq.s32.totalorder %s24, 11
      %p143 = por %p141, %p142
      %p145 = scmp.ne.s32.totalorder %s128, %s144
      %p146 = scmp.eq.s32.totalorder %s24, 0
      %p147 = por %p145, %p146
      %p148 = scmp.le.s32.totalorder 1, %s18
      %p149 = scmp.lt.s32.totalorder %s18, 13
      %p150 = pnand %p148, %p149
      %p151 = pneg %p150
      // Predicated region
      $region9: #{tpu_custom_call.1} parent=5 // pred_check
        _
      $region10: #{tpu_custom_call.1} parent=5 // pred_check_branch
        %153 = sbr.rel (%p150) target = $region12
      $region11: #{tpu_custom_call.1} parent=5 // pred_region
        %s154 = ssub.s32 %s18, 1
      $region12: #{tpu_custom_call.1} parent=5 // pred_fallthru
        _
      %p155 = scmp.lt.s32.totalorder %s18, 12
      // Predicated region
      $region13: #{tpu_custom_call.1} parent=5 // pred_check
        %p156 = pneg %p155
      $region14: #{tpu_custom_call.1} parent=5 // pred_check_branch
        %158 = sbr.rel (%p156) target = $region16
      $region15: #{tpu_custom_call.1} parent=5 // pred_region
        // Predicated region
        $region17: #{tpu_custom_call.1} parent=15 // pred_check
          %p159 = pneg %p50
        $region18: #{tpu_custom_call.1} parent=15 // pred_check_branch
          %161 = sbr.rel (%p159) target = $region20
        $region19: #{tpu_custom_call.1} parent=15 // pred_region
          %s162 = sand.u32 %s40, 1
          %s163 = scalar_lea.sflag [#allocation3], %s162
          %s164 = sand.u32 %s40, 1
          %s165 = smul.addr %s164, 4
          %s166 = scalar_lea.vmem [#allocation2], %s165
          %s168 = ssub.s32 64, 64
          %169 = vsyncadd %s163, %s168
          %s170 = smul.addr %s25, 2
          %s171 = smul.addr %s170, 32
          %s172 = scalar_lea.hbm %s0, %s171
          %s174 = sshll.u32 %s166, 4
          %s175 = int_to_ptr.vmem [resolvable:$true] %s174
          %177 = dma.hbm_to_vmem [thread:$0]  %s172, 64, %s175, %s163
        $region20: #{tpu_custom_call.1} parent=15 // pred_fallthru
          _
        // Predicated region
        $region21: #{tpu_custom_call.1} parent=15 // pred_check
          %p178 = pneg %p78
        $region22: #{tpu_custom_call.1} parent=15 // pred_check_branch
          %180 = sbr.rel (%p178) target = $region24
        $region23: #{tpu_custom_call.1} parent=15 // pred_region
          %s181 = sand.u32 %s18, 1
          %s182 = scalar_lea.sflag [#allocation6], %s181
          %s183 = sand.u32 %s68, 1
          %s184 = smul.addr %s183, 8192
          %s185 = scalar_lea.vmem [#allocation5], %s184
          %s186 = smul.u32 512, %s26
          %s188 = ssub.s32 131072, 131072
          %189 = vsyncadd %s182, %s188
          %s190 = smul.addr %s186, 2
          %s191 = smul.addr %s25, 4096
          %s192 = sadd.s32 %s190, %s191
          %s193 = smul.addr %s192, 128
          %s194 = scalar_lea.hbm %s1, %s193
          %s195 = sshll.u32 %s185, 4
          %s196 = int_to_ptr.vmem [resolvable:$true] %s195
          %201 = dma.hbm_to_vmem [thread:$0]  %s194, 131072, %s196, %s182, 256, 256, 16
        $region24: #{tpu_custom_call.1} parent=15 // pred_fallthru
          _
        // Predicated region
        $region25: #{tpu_custom_call.1} parent=15 // pred_check
          %p202 = pneg %p106
        $region26: #{tpu_custom_call.1} parent=15 // pred_check_branch
          %204 = sbr.rel (%p202) target = $region28
        $region27: #{tpu_custom_call.1} parent=15 // pred_region
          %s205 = sand.u32 %s18, 1
          %s206 = scalar_lea.sflag [#allocation6], %s205
          %s207 = sand.u32 %s96, 1
          %s208 = smul.addr %s207, 32
          %s209 = scalar_lea.vmem [#allocation7], %s208
          %s210 = smul.u32 32, %s26
          %s212 = ssub.s32 512, 512
          %213 = vsyncadd %s206, %s212
          %s214 = smul.addr %s25, 128
          %s215 = sadd.s32 %s210, %s214
          %s216 = smul.addr %s215, 16
          %s217 = scalar_lea.hbm %s2, %s216
          %s219 = sshll.u32 %s209, 4
          %s220 = int_to_ptr.vmem [resolvable:$true] %s219
          %222 = dma.hbm_to_vmem [thread:$0]  %s217, 512, %s220, %s206
        $region28: #{tpu_custom_call.1} parent=15 // pred_fallthru
          _
      $region16: #{tpu_custom_call.1} parent=5 // pred_fallthru
        _
      %p223 = scmp.le.s32.totalorder 1, %s18
      %p224 = scmp.lt.s32.totalorder %s18, 13
      %p225 = pnand %p223, %p224
      %p226 = pneg %p225
      // Predicated region
      $region29: #{tpu_custom_call.1} parent=5 // pred_check
        _
      $region30: #{tpu_custom_call.1} parent=5 // pred_check_branch
        %228 = sbr.rel (%p225) target = $region32
      $region31: #{tpu_custom_call.1} parent=5 // pred_region
        %s229 = ssub.s32 %s18, 1
        %s230 = sand.u32 %s43, 1
        %s231 = scalar_lea.sflag [#allocation3], %s230
        %s232 = sand.u32 %s43, 1
        %s233 = smul.addr %s232, 4
        %s234 = scalar_lea.vmem [#allocation2], %s233
        // Predicated region
        $region33: #{tpu_custom_call.1} parent=31 // pred_check
          %p235 = pneg %p56
        $region34: #{tpu_custom_call.1} parent=31 // pred_check_branch
          %237 = sbr.rel (%p235) target = $region36
        $region35: #{tpu_custom_call.1} parent=31 // pred_region
          %238 = dma.done %s231, 64
        $region36: #{tpu_custom_call.1} parent=31 // pred_fallthru
          _
        %s239 = sand.u32 %s23, 1
        %s240 = scalar_lea.sflag [#allocation6], %s239
        %s241 = sand.u32 %s71, 1
        %s242 = smul.addr %s241, 8192
        %s243 = scalar_lea.vmem [#allocation5], %s242
        // Predicated region
        $region37: #{tpu_custom_call.1} parent=31 // pred_check
          %p244 = pneg %p84
        $region38: #{tpu_custom_call.1} parent=31 // pred_check_branch
          %246 = sbr.rel (%p244) target = $region40
        $region39: #{tpu_custom_call.1} parent=31 // pred_region
          %247 = dma.done %s240, 131072
        $region40: #{tpu_custom_call.1} parent=31 // pred_fallthru
          _
        %s248 = sand.u32 %s23, 1
        %s249 = scalar_lea.sflag [#allocation6], %s248
        %s250 = sand.u32 %s99, 1
        %s251 = smul.addr %s250, 32
        %s252 = scalar_lea.vmem [#allocation7], %s251
        // Predicated region
        $region41: #{tpu_custom_call.1} parent=31 // pred_check
          %p253 = pneg %p112
        $region42: #{tpu_custom_call.1} parent=31 // pred_check_branch
          %255 = sbr.rel (%p253) target = $region44
        $region43: #{tpu_custom_call.1} parent=31 // pred_region
          %256 = dma.done %s249, 512
        $region44: #{tpu_custom_call.1} parent=31 // pred_fallthru
          _
        %s257 = sand.u32 %s43, 1
        %s258 = scalar_lea.sflag [#allocation3], %s257
        %s259 = sand.u32 %s43, 1
        %s260 = smul.addr %s259, 4
        %s261 = scalar_lea.vmem [#allocation2], %s260
        %p262 = pneg %p56
        %p263 = pneg %p53
        %s264 = sand.u32 %s23, 1
        %s265 = scalar_lea.sflag [#allocation6], %s264
        %s266 = sand.u32 %s71, 1
        %s267 = smul.addr %s266, 8192
        %s268 = scalar_lea.vmem [#allocation5], %s267
        %p269 = pneg %p84
        %p270 = pneg %p81
        %s271 = sand.u32 %s23, 1
        %s272 = scalar_lea.sflag [#allocation6], %s271
        %s273 = sand.u32 %s99, 1
        %s274 = smul.addr %s273, 32
        %s275 = scalar_lea.vmem [#allocation7], %s274
        %p276 = pneg %p112
        %p277 = pneg %p109
        %p278 = pneg %p140
        %p279 = pneg %p137
        %s280 = sand.u32 %s127, 1
        %s281 = scalar_lea.sflag [#allocation4], %s280
        %s282 = sand.u32 %s127, 1
        %s283 = smul.addr %s282, 64
        %s284 = scalar_lea.vmem [#allocation8], %s283
        %s285 = smul.u32 512, %s28
        %s286 = smul.u32 32, %s28
        %s287 = smul.u32 32, %s28
        %v288 = vld [vmem:[%s234] sm:$0xf]
        %v289 = vld [vmem:[%s243] sm:$0xff]
        %v290 = vld [vmem:[%s243 + $0x8] sm:$0xff]
        %v291 = vld [vmem:[%s243 + $0x10] sm:$0xff]
        %v292 = vld [vmem:[%s243 + $0x18] sm:$0xff]
        %v293 = vld [vmem:[%s243 + $0x20] sm:$0xff]
        %v294 = vld [vmem:[%s243 + $0x28] sm:$0xff]
        %v295 = vld [vmem:[%s243 + $0x30] sm:$0xff]
        %v296 = vld [vmem:[%s243 + $0x38] sm:$0xff]
        %v297 = vld [vmem:[%s243 + $0x40] sm:$0xff]
        %v298 = vld [vmem:[%s243 + $0x48] sm:$0xff]
        %v299 = vld [vmem:[%s243 + $0x50] sm:$0xff]
        %v300 = vld [vmem:[%s243 + $0x58] sm:$0xff]
        %v301 = vld [vmem:[%s243 + $0x60] sm:$0xff]
        %v302 = vld [vmem:[%s243 + $0x68] sm:$0xff]
        %v303 = vld [vmem:[%s243 + $0x70] sm:$0xff]
        %v304 = vld [vmem:[%s243 + $0x78] sm:$0xff]
        %v305 = vld [vmem:[%s243 + $0x80] sm:$0xff]
        %v306 = vld [vmem:[%s243 + $0x88] sm:$0xff]
        %v307 = vld [vmem:[%s243 + $0x90] sm:$0xff]
        %v308 = vld [vmem:[%s243 + $0x98] sm:$0xff]
        %v309 = vld [vmem:[%s243 + $0xa0] sm:$0xff]
        %v310 = vld [vmem:[%s243 + $0xa8] sm:$0xff]
        %v311 = vld [vmem:[%s243 + $0xb0] sm:$0xff]
        %v312 = vld [vmem:[%s243 + $0xb8] sm:$0xff]
        %v313 = vld [vmem:[%s243 + $0xc0] sm:$0xff]
        %v314 = vld [vmem:[%s243 + $0xc8] sm:$0xff]
        %v315 = vld [vmem:[%s243 + $0xd0] sm:$0xff]
        %v316 = vld [vmem:[%s243 + $0xd8] sm:$0xff]
        %v317 = vld [vmem:[%s243 + $0xe0] sm:$0xff]
        %v318 = vld [vmem:[%s243 + $0xe8] sm:$0xff]
        %v319 = vld [vmem:[%s243 + $0xf0] sm:$0xff]
        %v320 = vld [vmem:[%s243 + $0xf8] sm:$0xff]
        %v321 = vld [vmem:[%s243 + $0x100] sm:$0xff]
        %v322 = vld [vmem:[%s243 + $0x108] sm:$0xff]
        %v323 = vld [vmem:[%s243 + $0x110] sm:$0xff]
        %v324 = vld [vmem:[%s243 + $0x118] sm:$0xff]
        %v325 = vld [vmem:[%s243 + $0x120] sm:$0xff]
        %v326 = vld [vmem:[%s243 + $0x128] sm:$0xff]
        %v327 = vld [vmem:[%s243 + $0x130] sm:$0xff]
        %v328 = vld [vmem:[%s243 + $0x138] sm:$0xff]
        %v329 = vld [vmem:[%s243 + $0x140] sm:$0xff]
        %v330 = vld [vmem:[%s243 + $0x148] sm:$0xff]
        %v331 = vld [vmem:[%s243 + $0x150] sm:$0xff]
        %v332 = vld [vmem:[%s243 + $0x158] sm:$0xff]
        %v333 = vld [vmem:[%s243 + $0x160] sm:$0xff]
        %v334 = vld [vmem:[%s243 + $0x168] sm:$0xff]
        %v335 = vld [vmem:[%s243 + $0x170] sm:$0xff]
        %v336 = vld [vmem:[%s243 + $0x178] sm:$0xff]
        %v337 = vld [vmem:[%s243 + $0x180] sm:$0xff]
        %v338 = vld [vmem:[%s243 + $0x188] sm:$0xff]
        %v339 = vld [vmem:[%s243 + $0x190] sm:$0xff]
        %v340 = vld [vmem:[%s243 + $0x198] sm:$0xff]
        %v341 = vld [vmem:[%s243 + $0x1a0] sm:$0xff]
        %v342 = vld [vmem:[%s243 + $0x1a8] sm:$0xff]
        %v343 = vld [vmem:[%s243 + $0x1b0] sm:$0xff]
        %v344 = vld [vmem:[%s243 + $0x1b8] sm:$0xff]
        %v345 = vld [vmem:[%s243 + $0x1c0] sm:$0xff]
        %v346 = vld [vmem:[%s243 + $0x1c8] sm:$0xff]
        %v347 = vld [vmem:[%s243 + $0x1d0] sm:$0xff]
        %v348 = vld [vmem:[%s243 + $0x1d8] sm:$0xff]
        %v349 = vld [vmem:[%s243 + $0x1e0] sm:$0xff]
        %v350 = vld [vmem:[%s243 + $0x1e8] sm:$0xff]
        %v351 = vld [vmem:[%s243 + $0x1f0] sm:$0xff]
        %v352 = vld [vmem:[%s243 + $0x1f8] sm:$0xff]
        %v353 = vld [vmem:[%s243 + $0x200] sm:$0xff]
        %v354 = vld [vmem:[%s243 + $0x208] sm:$0xff]
        %v355 = vld [vmem:[%s243 + $0x210] sm:$0xff]
        %v356 = vld [vmem:[%s243 + $0x218] sm:$0xff]
        %v357 = vld [vmem:[%s243 + $0x220] sm:$0xff]
        %v358 = vld [vmem:[%s243 + $0x228] sm:$0xff]
        %v359 = vld [vmem:[%s243 + $0x230] sm:$0xff]
        %v360 = vld [vmem:[%s243 + $0x238] sm:$0xff]
        %v361 = vld [vmem:[%s243 + $0x240] sm:$0xff]
        %v362 = vld [vmem:[%s243 + $0x248] sm:$0xff]
        %v363 = vld [vmem:[%s243 + $0x250] sm:$0xff]
        %v364 = vld [vmem:[%s243 + $0x258] sm:$0xff]
        %v365 = vld [vmem:[%s243 + $0x260] sm:$0xff]
        %v366 = vld [vmem:[%s243 + $0x268] sm:$0xff]
        %v367 = vld [vmem:[%s243 + $0x270] sm:$0xff]
        %v368 = vld [vmem:[%s243 + $0x278] sm:$0xff]
        %v369 = vld [vmem:[%s243 + $0x280] sm:$0xff]
        %v370 = vld [vmem:[%s243 + $0x288] sm:$0xff]
        %v371 = vld [vmem:[%s243 + $0x290] sm:$0xff]
        %v372 = vld [vmem:[%s243 + $0x298] sm:$0xff]
        %v373 = vld [vmem:[%s243 + $0x2a0] sm:$0xff]
        %v374 = vld [vmem:[%s243 + $0x2a8] sm:$0xff]
        %v375 = vld [vmem:[%s243 + $0x2b0] sm:$0xff]
        %v376 = vld [vmem:[%s243 + $0x2b8] sm:$0xff]
        %v377 = vld [vmem:[%s243 + $0x2c0] sm:$0xff]
        %v378 = vld [vmem:[%s243 + $0x2c8] sm:$0xff]
        %v379 = vld [vmem:[%s243 + $0x2d0] sm:$0xff]
        %v380 = vld [vmem:[%s243 + $0x2d8] sm:$0xff]
        %v381 = vld [vmem:[%s243 + $0x2e0] sm:$0xff]
        %v382 = vld [vmem:[%s243 + $0x2e8] sm:$0xff]
        %v383 = vld [vmem:[%s243 + $0x2f0] sm:$0xff]
        %v384 = vld [vmem:[%s243 + $0x2f8] sm:$0xff]
        %v385 = vld [vmem:[%s243 + $0x300] sm:$0xff]
        %v386 = vld [vmem:[%s243 + $0x308] sm:$0xff]
        %v387 = vld [vmem:[%s243 + $0x310] sm:$0xff]
        %v388 = vld [vmem:[%s243 + $0x318] sm:$0xff]
        %v389 = vld [vmem:[%s243 + $0x320] sm:$0xff]
        %v390 = vld [vmem:[%s243 + $0x328] sm:$0xff]
        %v391 = vld [vmem:[%s243 + $0x330] sm:$0xff]
        %v392 = vld [vmem:[%s243 + $0x338] sm:$0xff]
        %v393 = vld [vmem:[%s243 + $0x340] sm:$0xff]
        %v394 = vld [vmem:[%s243 + $0x348] sm:$0xff]
        %v395 = vld [vmem:[%s243 + $0x350] sm:$0xff]
        %v396 = vld [vmem:[%s243 + $0x358] sm:$0xff]
        %v397 = vld [vmem:[%s243 + $0x360] sm:$0xff]
        %v398 = vld [vmem:[%s243 + $0x368] sm:$0xff]
        %v399 = vld [vmem:[%s243 + $0x370] sm:$0xff]
        %v400 = vld [vmem:[%s243 + $0x378] sm:$0xff]
        %v401 = vld [vmem:[%s243 + $0x380] sm:$0xff]
        %v402 = vld [vmem:[%s243 + $0x388] sm:$0xff]
        %v403 = vld [vmem:[%s243 + $0x390] sm:$0xff]
        %v404 = vld [vmem:[%s243 + $0x398] sm:$0xff]
        %v405 = vld [vmem:[%s243 + $0x3a0] sm:$0xff]
        %v406 = vld [vmem:[%s243 + $0x3a8] sm:$0xff]
        %v407 = vld [vmem:[%s243 + $0x3b0] sm:$0xff]
        %v408 = vld [vmem:[%s243 + $0x3b8] sm:$0xff]
        %v409 = vld [vmem:[%s243 + $0x3c0] sm:$0xff]
        %v410 = vld [vmem:[%s243 + $0x3c8] sm:$0xff]
        %v411 = vld [vmem:[%s243 + $0x3d0] sm:$0xff]
        %v412 = vld [vmem:[%s243 + $0x3d8] sm:$0xff]
        %v413 = vld [vmem:[%s243 + $0x3e0] sm:$0xff]
        %v414 = vld [vmem:[%s243 + $0x3e8] sm:$0xff]
        %v415 = vld [vmem:[%s243 + $0x3f0] sm:$0xff]
        %v416 = vld [vmem:[%s243 + $0x3f8] sm:$0xff]
        %v417 = vld [vmem:[%s243 + $0x400] sm:$0xff]
        %v418 = vld [vmem:[%s243 + $0x408] sm:$0xff]
        %v419 = vld [vmem:[%s243 + $0x410] sm:$0xff]
        %v420 = vld [vmem:[%s243 + $0x418] sm:$0xff]
        %v421 = vld [vmem:[%s243 + $0x420] sm:$0xff]
        %v422 = vld [vmem:[%s243 + $0x428] sm:$0xff]
        %v423 = vld [vmem:[%s243 + $0x430] sm:$0xff]
        %v424 = vld [vmem:[%s243 + $0x438] sm:$0xff]
        %v425 = vld [vmem:[%s243 + $0x440] sm:$0xff]
        %v426 = vld [vmem:[%s243 + $0x448] sm:$0xff]
        %v427 = vld [vmem:[%s243 + $0x450] sm:$0xff]
        %v428 = vld [vmem:[%s243 + $0x458] sm:$0xff]
        %v429 = vld [vmem:[%s243 + $0x460] sm:$0xff]
        %v430 = vld [vmem:[%s243 + $0x468] sm:$0xff]
        %v431 = vld [vmem:[%s243 + $0x470] sm:$0xff]
        %v432 = vld [vmem:[%s243 + $0x478] sm:$0xff]
        %v433 = vld [vmem:[%s243 + $0x480] sm:$0xff]
        %v434 = vld [vmem:[%s243 + $0x488] sm:$0xff]
        %v435 = vld [vmem:[%s243 + $0x490] sm:$0xff]
        %v436 = vld [vmem:[%s243 + $0x498] sm:$0xff]
        %v437 = vld [vmem:[%s243 + $0x4a0] sm:$0xff]
        %v438 = vld [vmem:[%s243 + $0x4a8] sm:$0xff]
        %v439 = vld [vmem:[%s243 + $0x4b0] sm:$0xff]
        %v440 = vld [vmem:[%s243 + $0x4b8] sm:$0xff]
        %v441 = vld [vmem:[%s243 + $0x4c0] sm:$0xff]
        %v442 = vld [vmem:[%s243 + $0x4c8] sm:$0xff]
        %v443 = vld [vmem:[%s243 + $0x4d0] sm:$0xff]
        %v444 = vld [vmem:[%s243 + $0x4d8] sm:$0xff]
        %v445 = vld [vmem:[%s243 + $0x4e0] sm:$0xff]
        %v446 = vld [vmem:[%s243 + $0x4e8] sm:$0xff]
        %v447 = vld [vmem:[%s243 + $0x4f0] sm:$0xff]
        %v448 = vld [vmem:[%s243 + $0x4f8] sm:$0xff]
        %v449 = vld [vmem:[%s243 + $0x500] sm:$0xff]
        %v450 = vld [vmem:[%s243 + $0x508] sm:$0xff]
        %v451 = vld [vmem:[%s243 + $0x510] sm:$0xff]
        %v452 = vld [vmem:[%s243 + $0x518] sm:$0xff]
        %v453 = vld [vmem:[%s243 + $0x520] sm:$0xff]
        %v454 = vld [vmem:[%s243 + $0x528] sm:$0xff]
        %v455 = vld [vmem:[%s243 + $0x530] sm:$0xff]
        %v456 = vld [vmem:[%s243 + $0x538] sm:$0xff]
        %v457 = vld [vmem:[%s243 + $0x540] sm:$0xff]
        %v458 = vld [vmem:[%s243 + $0x548] sm:$0xff]
        %v459 = vld [vmem:[%s243 + $0x550] sm:$0xff]
        %v460 = vld [vmem:[%s243 + $0x558] sm:$0xff]
        %v461 = vld [vmem:[%s243 + $0x560] sm:$0xff]
        %v462 = vld [vmem:[%s243 + $0x568] sm:$0xff]
        %v463 = vld [vmem:[%s243 + $0x570] sm:$0xff]
        %v464 = vld [vmem:[%s243 + $0x578] sm:$0xff]
        %v465 = vld [vmem:[%s243 + $0x580] sm:$0xff]
        %v466 = vld [vmem:[%s243 + $0x588] sm:$0xff]
        %v467 = vld [vmem:[%s243 + $0x590] sm:$0xff]
        %v468 = vld [vmem:[%s243 + $0x598] sm:$0xff]
        %v469 = vld [vmem:[%s243 + $0x5a0] sm:$0xff]
        %v470 = vld [vmem:[%s243 + $0x5a8] sm:$0xff]
        %v471 = vld [vmem:[%s243 + $0x5b0] sm:$0xff]
        %v472 = vld [vmem:[%s243 + $0x5b8] sm:$0xff]
        %v473 = vld [vmem:[%s243 + $0x5c0] sm:$0xff]
        %v474 = vld [vmem:[%s243 + $0x5c8] sm:$0xff]
        %v475 = vld [vmem:[%s243 + $0x5d0] sm:$0xff]
        %v476 = vld [vmem:[%s243 + $0x5d8] sm:$0xff]
        %v477 = vld [vmem:[%s243 + $0x5e0] sm:$0xff]
        %v478 = vld [vmem:[%s243 + $0x5e8] sm:$0xff]
        %v479 = vld [vmem:[%s243 + $0x5f0] sm:$0xff]
        %v480 = vld [vmem:[%s243 + $0x5f8] sm:$0xff]
        %v481 = vld [vmem:[%s243 + $0x600] sm:$0xff]
        %v482 = vld [vmem:[%s243 + $0x608] sm:$0xff]
        %v483 = vld [vmem:[%s243 + $0x610] sm:$0xff]
        %v484 = vld [vmem:[%s243 + $0x618] sm:$0xff]
        %v485 = vld [vmem:[%s243 + $0x620] sm:$0xff]
        %v486 = vld [vmem:[%s243 + $0x628] sm:$0xff]
        %v487 = vld [vmem:[%s243 + $0x630] sm:$0xff]
        %v488 = vld [vmem:[%s243 + $0x638] sm:$0xff]
        %v489 = vld [vmem:[%s243 + $0x640] sm:$0xff]
        %v490 = vld [vmem:[%s243 + $0x648] sm:$0xff]
        %v491 = vld [vmem:[%s243 + $0x650] sm:$0xff]
        %v492 = vld [vmem:[%s243 + $0x658] sm:$0xff]
        %v493 = vld [vmem:[%s243 + $0x660] sm:$0xff]
        %v494 = vld [vmem:[%s243 + $0x668] sm:$0xff]
        %v495 = vld [vmem:[%s243 + $0x670] sm:$0xff]
        %v496 = vld [vmem:[%s243 + $0x678] sm:$0xff]
        %v497 = vld [vmem:[%s243 + $0x680] sm:$0xff]
        %v498 = vld [vmem:[%s243 + $0x688] sm:$0xff]
        %v499 = vld [vmem:[%s243 + $0x690] sm:$0xff]
        %v500 = vld [vmem:[%s243 + $0x698] sm:$0xff]
        %v501 = vld [vmem:[%s243 + $0x6a0] sm:$0xff]
        %v502 = vld [vmem:[%s243 + $0x6a8] sm:$0xff]
        %v503 = vld [vmem:[%s243 + $0x6b0] sm:$0xff]
        %v504 = vld [vmem:[%s243 + $0x6b8] sm:$0xff]
        %v505 = vld [vmem:[%s243 + $0x6c0] sm:$0xff]
        %v506 = vld [vmem:[%s243 + $0x6c8] sm:$0xff]
        %v507 = vld [vmem:[%s243 + $0x6d0] sm:$0xff]
        %v508 = vld [vmem:[%s243 + $0x6d8] sm:$0xff]
        %v509 = vld [vmem:[%s243 + $0x6e0] sm:$0xff]
        %v510 = vld [vmem:[%s243 + $0x6e8] sm:$0xff]
        %v511 = vld [vmem:[%s243 + $0x6f0] sm:$0xff]
        %v512 = vld [vmem:[%s243 + $0x6f8] sm:$0xff]
        %v513 = vld [vmem:[%s243 + $0x700] sm:$0xff]
        %v514 = vld [vmem:[%s243 + $0x708] sm:$0xff]
        %v515 = vld [vmem:[%s243 + $0x710] sm:$0xff]
        %v516 = vld [vmem:[%s243 + $0x718] sm:$0xff]
        %v517 = vld [vmem:[%s243 + $0x720] sm:$0xff]
        %v518 = vld [vmem:[%s243 + $0x728] sm:$0xff]
        %v519 = vld [vmem:[%s243 + $0x730] sm:$0xff]
        %v520 = vld [vmem:[%s243 + $0x738] sm:$0xff]
        %v521 = vld [vmem:[%s243 + $0x740] sm:$0xff]
        %v522 = vld [vmem:[%s243 + $0x748] sm:$0xff]
        %v523 = vld [vmem:[%s243 + $0x750] sm:$0xff]
        %v524 = vld [vmem:[%s243 + $0x758] sm:$0xff]
        %v525 = vld [vmem:[%s243 + $0x760] sm:$0xff]
        %v526 = vld [vmem:[%s243 + $0x768] sm:$0xff]
        %v527 = vld [vmem:[%s243 + $0x770] sm:$0xff]
        %v528 = vld [vmem:[%s243 + $0x778] sm:$0xff]
        %v529 = vld [vmem:[%s243 + $0x780] sm:$0xff]
        %v530 = vld [vmem:[%s243 + $0x788] sm:$0xff]
        %v531 = vld [vmem:[%s243 + $0x790] sm:$0xff]
        %v532 = vld [vmem:[%s243 + $0x798] sm:$0xff]
        %v533 = vld [vmem:[%s243 + $0x7a0] sm:$0xff]
        %v534 = vld [vmem:[%s243 + $0x7a8] sm:$0xff]
        %v535 = vld [vmem:[%s243 + $0x7b0] sm:$0xff]
        %v536 = vld [vmem:[%s243 + $0x7b8] sm:$0xff]
        %v537 = vld [vmem:[%s243 + $0x7c0] sm:$0xff]
        %v538 = vld [vmem:[%s243 + $0x7c8] sm:$0xff]
        %v539 = vld [vmem:[%s243 + $0x7d0] sm:$0xff]
        %v540 = vld [vmem:[%s243 + $0x7d8] sm:$0xff]
        %v541 = vld [vmem:[%s243 + $0x7e0] sm:$0xff]
        %v542 = vld [vmem:[%s243 + $0x7e8] sm:$0xff]
        %v543 = vld [vmem:[%s243 + $0x7f0] sm:$0xff]
        %v544 = vld [vmem:[%s243 + $0x7f8] sm:$0xff]
        %v545 = vld [vmem:[%s243 + $0x800] sm:$0xff]
        %v546 = vld [vmem:[%s243 + $0x808] sm:$0xff]
        %v547 = vld [vmem:[%s243 + $0x810] sm:$0xff]
        %v548 = vld [vmem:[%s243 + $0x818] sm:$0xff]
        %v549 = vld [vmem:[%s243 + $0x820] sm:$0xff]
        %v550 = vld [vmem:[%s243 + $0x828] sm:$0xff]
        %v551 = vld [vmem:[%s243 + $0x830] sm:$0xff]
        %v552 = vld [vmem:[%s243 + $0x838] sm:$0xff]
        %v553 = vld [vmem:[%s243 + $0x840] sm:$0xff]
        %v554 = vld [vmem:[%s243 + $0x848] sm:$0xff]
        %v555 = vld [vmem:[%s243 + $0x850] sm:$0xff]
        %v556 = vld [vmem:[%s243 + $0x858] sm:$0xff]
        %v557 = vld [vmem:[%s243 + $0x860] sm:$0xff]
        %v558 = vld [vmem:[%s243 + $0x868] sm:$0xff]
        %v559 = vld [vmem:[%s243 + $0x870] sm:$0xff]
        %v560 = vld [vmem:[%s243 + $0x878] sm:$0xff]
        %v561 = vld [vmem:[%s243 + $0x880] sm:$0xff]
        %v562 = vld [vmem:[%s243 + $0x888] sm:$0xff]
        %v563 = vld [vmem:[%s243 + $0x890] sm:$0xff]
        %v564 = vld [vmem:[%s243 + $0x898] sm:$0xff]
        %v565 = vld [vmem:[%s243 + $0x8a0] sm:$0xff]
        %v566 = vld [vmem:[%s243 + $0x8a8] sm:$0xff]
        %v567 = vld [vmem:[%s243 + $0x8b0] sm:$0xff]
        %v568 = vld [vmem:[%s243 + $0x8b8] sm:$0xff]
        %v569 = vld [vmem:[%s243 + $0x8c0] sm:$0xff]
        %v570 = vld [vmem:[%s243 + $0x8c8] sm:$0xff]
        %v571 = vld [vmem:[%s243 + $0x8d0] sm:$0xff]
        %v572 = vld [vmem:[%s243 + $0x8d8] sm:$0xff]
        %v573 = vld [vmem:[%s243 + $0x8e0] sm:$0xff]
        %v574 = vld [vmem:[%s243 + $0x8e8] sm:$0xff]
        %v575 = vld [vmem:[%s243 + $0x8f0] sm:$0xff]
        %v576 = vld [vmem:[%s243 + $0x8f8] sm:$0xff]
        %v577 = vld [vmem:[%s243 + $0x900] sm:$0xff]
        %v578 = vld [vmem:[%s243 + $0x908] sm:$0xff]
        %v579 = vld [vmem:[%s243 + $0x910] sm:$0xff]
        %v580 = vld [vmem:[%s243 + $0x918] sm:$0xff]
        %v581 = vld [vmem:[%s243 + $0x920] sm:$0xff]
        %v582 = vld [vmem:[%s243 + $0x928] sm:$0xff]
        %v583 = vld [vmem:[%s243 + $0x930] sm:$0xff]
        %v584 = vld [vmem:[%s243 + $0x938] sm:$0xff]
        %v585 = vld [vmem:[%s243 + $0x940] sm:$0xff]
        %v586 = vld [vmem:[%s243 + $0x948] sm:$0xff]
        %v587 = vld [vmem:[%s243 + $0x950] sm:$0xff]
        %v588 = vld [vmem:[%s243 + $0x958] sm:$0xff]
        %v589 = vld [vmem:[%s243 + $0x960] sm:$0xff]
        %v590 = vld [vmem:[%s243 + $0x968] sm:$0xff]
        %v591 = vld [vmem:[%s243 + $0x970] sm:$0xff]
        %v592 = vld [vmem:[%s243 + $0x978] sm:$0xff]
        %v593 = vld [vmem:[%s243 + $0x980] sm:$0xff]
        %v594 = vld [vmem:[%s243 + $0x988] sm:$0xff]
        %v595 = vld [vmem:[%s243 + $0x990] sm:$0xff]
        %v596 = vld [vmem:[%s243 + $0x998] sm:$0xff]
        %v597 = vld [vmem:[%s243 + $0x9a0] sm:$0xff]
        %v598 = vld [vmem:[%s243 + $0x9a8] sm:$0xff]
        %v599 = vld [vmem:[%s243 + $0x9b0] sm:$0xff]
        %v600 = vld [vmem:[%s243 + $0x9b8] sm:$0xff]
        %v601 = vld [vmem:[%s243 + $0x9c0] sm:$0xff]
        %v602 = vld [vmem:[%s243 + $0x9c8] sm:$0xff]
        %v603 = vld [vmem:[%s243 + $0x9d0] sm:$0xff]
        %v604 = vld [vmem:[%s243 + $0x9d8] sm:$0xff]
        %v605 = vld [vmem:[%s243 + $0x9e0] sm:$0xff]
        %v606 = vld [vmem:[%s243 + $0x9e8] sm:$0xff]
        %v607 = vld [vmem:[%s243 + $0x9f0] sm:$0xff]
        %v608 = vld [vmem:[%s243 + $0x9f8] sm:$0xff]
        %v609 = vld [vmem:[%s243 + $0xa00] sm:$0xff]
        %v610 = vld [vmem:[%s243 + $0xa08] sm:$0xff]
        %v611 = vld [vmem:[%s243 + $0xa10] sm:$0xff]
        %v612 = vld [vmem:[%s243 + $0xa18] sm:$0xff]
        %v613 = vld [vmem:[%s243 + $0xa20] sm:$0xff]
        %v614 = vld [vmem:[%s243 + $0xa28] sm:$0xff]
        %v615 = vld [vmem:[%s243 + $0xa30] sm:$0xff]
        %v616 = vld [vmem:[%s243 + $0xa38] sm:$0xff]
        %v617 = vld [vmem:[%s243 + $0xa40] sm:$0xff]
        %v618 = vld [vmem:[%s243 + $0xa48] sm:$0xff]
        %v619 = vld [vmem:[%s243 + $0xa50] sm:$0xff]
        %v620 = vld [vmem:[%s243 + $0xa58] sm:$0xff]
        %v621 = vld [vmem:[%s243 + $0xa60] sm:$0xff]
        %v622 = vld [vmem:[%s243 + $0xa68] sm:$0xff]
        %v623 = vld [vmem:[%s243 + $0xa70] sm:$0xff]
        %v624 = vld [vmem:[%s243 + $0xa78] sm:$0xff]
        %v625 = vld [vmem:[%s243 + $0xa80] sm:$0xff]
        %v626 = vld [vmem:[%s243 + $0xa88] sm:$0xff]
        %v627 = vld [vmem:[%s243 + $0xa90] sm:$0xff]
        %v628 = vld [vmem:[%s243 + $0xa98] sm:$0xff]
        %v629 = vld [vmem:[%s243 + $0xaa0] sm:$0xff]
        %v630 = vld [vmem:[%s243 + $0xaa8] sm:$0xff]
        %v631 = vld [vmem:[%s243 + $0xab0] sm:$0xff]
        %v632 = vld [vmem:[%s243 + $0xab8] sm:$0xff]
        %v633 = vld [vmem:[%s243 + $0xac0] sm:$0xff]
        %v634 = vld [vmem:[%s243 + $0xac8] sm:$0xff]
        %v635 = vld [vmem:[%s243 + $0xad0] sm:$0xff]
        %v636 = vld [vmem:[%s243 + $0xad8] sm:$0xff]
        %v637 = vld [vmem:[%s243 + $0xae0] sm:$0xff]
        %v638 = vld [vmem:[%s243 + $0xae8] sm:$0xff]
        %v639 = vld [vmem:[%s243 + $0xaf0] sm:$0xff]
        %v640 = vld [vmem:[%s243 + $0xaf8] sm:$0xff]
        %v641 = vld [vmem:[%s243 + $0xb00] sm:$0xff]
        %v642 = vld [vmem:[%s243 + $0xb08] sm:$0xff]
        %v643 = vld [vmem:[%s243 + $0xb10] sm:$0xff]
        %v644 = vld [vmem:[%s243 + $0xb18] sm:$0xff]
        %v645 = vld [vmem:[%s243 + $0xb20] sm:$0xff]
        %v646 = vld [vmem:[%s243 + $0xb28] sm:$0xff]
        %v647 = vld [vmem:[%s243 + $0xb30] sm:$0xff]
        %v648 = vld [vmem:[%s243 + $0xb38] sm:$0xff]
        %v649 = vld [vmem:[%s243 + $0xb40] sm:$0xff]
        %v650 = vld [vmem:[%s243 + $0xb48] sm:$0xff]
        %v651 = vld [vmem:[%s243 + $0xb50] sm:$0xff]
        %v652 = vld [vmem:[%s243 + $0xb58] sm:$0xff]
        %v653 = vld [vmem:[%s243 + $0xb60] sm:$0xff]
        %v654 = vld [vmem:[%s243 + $0xb68] sm:$0xff]
        %v655 = vld [vmem:[%s243 + $0xb70] sm:$0xff]
        %v656 = vld [vmem:[%s243 + $0xb78] sm:$0xff]
        %v657 = vld [vmem:[%s243 + $0xb80] sm:$0xff]
        %v658 = vld [vmem:[%s243 + $0xb88] sm:$0xff]
        %v659 = vld [vmem:[%s243 + $0xb90] sm:$0xff]
        %v660 = vld [vmem:[%s243 + $0xb98] sm:$0xff]
        %v661 = vld [vmem:[%s243 + $0xba0] sm:$0xff]
        %v662 = vld [vmem:[%s243 + $0xba8] sm:$0xff]
        %v663 = vld [vmem:[%s243 + $0xbb0] sm:$0xff]
        %v664 = vld [vmem:[%s243 + $0xbb8] sm:$0xff]
        %v665 = vld [vmem:[%s243 + $0xbc0] sm:$0xff]
        %v666 = vld [vmem:[%s243 + $0xbc8] sm:$0xff]
        %v667 = vld [vmem:[%s243 + $0xbd0] sm:$0xff]
        %v668 = vld [vmem:[%s243 + $0xbd8] sm:$0xff]
        %v669 = vld [vmem:[%s243 + $0xbe0] sm:$0xff]
        %v670 = vld [vmem:[%s243 + $0xbe8] sm:$0xff]
        %v671 = vld [vmem:[%s243 + $0xbf0] sm:$0xff]
        %v672 = vld [vmem:[%s243 + $0xbf8] sm:$0xff]
        %v673 = vld [vmem:[%s243 + $0xc00] sm:$0xff]
        %v674 = vld [vmem:[%s243 + $0xc08] sm:$0xff]
        %v675 = vld [vmem:[%s243 + $0xc10] sm:$0xff]
        %v676 = vld [vmem:[%s243 + $0xc18] sm:$0xff]
        %v677 = vld [vmem:[%s243 + $0xc20] sm:$0xff]
        %v678 = vld [vmem:[%s243 + $0xc28] sm:$0xff]
        %v679 = vld [vmem:[%s243 + $0xc30] sm:$0xff]
        %v680 = vld [vmem:[%s243 + $0xc38] sm:$0xff]
        %v681 = vld [vmem:[%s243 + $0xc40] sm:$0xff]
        %v682 = vld [vmem:[%s243 + $0xc48] sm:$0xff]
        %v683 = vld [vmem:[%s243 + $0xc50] sm:$0xff]
        %v684 = vld [vmem:[%s243 + $0xc58] sm:$0xff]
        %v685 = vld [vmem:[%s243 + $0xc60] sm:$0xff]
        %v686 = vld [vmem:[%s243 + $0xc68] sm:$0xff]
        %v687 = vld [vmem:[%s243 + $0xc70] sm:$0xff]
        %v688 = vld [vmem:[%s243 + $0xc78] sm:$0xff]
        %v689 = vld [vmem:[%s243 + $0xc80] sm:$0xff]
        %v690 = vld [vmem:[%s243 + $0xc88] sm:$0xff]
        %v691 = vld [vmem:[%s243 + $0xc90] sm:$0xff]
        %v692 = vld [vmem:[%s243 + $0xc98] sm:$0xff]
        %v693 = vld [vmem:[%s243 + $0xca0] sm:$0xff]
        %v694 = vld [vmem:[%s243 + $0xca8] sm:$0xff]
        %v695 = vld [vmem:[%s243 + $0xcb0] sm:$0xff]
        %v696 = vld [vmem:[%s243 + $0xcb8] sm:$0xff]
        %v697 = vld [vmem:[%s243 + $0xcc0] sm:$0xff]
        %v698 = vld [vmem:[%s243 + $0xcc8] sm:$0xff]
        %v699 = vld [vmem:[%s243 + $0xcd0] sm:$0xff]
        %v700 = vld [vmem:[%s243 + $0xcd8] sm:$0xff]
        %v701 = vld [vmem:[%s243 + $0xce0] sm:$0xff]
        %v702 = vld [vmem:[%s243 + $0xce8] sm:$0xff]
        %v703 = vld [vmem:[%s243 + $0xcf0] sm:$0xff]
        %v704 = vld [vmem:[%s243 + $0xcf8] sm:$0xff]
        %v705 = vld [vmem:[%s243 + $0xd00] sm:$0xff]
        %v706 = vld [vmem:[%s243 + $0xd08] sm:$0xff]
        %v707 = vld [vmem:[%s243 + $0xd10] sm:$0xff]
        %v708 = vld [vmem:[%s243 + $0xd18] sm:$0xff]
        %v709 = vld [vmem:[%s243 + $0xd20] sm:$0xff]
        %v710 = vld [vmem:[%s243 + $0xd28] sm:$0xff]
        %v711 = vld [vmem:[%s243 + $0xd30] sm:$0xff]
        %v712 = vld [vmem:[%s243 + $0xd38] sm:$0xff]
        %v713 = vld [vmem:[%s243 + $0xd40] sm:$0xff]
        %v714 = vld [vmem:[%s243 + $0xd48] sm:$0xff]
        %v715 = vld [vmem:[%s243 + $0xd50] sm:$0xff]
        %v716 = vld [vmem:[%s243 + $0xd58] sm:$0xff]
        %v717 = vld [vmem:[%s243 + $0xd60] sm:$0xff]
        %v718 = vld [vmem:[%s243 + $0xd68] sm:$0xff]
        %v719 = vld [vmem:[%s243 + $0xd70] sm:$0xff]
        %v720 = vld [vmem:[%s243 + $0xd78] sm:$0xff]
        %v721 = vld [vmem:[%s243 + $0xd80] sm:$0xff]
        %v722 = vld [vmem:[%s243 + $0xd88] sm:$0xff]
        %v723 = vld [vmem:[%s243 + $0xd90] sm:$0xff]
        %v724 = vld [vmem:[%s243 + $0xd98] sm:$0xff]
        %v725 = vld [vmem:[%s243 + $0xda0] sm:$0xff]
        %v726 = vld [vmem:[%s243 + $0xda8] sm:$0xff]
        %v727 = vld [vmem:[%s243 + $0xdb0] sm:$0xff]
        %v728 = vld [vmem:[%s243 + $0xdb8] sm:$0xff]
        %v729 = vld [vmem:[%s243 + $0xdc0] sm:$0xff]
        %v730 = vld [vmem:[%s243 + $0xdc8] sm:$0xff]
        %v731 = vld [vmem:[%s243 + $0xdd0] sm:$0xff]
        %v732 = vld [vmem:[%s243 + $0xdd8] sm:$0xff]
        %v733 = vld [vmem:[%s243 + $0xde0] sm:$0xff]
        %v734 = vld [vmem:[%s243 + $0xde8] sm:$0xff]
        %v735 = vld [vmem:[%s243 + $0xdf0] sm:$0xff]
        %v736 = vld [vmem:[%s243 + $0xdf8] sm:$0xff]
        %v737 = vld [vmem:[%s243 + $0xe00] sm:$0xff]
        %v738 = vld [vmem:[%s243 + $0xe08] sm:$0xff]
        %v739 = vld [vmem:[%s243 + $0xe10] sm:$0xff]
        %v740 = vld [vmem:[%s243 + $0xe18] sm:$0xff]
        %v741 = vld [vmem:[%s243 + $0xe20] sm:$0xff]
        %v742 = vld [vmem:[%s243 + $0xe28] sm:$0xff]
        %v743 = vld [vmem:[%s243 + $0xe30] sm:$0xff]
        %v744 = vld [vmem:[%s243 + $0xe38] sm:$0xff]
        %v745 = vld [vmem:[%s243 + $0xe40] sm:$0xff]
        %v746 = vld [vmem:[%s243 + $0xe48] sm:$0xff]
        %v747 = vld [vmem:[%s243 + $0xe50] sm:$0xff]
        %v748 = vld [vmem:[%s243 + $0xe58] sm:$0xff]
        %v749 = vld [vmem:[%s243 + $0xe60] sm:$0xff]
        %v750 = vld [vmem:[%s243 + $0xe68] sm:$0xff]
        %v751 = vld [vmem:[%s243 + $0xe70] sm:$0xff]
        %v752 = vld [vmem:[%s243 + $0xe78] sm:$0xff]
        %v753 = vld [vmem:[%s243 + $0xe80] sm:$0xff]
        %v754 = vld [vmem:[%s243 + $0xe88] sm:$0xff]
        %v755 = vld [vmem:[%s243 + $0xe90] sm:$0xff]
        %v756 = vld [vmem:[%s243 + $0xe98] sm:$0xff]
        %v757 = vld [vmem:[%s243 + $0xea0] sm:$0xff]
        %v758 = vld [vmem:[%s243 + $0xea8] sm:$0xff]
        %v759 = vld [vmem:[%s243 + $0xeb0] sm:$0xff]
        %v760 = vld [vmem:[%s243 + $0xeb8] sm:$0xff]
        %v761 = vld [vmem:[%s243 + $0xec0] sm:$0xff]
        %v762 = vld [vmem:[%s243 + $0xec8] sm:$0xff]
        %v763 = vld [vmem:[%s243 + $0xed0] sm:$0xff]
        %v764 = vld [vmem:[%s243 + $0xed8] sm:$0xff]
        %v765 = vld [vmem:[%s243 + $0xee0] sm:$0xff]
        %v766 = vld [vmem:[%s243 + $0xee8] sm:$0xff]
        %v767 = vld [vmem:[%s243 + $0xef0] sm:$0xff]
        %v768 = vld [vmem:[%s243 + $0xef8] sm:$0xff]
        %v769 = vld [vmem:[%s243 + $0xf00] sm:$0xff]
        %v770 = vld [vmem:[%s243 + $0xf08] sm:$0xff]
        %v771 = vld [vmem:[%s243 + $0xf10] sm:$0xff]
        %v772 = vld [vmem:[%s243 + $0xf18] sm:$0xff]
        %v773 = vld [vmem:[%s243 + $0xf20] sm:$0xff]
        %v774 = vld [vmem:[%s243 + $0xf28] sm:$0xff]
        %v775 = vld [vmem:[%s243 + $0xf30] sm:$0xff]
        %v776 = vld [vmem:[%s243 + $0xf38] sm:$0xff]
        %v777 = vld [vmem:[%s243 + $0xf40] sm:$0xff]
        %v778 = vld [vmem:[%s243 + $0xf48] sm:$0xff]
        %v779 = vld [vmem:[%s243 + $0xf50] sm:$0xff]
        %v780 = vld [vmem:[%s243 + $0xf58] sm:$0xff]
        %v781 = vld [vmem:[%s243 + $0xf60] sm:$0xff]
        %v782 = vld [vmem:[%s243 + $0xf68] sm:$0xff]
        %v783 = vld [vmem:[%s243 + $0xf70] sm:$0xff]
        %v784 = vld [vmem:[%s243 + $0xf78] sm:$0xff]
        %v785 = vld [vmem:[%s243 + $0xf80] sm:$0xff]
        %v786 = vld [vmem:[%s243 + $0xf88] sm:$0xff]
        %v787 = vld [vmem:[%s243 + $0xf90] sm:$0xff]
        %v788 = vld [vmem:[%s243 + $0xf98] sm:$0xff]
        %v789 = vld [vmem:[%s243 + $0xfa0] sm:$0xff]
        %v790 = vld [vmem:[%s243 + $0xfa8] sm:$0xff]
        %v791 = vld [vmem:[%s243 + $0xfb0] sm:$0xff]
        %v792 = vld [vmem:[%s243 + $0xfb8] sm:$0xff]
        %v793 = vld [vmem:[%s243 + $0xfc0] sm:$0xff]
        %v794 = vld [vmem:[%s243 + $0xfc8] sm:$0xff]
        %v795 = vld [vmem:[%s243 + $0xfd0] sm:$0xff]
        %v796 = vld [vmem:[%s243 + $0xfd8] sm:$0xff]
        %v797 = vld [vmem:[%s243 + $0xfe0] sm:$0xff]
        %v798 = vld [vmem:[%s243 + $0xfe8] sm:$0xff]
        %v799 = vld [vmem:[%s243 + $0xff0] sm:$0xff]
        %v800 = vld [vmem:[%s243 + $0xff8] sm:$0xff]
        %v801 = vld [vmem:[%s243 + $0x1000] sm:$0xff]
        %v802 = vld [vmem:[%s243 + $0x1008] sm:$0xff]
        %v803 = vld [vmem:[%s243 + $0x1010] sm:$0xff]
        %v804 = vld [vmem:[%s243 + $0x1018] sm:$0xff]
        %v805 = vld [vmem:[%s243 + $0x1020] sm:$0xff]
        %v806 = vld [vmem:[%s243 + $0x1028] sm:$0xff]
        %v807 = vld [vmem:[%s243 + $0x1030] sm:$0xff]
        %v808 = vld [vmem:[%s243 + $0x1038] sm:$0xff]
        %v809 = vld [vmem:[%s243 + $0x1040] sm:$0xff]
        %v810 = vld [vmem:[%s243 + $0x1048] sm:$0xff]
        %v811 = vld [vmem:[%s243 + $0x1050] sm:$0xff]
        %v812 = vld [vmem:[%s243 + $0x1058] sm:$0xff]
        %v813 = vld [vmem:[%s243 + $0x1060] sm:$0xff]
        %v814 = vld [vmem:[%s243 + $0x1068] sm:$0xff]
        %v815 = vld [vmem:[%s243 + $0x1070] sm:$0xff]
        %v816 = vld [vmem:[%s243 + $0x1078] sm:$0xff]
        %v817 = vld [vmem:[%s243 + $0x1080] sm:$0xff]
        %v818 = vld [vmem:[%s243 + $0x1088] sm:$0xff]
        %v819 = vld [vmem:[%s243 + $0x1090] sm:$0xff]
        %v820 = vld [vmem:[%s243 + $0x1098] sm:$0xff]
        %v821 = vld [vmem:[%s243 + $0x10a0] sm:$0xff]
        %v822 = vld [vmem:[%s243 + $0x10a8] sm:$0xff]
        %v823 = vld [vmem:[%s243 + $0x10b0] sm:$0xff]
        %v824 = vld [vmem:[%s243 + $0x10b8] sm:$0xff]
        %v825 = vld [vmem:[%s243 + $0x10c0] sm:$0xff]
        %v826 = vld [vmem:[%s243 + $0x10c8] sm:$0xff]
        %v827 = vld [vmem:[%s243 + $0x10d0] sm:$0xff]
        %v828 = vld [vmem:[%s243 + $0x10d8] sm:$0xff]
        %v829 = vld [vmem:[%s243 + $0x10e0] sm:$0xff]
        %v830 = vld [vmem:[%s243 + $0x10e8] sm:$0xff]
        %v831 = vld [vmem:[%s243 + $0x10f0] sm:$0xff]
        %v832 = vld [vmem:[%s243 + $0x10f8] sm:$0xff]
        %v833 = vld [vmem:[%s243 + $0x1100] sm:$0xff]
        %v834 = vld [vmem:[%s243 + $0x1108] sm:$0xff]
        %v835 = vld [vmem:[%s243 + $0x1110] sm:$0xff]
        %v836 = vld [vmem:[%s243 + $0x1118] sm:$0xff]
        %v837 = vld [vmem:[%s243 + $0x1120] sm:$0xff]
        %v838 = vld [vmem:[%s243 + $0x1128] sm:$0xff]
        %v839 = vld [vmem:[%s243 + $0x1130] sm:$0xff]
        %v840 = vld [vmem:[%s243 + $0x1138] sm:$0xff]
        %v841 = vld [vmem:[%s243 + $0x1140] sm:$0xff]
        %v842 = vld [vmem:[%s243 + $0x1148] sm:$0xff]
        %v843 = vld [vmem:[%s243 + $0x1150] sm:$0xff]
        %v844 = vld [vmem:[%s243 + $0x1158] sm:$0xff]
        %v845 = vld [vmem:[%s243 + $0x1160] sm:$0xff]
        %v846 = vld [vmem:[%s243 + $0x1168] sm:$0xff]
        %v847 = vld [vmem:[%s243 + $0x1170] sm:$0xff]
        %v848 = vld [vmem:[%s243 + $0x1178] sm:$0xff]
        %v849 = vld [vmem:[%s243 + $0x1180] sm:$0xff]
        %v850 = vld [vmem:[%s243 + $0x1188] sm:$0xff]
        %v851 = vld [vmem:[%s243 + $0x1190] sm:$0xff]
        %v852 = vld [vmem:[%s243 + $0x1198] sm:$0xff]
        %v853 = vld [vmem:[%s243 + $0x11a0] sm:$0xff]
        %v854 = vld [vmem:[%s243 + $0x11a8] sm:$0xff]
        %v855 = vld [vmem:[%s243 + $0x11b0] sm:$0xff]
        %v856 = vld [vmem:[%s243 + $0x11b8] sm:$0xff]
        %v857 = vld [vmem:[%s243 + $0x11c0] sm:$0xff]
        %v858 = vld [vmem:[%s243 + $0x11c8] sm:$0xff]
        %v859 = vld [vmem:[%s243 + $0x11d0] sm:$0xff]
        %v860 = vld [vmem:[%s243 + $0x11d8] sm:$0xff]
        %v861 = vld [vmem:[%s243 + $0x11e0] sm:$0xff]
        %v862 = vld [vmem:[%s243 + $0x11e8] sm:$0xff]
        %v863 = vld [vmem:[%s243 + $0x11f0] sm:$0xff]
        %v864 = vld [vmem:[%s243 + $0x11f8] sm:$0xff]
        %v865 = vld [vmem:[%s243 + $0x1200] sm:$0xff]
        %v866 = vld [vmem:[%s243 + $0x1208] sm:$0xff]
        %v867 = vld [vmem:[%s243 + $0x1210] sm:$0xff]
        %v868 = vld [vmem:[%s243 + $0x1218] sm:$0xff]
        %v869 = vld [vmem:[%s243 + $0x1220] sm:$0xff]
        %v870 = vld [vmem:[%s243 + $0x1228] sm:$0xff]
        %v871 = vld [vmem:[%s243 + $0x1230] sm:$0xff]
        %v872 = vld [vmem:[%s243 + $0x1238] sm:$0xff]
        %v873 = vld [vmem:[%s243 + $0x1240] sm:$0xff]
        %v874 = vld [vmem:[%s243 + $0x1248] sm:$0xff]
        %v875 = vld [vmem:[%s243 + $0x1250] sm:$0xff]
        %v876 = vld [vmem:[%s243 + $0x1258] sm:$0xff]
        %v877 = vld [vmem:[%s243 + $0x1260] sm:$0xff]
        %v878 = vld [vmem:[%s243 + $0x1268] sm:$0xff]
        %v879 = vld [vmem:[%s243 + $0x1270] sm:$0xff]
        %v880 = vld [vmem:[%s243 + $0x1278] sm:$0xff]
        %v881 = vld [vmem:[%s243 + $0x1280] sm:$0xff]
        %v882 = vld [vmem:[%s243 + $0x1288] sm:$0xff]
        %v883 = vld [vmem:[%s243 + $0x1290] sm:$0xff]
        %v884 = vld [vmem:[%s243 + $0x1298] sm:$0xff]
        %v885 = vld [vmem:[%s243 + $0x12a0] sm:$0xff]
        %v886 = vld [vmem:[%s243 + $0x12a8] sm:$0xff]
        %v887 = vld [vmem:[%s243 + $0x12b0] sm:$0xff]
        %v888 = vld [vmem:[%s243 + $0x12b8] sm:$0xff]
        %v889 = vld [vmem:[%s243 + $0x12c0] sm:$0xff]
        %v890 = vld [vmem:[%s243 + $0x12c8] sm:$0xff]
        %v891 = vld [vmem:[%s243 + $0x12d0] sm:$0xff]
        %v892 = vld [vmem:[%s243 + $0x12d8] sm:$0xff]
        %v893 = vld [vmem:[%s243 + $0x12e0] sm:$0xff]
        %v894 = vld [vmem:[%s243 + $0x12e8] sm:$0xff]
        %v895 = vld [vmem:[%s243 + $0x12f0] sm:$0xff]
        %v896 = vld [vmem:[%s243 + $0x12f8] sm:$0xff]
        %v897 = vld [vmem:[%s243 + $0x1300] sm:$0xff]
        %v898 = vld [vmem:[%s243 + $0x1308] sm:$0xff]
        %v899 = vld [vmem:[%s243 + $0x1310] sm:$0xff]
        %v900 = vld [vmem:[%s243 + $0x1318] sm:$0xff]
        %v901 = vld [vmem:[%s243 + $0x1320] sm:$0xff]
        %v902 = vld [vmem:[%s243 + $0x1328] sm:$0xff]
        %v903 = vld [vmem:[%s243 + $0x1330] sm:$0xff]
        %v904 = vld [vmem:[%s243 + $0x1338] sm:$0xff]
        %v905 = vld [vmem:[%s243 + $0x1340] sm:$0xff]
        %v906 = vld [vmem:[%s243 + $0x1348] sm:$0xff]
        %v907 = vld [vmem:[%s243 + $0x1350] sm:$0xff]
        %v908 = vld [vmem:[%s243 + $0x1358] sm:$0xff]
        %v909 = vld [vmem:[%s243 + $0x1360] sm:$0xff]
        %v910 = vld [vmem:[%s243 + $0x1368] sm:$0xff]
        %v911 = vld [vmem:[%s243 + $0x1370] sm:$0xff]
        %v912 = vld [vmem:[%s243 + $0x1378] sm:$0xff]
        %v913 = vld [vmem:[%s243 + $0x1380] sm:$0xff]
        %v914 = vld [vmem:[%s243 + $0x1388] sm:$0xff]
        %v915 = vld [vmem:[%s243 + $0x1390] sm:$0xff]
        %v916 = vld [vmem:[%s243 + $0x1398] sm:$0xff]
        %v917 = vld [vmem:[%s243 + $0x13a0] sm:$0xff]
        %v918 = vld [vmem:[%s243 + $0x13a8] sm:$0xff]
        %v919 = vld [vmem:[%s243 + $0x13b0] sm:$0xff]
        %v920 = vld [vmem:[%s243 + $0x13b8] sm:$0xff]
        %v921 = vld [vmem:[%s243 + $0x13c0] sm:$0xff]
        %v922 = vld [vmem:[%s243 + $0x13c8] sm:$0xff]
        %v923 = vld [vmem:[%s243 + $0x13d0] sm:$0xff]
        %v924 = vld [vmem:[%s243 + $0x13d8] sm:$0xff]
        %v925 = vld [vmem:[%s243 + $0x13e0] sm:$0xff]
        %v926 = vld [vmem:[%s243 + $0x13e8] sm:$0xff]
        %v927 = vld [vmem:[%s243 + $0x13f0] sm:$0xff]
        %v928 = vld [vmem:[%s243 + $0x13f8] sm:$0xff]
        %v929 = vld [vmem:[%s243 + $0x1400] sm:$0xff]
        %v930 = vld [vmem:[%s243 + $0x1408] sm:$0xff]
        %v931 = vld [vmem:[%s243 + $0x1410] sm:$0xff]
        %v932 = vld [vmem:[%s243 + $0x1418] sm:$0xff]
        %v933 = vld [vmem:[%s243 + $0x1420] sm:$0xff]
        %v934 = vld [vmem:[%s243 + $0x1428] sm:$0xff]
        %v935 = vld [vmem:[%s243 + $0x1430] sm:$0xff]
        %v936 = vld [vmem:[%s243 + $0x1438] sm:$0xff]
        %v937 = vld [vmem:[%s243 + $0x1440] sm:$0xff]
        %v938 = vld [vmem:[%s243 + $0x1448] sm:$0xff]
        %v939 = vld [vmem:[%s243 + $0x1450] sm:$0xff]
        %v940 = vld [vmem:[%s243 + $0x1458] sm:$0xff]
        %v941 = vld [vmem:[%s243 + $0x1460] sm:$0xff]
        %v942 = vld [vmem:[%s243 + $0x1468] sm:$0xff]
        %v943 = vld [vmem:[%s243 + $0x1470] sm:$0xff]
        %v944 = vld [vmem:[%s243 + $0x1478] sm:$0xff]
        %v945 = vld [vmem:[%s243 + $0x1480] sm:$0xff]
        %v946 = vld [vmem:[%s243 + $0x1488] sm:$0xff]
        %v947 = vld [vmem:[%s243 + $0x1490] sm:$0xff]
        %v948 = vld [vmem:[%s243 + $0x1498] sm:$0xff]
        %v949 = vld [vmem:[%s243 + $0x14a0] sm:$0xff]
        %v950 = vld [vmem:[%s243 + $0x14a8] sm:$0xff]
        %v951 = vld [vmem:[%s243 + $0x14b0] sm:$0xff]
        %v952 = vld [vmem:[%s243 + $0x14b8] sm:$0xff]
        %v953 = vld [vmem:[%s243 + $0x14c0] sm:$0xff]
        %v954 = vld [vmem:[%s243 + $0x14c8] sm:$0xff]
        %v955 = vld [vmem:[%s243 + $0x14d0] sm:$0xff]
        %v956 = vld [vmem:[%s243 + $0x14d8] sm:$0xff]
        %v957 = vld [vmem:[%s243 + $0x14e0] sm:$0xff]
        %v958 = vld [vmem:[%s243 + $0x14e8] sm:$0xff]
        %v959 = vld [vmem:[%s243 + $0x14f0] sm:$0xff]
        %v960 = vld [vmem:[%s243 + $0x14f8] sm:$0xff]
        %v961 = vld [vmem:[%s243 + $0x1500] sm:$0xff]
        %v962 = vld [vmem:[%s243 + $0x1508] sm:$0xff]
        %v963 = vld [vmem:[%s243 + $0x1510] sm:$0xff]
        %v964 = vld [vmem:[%s243 + $0x1518] sm:$0xff]
        %v965 = vld [vmem:[%s243 + $0x1520] sm:$0xff]
        %v966 = vld [vmem:[%s243 + $0x1528] sm:$0xff]
        %v967 = vld [vmem:[%s243 + $0x1530] sm:$0xff]
        %v968 = vld [vmem:[%s243 + $0x1538] sm:$0xff]
        %v969 = vld [vmem:[%s243 + $0x1540] sm:$0xff]
        %v970 = vld [vmem:[%s243 + $0x1548] sm:$0xff]
        %v971 = vld [vmem:[%s243 + $0x1550] sm:$0xff]
        %v972 = vld [vmem:[%s243 + $0x1558] sm:$0xff]
        %v973 = vld [vmem:[%s243 + $0x1560] sm:$0xff]
        %v974 = vld [vmem:[%s243 + $0x1568] sm:$0xff]
        %v975 = vld [vmem:[%s243 + $0x1570] sm:$0xff]
        %v976 = vld [vmem:[%s243 + $0x1578] sm:$0xff]
        %v977 = vld [vmem:[%s243 + $0x1580] sm:$0xff]
        %v978 = vld [vmem:[%s243 + $0x1588] sm:$0xff]
        %v979 = vld [vmem:[%s243 + $0x1590] sm:$0xff]
        %v980 = vld [vmem:[%s243 + $0x1598] sm:$0xff]
        %v981 = vld [vmem:[%s243 + $0x15a0] sm:$0xff]
        %v982 = vld [vmem:[%s243 + $0x15a8] sm:$0xff]
        %v983 = vld [vmem:[%s243 + $0x15b0] sm:$0xff]
        %v984 = vld [vmem:[%s243 + $0x15b8] sm:$0xff]
        %v985 = vld [vmem:[%s243 + $0x15c0] sm:$0xff]
        %v986 = vld [vmem:[%s243 + $0x15c8] sm:$0xff]
        %v987 = vld [vmem:[%s243 + $0x15d0] sm:$0xff]
        %v988 = vld [vmem:[%s243 + $0x15d8] sm:$0xff]
        %v989 = vld [vmem:[%s243 + $0x15e0] sm:$0xff]
        %v990 = vld [vmem:[%s243 + $0x15e8] sm:$0xff]
        %v991 = vld [vmem:[%s243 + $0x15f0] sm:$0xff]
        %v992 = vld [vmem:[%s243 + $0x15f8] sm:$0xff]
        %v993 = vld [vmem:[%s243 + $0x1600] sm:$0xff]
        %v994 = vld [vmem:[%s243 + $0x1608] sm:$0xff]
        %v995 = vld [vmem:[%s243 + $0x1610] sm:$0xff]
        %v996 = vld [vmem:[%s243 + $0x1618] sm:$0xff]
        %v997 = vld [vmem:[%s243 + $0x1620] sm:$0xff]
        %v998 = vld [vmem:[%s243 + $0x1628] sm:$0xff]
        %v999 = vld [vmem:[%s243 + $0x1630] sm:$0xff]
        %v1000 = vld [vmem:[%s243 + $0x1638] sm:$0xff]
        %v1001 = vld [vmem:[%s243 + $0x1640] sm:$0xff]
        %v1002 = vld [vmem:[%s243 + $0x1648] sm:$0xff]
        %v1003 = vld [vmem:[%s243 + $0x1650] sm:$0xff]
        %v1004 = vld [vmem:[%s243 + $0x1658] sm:$0xff]
        %v1005 = vld [vmem:[%s243 + $0x1660] sm:$0xff]
        %v1006 = vld [vmem:[%s243 + $0x1668] sm:$0xff]
        %v1007 = vld [vmem:[%s243 + $0x1670] sm:$0xff]
        %v1008 = vld [vmem:[%s243 + $0x1678] sm:$0xff]
        %v1009 = vld [vmem:[%s243 + $0x1680] sm:$0xff]
        %v1010 = vld [vmem:[%s243 + $0x1688] sm:$0xff]
        %v1011 = vld [vmem:[%s243 + $0x1690] sm:$0xff]
        %v1012 = vld [vmem:[%s243 + $0x1698] sm:$0xff]
        %v1013 = vld [vmem:[%s243 + $0x16a0] sm:$0xff]
        %v1014 = vld [vmem:[%s243 + $0x16a8] sm:$0xff]
        %v1015 = vld [vmem:[%s243 + $0x16b0] sm:$0xff]
        %v1016 = vld [vmem:[%s243 + $0x16b8] sm:$0xff]
        %v1017 = vld [vmem:[%s243 + $0x16c0] sm:$0xff]
        %v1018 = vld [vmem:[%s243 + $0x16c8] sm:$0xff]
        %v1019 = vld [vmem:[%s243 + $0x16d0] sm:$0xff]
        %v1020 = vld [vmem:[%s243 + $0x16d8] sm:$0xff]
        %v1021 = vld [vmem:[%s243 + $0x16e0] sm:$0xff]
        %v1022 = vld [vmem:[%s243 + $0x16e8] sm:$0xff]
        %v1023 = vld [vmem:[%s243 + $0x16f0] sm:$0xff]
        %v1024 = vld [vmem:[%s243 + $0x16f8] sm:$0xff]
        %v1025 = vld [vmem:[%s243 + $0x1700] sm:$0xff]
        %v1026 = vld [vmem:[%s243 + $0x1708] sm:$0xff]
        %v1027 = vld [vmem:[%s243 + $0x1710] sm:$0xff]
        %v1028 = vld [vmem:[%s243 + $0x1718] sm:$0xff]
        %v1029 = vld [vmem:[%s243 + $0x1720] sm:$0xff]
        %v1030 = vld [vmem:[%s243 + $0x1728] sm:$0xff]
        %v1031 = vld [vmem:[%s243 + $0x1730] sm:$0xff]
        %v1032 = vld [vmem:[%s243 + $0x1738] sm:$0xff]
        %v1033 = vld [vmem:[%s243 + $0x1740] sm:$0xff]
        %v1034 = vld [vmem:[%s243 + $0x1748] sm:$0xff]
        %v1035 = vld [vmem:[%s243 + $0x1750] sm:$0xff]
        %v1036 = vld [vmem:[%s243 + $0x1758] sm:$0xff]
        %v1037 = vld [vmem:[%s243 + $0x1760] sm:$0xff]
        %v1038 = vld [vmem:[%s243 + $0x1768] sm:$0xff]
        %v1039 = vld [vmem:[%s243 + $0x1770] sm:$0xff]
        %v1040 = vld [vmem:[%s243 + $0x1778] sm:$0xff]
        %v1041 = vld [vmem:[%s243 + $0x1780] sm:$0xff]
        %v1042 = vld [vmem:[%s243 + $0x1788] sm:$0xff]
        %v1043 = vld [vmem:[%s243 + $0x1790] sm:$0xff]
        %v1044 = vld [vmem:[%s243 + $0x1798] sm:$0xff]
        %v1045 = vld [vmem:[%s243 + $0x17a0] sm:$0xff]
        %v1046 = vld [vmem:[%s243 + $0x17a8] sm:$0xff]
        %v1047 = vld [vmem:[%s243 + $0x17b0] sm:$0xff]
        %v1048 = vld [vmem:[%s243 + $0x17b8] sm:$0xff]
        %v1049 = vld [vmem:[%s243 + $0x17c0] sm:$0xff]
        %v1050 = vld [vmem:[%s243 + $0x17c8] sm:$0xff]
        %v1051 = vld [vmem:[%s243 + $0x17d0] sm:$0xff]
        %v1052 = vld [vmem:[%s243 + $0x17d8] sm:$0xff]
        %v1053 = vld [vmem:[%s243 + $0x17e0] sm:$0xff]
        %v1054 = vld [vmem:[%s243 + $0x17e8] sm:$0xff]
        %v1055 = vld [vmem:[%s243 + $0x17f0] sm:$0xff]
        %v1056 = vld [vmem:[%s243 + $0x17f8] sm:$0xff]
        %v1057 = vld [vmem:[%s243 + $0x1800] sm:$0xff]
        %v1058 = vld [vmem:[%s243 + $0x1808] sm:$0xff]
        %v1059 = vld [vmem:[%s243 + $0x1810] sm:$0xff]
        %v1060 = vld [vmem:[%s243 + $0x1818] sm:$0xff]
        %v1061 = vld [vmem:[%s243 + $0x1820] sm:$0xff]
        %v1062 = vld [vmem:[%s243 + $0x1828] sm:$0xff]
        %v1063 = vld [vmem:[%s243 + $0x1830] sm:$0xff]
        %v1064 = vld [vmem:[%s243 + $0x1838] sm:$0xff]
        %v1065 = vld [vmem:[%s243 + $0x1840] sm:$0xff]
        %v1066 = vld [vmem:[%s243 + $0x1848] sm:$0xff]
        %v1067 = vld [vmem:[%s243 + $0x1850] sm:$0xff]
        %v1068 = vld [vmem:[%s243 + $0x1858] sm:$0xff]
        %v1069 = vld [vmem:[%s243 + $0x1860] sm:$0xff]
        %v1070 = vld [vmem:[%s243 + $0x1868] sm:$0xff]
        %v1071 = vld [vmem:[%s243 + $0x1870] sm:$0xff]
        %v1072 = vld [vmem:[%s243 + $0x1878] sm:$0xff]
        %v1073 = vld [vmem:[%s243 + $0x1880] sm:$0xff]
        %v1074 = vld [vmem:[%s243 + $0x1888] sm:$0xff]
        %v1075 = vld [vmem:[%s243 + $0x1890] sm:$0xff]
        %v1076 = vld [vmem:[%s243 + $0x1898] sm:$0xff]
        %v1077 = vld [vmem:[%s243 + $0x18a0] sm:$0xff]
        %v1078 = vld [vmem:[%s243 + $0x18a8] sm:$0xff]
        %v1079 = vld [vmem:[%s243 + $0x18b0] sm:$0xff]
        %v1080 = vld [vmem:[%s243 + $0x18b8] sm:$0xff]
        %v1081 = vld [vmem:[%s243 + $0x18c0] sm:$0xff]
        %v1082 = vld [vmem:[%s243 + $0x18c8] sm:$0xff]
        %v1083 = vld [vmem:[%s243 + $0x18d0] sm:$0xff]
        %v1084 = vld [vmem:[%s243 + $0x18d8] sm:$0xff]
        %v1085 = vld [vmem:[%s243 + $0x18e0] sm:$0xff]
        %v1086 = vld [vmem:[%s243 + $0x18e8] sm:$0xff]
        %v1087 = vld [vmem:[%s243 + $0x18f0] sm:$0xff]
        %v1088 = vld [vmem:[%s243 + $0x18f8] sm:$0xff]
        %v1089 = vld [vmem:[%s243 + $0x1900] sm:$0xff]
        %v1090 = vld [vmem:[%s243 + $0x1908] sm:$0xff]
        %v1091 = vld [vmem:[%s243 + $0x1910] sm:$0xff]
        %v1092 = vld [vmem:[%s243 + $0x1918] sm:$0xff]
        %v1093 = vld [vmem:[%s243 + $0x1920] sm:$0xff]
        %v1094 = vld [vmem:[%s243 + $0x1928] sm:$0xff]
        %v1095 = vld [vmem:[%s243 + $0x1930] sm:$0xff]
        %v1096 = vld [vmem:[%s243 + $0x1938] sm:$0xff]
        %v1097 = vld [vmem:[%s243 + $0x1940] sm:$0xff]
        %v1098 = vld [vmem:[%s243 + $0x1948] sm:$0xff]
        %v1099 = vld [vmem:[%s243 + $0x1950] sm:$0xff]
        %v1100 = vld [vmem:[%s243 + $0x1958] sm:$0xff]
        %v1101 = vld [vmem:[%s243 + $0x1960] sm:$0xff]
        %v1102 = vld [vmem:[%s243 + $0x1968] sm:$0xff]
        %v1103 = vld [vmem:[%s243 + $0x1970] sm:$0xff]
        %v1104 = vld [vmem:[%s243 + $0x1978] sm:$0xff]
        %v1105 = vld [vmem:[%s243 + $0x1980] sm:$0xff]
        %v1106 = vld [vmem:[%s243 + $0x1988] sm:$0xff]
        %v1107 = vld [vmem:[%s243 + $0x1990] sm:$0xff]
        %v1108 = vld [vmem:[%s243 + $0x1998] sm:$0xff]
        %v1109 = vld [vmem:[%s243 + $0x19a0] sm:$0xff]
        %v1110 = vld [vmem:[%s243 + $0x19a8] sm:$0xff]
        %v1111 = vld [vmem:[%s243 + $0x19b0] sm:$0xff]
        %v1112 = vld [vmem:[%s243 + $0x19b8] sm:$0xff]
        %v1113 = vld [vmem:[%s243 + $0x19c0] sm:$0xff]
        %v1114 = vld [vmem:[%s243 + $0x19c8] sm:$0xff]
        %v1115 = vld [vmem:[%s243 + $0x19d0] sm:$0xff]
        %v1116 = vld [vmem:[%s243 + $0x19d8] sm:$0xff]
        %v1117 = vld [vmem:[%s243 + $0x19e0] sm:$0xff]
        %v1118 = vld [vmem:[%s243 + $0x19e8] sm:$0xff]
        %v1119 = vld [vmem:[%s243 + $0x19f0] sm:$0xff]
        %v1120 = vld [vmem:[%s243 + $0x19f8] sm:$0xff]
        %v1121 = vld [vmem:[%s243 + $0x1a00] sm:$0xff]
        %v1122 = vld [vmem:[%s243 + $0x1a08] sm:$0xff]
        %v1123 = vld [vmem:[%s243 + $0x1a10] sm:$0xff]
        %v1124 = vld [vmem:[%s243 + $0x1a18] sm:$0xff]
        %v1125 = vld [vmem:[%s243 + $0x1a20] sm:$0xff]
        %v1126 = vld [vmem:[%s243 + $0x1a28] sm:$0xff]
        %v1127 = vld [vmem:[%s243 + $0x1a30] sm:$0xff]
        %v1128 = vld [vmem:[%s243 + $0x1a38] sm:$0xff]
        %v1129 = vld [vmem:[%s243 + $0x1a40] sm:$0xff]
        %v1130 = vld [vmem:[%s243 + $0x1a48] sm:$0xff]
        %v1131 = vld [vmem:[%s243 + $0x1a50] sm:$0xff]
        %v1132 = vld [vmem:[%s243 + $0x1a58] sm:$0xff]
        %v1133 = vld [vmem:[%s243 + $0x1a60] sm:$0xff]
        %v1134 = vld [vmem:[%s243 + $0x1a68] sm:$0xff]
        %v1135 = vld [vmem:[%s243 + $0x1a70] sm:$0xff]
        %v1136 = vld [vmem:[%s243 + $0x1a78] sm:$0xff]
        %v1137 = vld [vmem:[%s243 + $0x1a80] sm:$0xff]
        %v1138 = vld [vmem:[%s243 + $0x1a88] sm:$0xff]
        %v1139 = vld [vmem:[%s243 + $0x1a90] sm:$0xff]
        %v1140 = vld [vmem:[%s243 + $0x1a98] sm:$0xff]
        %v1141 = vld [vmem:[%s243 + $0x1aa0] sm:$0xff]
        %v1142 = vld [vmem:[%s243 + $0x1aa8] sm:$0xff]
        %v1143 = vld [vmem:[%s243 + $0x1ab0] sm:$0xff]
        %v1144 = vld [vmem:[%s243 + $0x1ab8] sm:$0xff]
        %v1145 = vld [vmem:[%s243 + $0x1ac0] sm:$0xff]
        %v1146 = vld [vmem:[%s243 + $0x1ac8] sm:$0xff]
        %v1147 = vld [vmem:[%s243 + $0x1ad0] sm:$0xff]
        %v1148 = vld [vmem:[%s243 + $0x1ad8] sm:$0xff]
        %v1149 = vld [vmem:[%s243 + $0x1ae0] sm:$0xff]
        %v1150 = vld [vmem:[%s243 + $0x1ae8] sm:$0xff]
        %v1151 = vld [vmem:[%s243 + $0x1af0] sm:$0xff]
        %v1152 = vld [vmem:[%s243 + $0x1af8] sm:$0xff]
        %v1153 = vld [vmem:[%s243 + $0x1b00] sm:$0xff]
        %v1154 = vld [vmem:[%s243 + $0x1b08] sm:$0xff]
        %v1155 = vld [vmem:[%s243 + $0x1b10] sm:$0xff]
        %v1156 = vld [vmem:[%s243 + $0x1b18] sm:$0xff]
        %v1157 = vld [vmem:[%s243 + $0x1b20] sm:$0xff]
        %v1158 = vld [vmem:[%s243 + $0x1b28] sm:$0xff]
        %v1159 = vld [vmem:[%s243 + $0x1b30] sm:$0xff]
        %v1160 = vld [vmem:[%s243 + $0x1b38] sm:$0xff]
        %v1161 = vld [vmem:[%s243 + $0x1b40] sm:$0xff]
        %v1162 = vld [vmem:[%s243 + $0x1b48] sm:$0xff]
        %v1163 = vld [vmem:[%s243 + $0x1b50] sm:$0xff]
        %v1164 = vld [vmem:[%s243 + $0x1b58] sm:$0xff]
        %v1165 = vld [vmem:[%s243 + $0x1b60] sm:$0xff]
        %v1166 = vld [vmem:[%s243 + $0x1b68] sm:$0xff]
        %v1167 = vld [vmem:[%s243 + $0x1b70] sm:$0xff]
        %v1168 = vld [vmem:[%s243 + $0x1b78] sm:$0xff]
        %v1169 = vld [vmem:[%s243 + $0x1b80] sm:$0xff]
        %v1170 = vld [vmem:[%s243 + $0x1b88] sm:$0xff]
        %v1171 = vld [vmem:[%s243 + $0x1b90] sm:$0xff]
        %v1172 = vld [vmem:[%s243 + $0x1b98] sm:$0xff]
        %v1173 = vld [vmem:[%s243 + $0x1ba0] sm:$0xff]
        %v1174 = vld [vmem:[%s243 + $0x1ba8] sm:$0xff]
        %v1175 = vld [vmem:[%s243 + $0x1bb0] sm:$0xff]
        %v1176 = vld [vmem:[%s243 + $0x1bb8] sm:$0xff]
        %v1177 = vld [vmem:[%s243 + $0x1bc0] sm:$0xff]
        %v1178 = vld [vmem:[%s243 + $0x1bc8] sm:$0xff]
        %v1179 = vld [vmem:[%s243 + $0x1bd0] sm:$0xff]
        %v1180 = vld [vmem:[%s243 + $0x1bd8] sm:$0xff]
        %v1181 = vld [vmem:[%s243 + $0x1be0] sm:$0xff]
        %v1182 = vld [vmem:[%s243 + $0x1be8] sm:$0xff]
        %v1183 = vld [vmem:[%s243 + $0x1bf0] sm:$0xff]
        %v1184 = vld [vmem:[%s243 + $0x1bf8] sm:$0xff]
        %v1185 = vld [vmem:[%s243 + $0x1c00] sm:$0xff]
        %v1186 = vld [vmem:[%s243 + $0x1c08] sm:$0xff]
        %v1187 = vld [vmem:[%s243 + $0x1c10] sm:$0xff]
        %v1188 = vld [vmem:[%s243 + $0x1c18] sm:$0xff]
        %v1189 = vld [vmem:[%s243 + $0x1c20] sm:$0xff]
        %v1190 = vld [vmem:[%s243 + $0x1c28] sm:$0xff]
        %v1191 = vld [vmem:[%s243 + $0x1c30] sm:$0xff]
        %v1192 = vld [vmem:[%s243 + $0x1c38] sm:$0xff]
        %v1193 = vld [vmem:[%s243 + $0x1c40] sm:$0xff]
        %v1194 = vld [vmem:[%s243 + $0x1c48] sm:$0xff]
        %v1195 = vld [vmem:[%s243 + $0x1c50] sm:$0xff]
        %v1196 = vld [vmem:[%s243 + $0x1c58] sm:$0xff]
        %v1197 = vld [vmem:[%s243 + $0x1c60] sm:$0xff]
        %v1198 = vld [vmem:[%s243 + $0x1c68] sm:$0xff]
        %v1199 = vld [vmem:[%s243 + $0x1c70] sm:$0xff]
        %v1200 = vld [vmem:[%s243 + $0x1c78] sm:$0xff]
        %v1201 = vld [vmem:[%s243 + $0x1c80] sm:$0xff]
        %v1202 = vld [vmem:[%s243 + $0x1c88] sm:$0xff]
        %v1203 = vld [vmem:[%s243 + $0x1c90] sm:$0xff]
        %v1204 = vld [vmem:[%s243 + $0x1c98] sm:$0xff]
        %v1205 = vld [vmem:[%s243 + $0x1ca0] sm:$0xff]
        %v1206 = vld [vmem:[%s243 + $0x1ca8] sm:$0xff]
        %v1207 = vld [vmem:[%s243 + $0x1cb0] sm:$0xff]
        %v1208 = vld [vmem:[%s243 + $0x1cb8] sm:$0xff]
        %v1209 = vld [vmem:[%s243 + $0x1cc0] sm:$0xff]
        %v1210 = vld [vmem:[%s243 + $0x1cc8] sm:$0xff]
        %v1211 = vld [vmem:[%s243 + $0x1cd0] sm:$0xff]
        %v1212 = vld [vmem:[%s243 + $0x1cd8] sm:$0xff]
        %v1213 = vld [vmem:[%s243 + $0x1ce0] sm:$0xff]
        %v1214 = vld [vmem:[%s243 + $0x1ce8] sm:$0xff]
        %v1215 = vld [vmem:[%s243 + $0x1cf0] sm:$0xff]
        %v1216 = vld [vmem:[%s243 + $0x1cf8] sm:$0xff]
        %v1217 = vld [vmem:[%s243 + $0x1d00] sm:$0xff]
        %v1218 = vld [vmem:[%s243 + $0x1d08] sm:$0xff]
        %v1219 = vld [vmem:[%s243 + $0x1d10] sm:$0xff]
        %v1220 = vld [vmem:[%s243 + $0x1d18] sm:$0xff]
        %v1221 = vld [vmem:[%s243 + $0x1d20] sm:$0xff]
        %v1222 = vld [vmem:[%s243 + $0x1d28] sm:$0xff]
        %v1223 = vld [vmem:[%s243 + $0x1d30] sm:$0xff]
        %v1224 = vld [vmem:[%s243 + $0x1d38] sm:$0xff]
        %v1225 = vld [vmem:[%s243 + $0x1d40] sm:$0xff]
        %v1226 = vld [vmem:[%s243 + $0x1d48] sm:$0xff]
        %v1227 = vld [vmem:[%s243 + $0x1d50] sm:$0xff]
        %v1228 = vld [vmem:[%s243 + $0x1d58] sm:$0xff]
        %v1229 = vld [vmem:[%s243 + $0x1d60] sm:$0xff]
        %v1230 = vld [vmem:[%s243 + $0x1d68] sm:$0xff]
        %v1231 = vld [vmem:[%s243 + $0x1d70] sm:$0xff]
        %v1232 = vld [vmem:[%s243 + $0x1d78] sm:$0xff]
        %v1233 = vld [vmem:[%s243 + $0x1d80] sm:$0xff]
        %v1234 = vld [vmem:[%s243 + $0x1d88] sm:$0xff]
        %v1235 = vld [vmem:[%s243 + $0x1d90] sm:$0xff]
        %v1236 = vld [vmem:[%s243 + $0x1d98] sm:$0xff]
        %v1237 = vld [vmem:[%s243 + $0x1da0] sm:$0xff]
        %v1238 = vld [vmem:[%s243 + $0x1da8] sm:$0xff]
        %v1239 = vld [vmem:[%s243 + $0x1db0] sm:$0xff]
        %v1240 = vld [vmem:[%s243 + $0x1db8] sm:$0xff]
        %v1241 = vld [vmem:[%s243 + $0x1dc0] sm:$0xff]
        %v1242 = vld [vmem:[%s243 + $0x1dc8] sm:$0xff]
        %v1243 = vld [vmem:[%s243 + $0x1dd0] sm:$0xff]
        %v1244 = vld [vmem:[%s243 + $0x1dd8] sm:$0xff]
        %v1245 = vld [vmem:[%s243 + $0x1de0] sm:$0xff]
        %v1246 = vld [vmem:[%s243 + $0x1de8] sm:$0xff]
        %v1247 = vld [vmem:[%s243 + $0x1df0] sm:$0xff]
        %v1248 = vld [vmem:[%s243 + $0x1df8] sm:$0xff]
        %v1249 = vld [vmem:[%s243 + $0x1e00] sm:$0xff]
        %v1250 = vld [vmem:[%s243 + $0x1e08] sm:$0xff]
        %v1251 = vld [vmem:[%s243 + $0x1e10] sm:$0xff]
        %v1252 = vld [vmem:[%s243 + $0x1e18] sm:$0xff]
        %v1253 = vld [vmem:[%s243 + $0x1e20] sm:$0xff]
        %v1254 = vld [vmem:[%s243 + $0x1e28] sm:$0xff]
        %v1255 = vld [vmem:[%s243 + $0x1e30] sm:$0xff]
        %v1256 = vld [vmem:[%s243 + $0x1e38] sm:$0xff]
        %v1257 = vld [vmem:[%s243 + $0x1e40] sm:$0xff]
        %v1258 = vld [vmem:[%s243 + $0x1e48] sm:$0xff]
        %v1259 = vld [vmem:[%s243 + $0x1e50] sm:$0xff]
        %v1260 = vld [vmem:[%s243 + $0x1e58] sm:$0xff]
        %v1261 = vld [vmem:[%s243 + $0x1e60] sm:$0xff]
        %v1262 = vld [vmem:[%s243 + $0x1e68] sm:$0xff]
        %v1263 = vld [vmem:[%s243 + $0x1e70] sm:$0xff]
        %v1264 = vld [vmem:[%s243 + $0x1e78] sm:$0xff]
        %v1265 = vld [vmem:[%s243 + $0x1e80] sm:$0xff]
        %v1266 = vld [vmem:[%s243 + $0x1e88] sm:$0xff]
        %v1267 = vld [vmem:[%s243 + $0x1e90] sm:$0xff]
        %v1268 = vld [vmem:[%s243 + $0x1e98] sm:$0xff]
        %v1269 = vld [vmem:[%s243 + $0x1ea0] sm:$0xff]
        %v1270 = vld [vmem:[%s243 + $0x1ea8] sm:$0xff]
        %v1271 = vld [vmem:[%s243 + $0x1eb0] sm:$0xff]
        %v1272 = vld [vmem:[%s243 + $0x1eb8] sm:$0xff]
        %v1273 = vld [vmem:[%s243 + $0x1ec0] sm:$0xff]
        %v1274 = vld [vmem:[%s243 + $0x1ec8] sm:$0xff]
        %v1275 = vld [vmem:[%s243 + $0x1ed0] sm:$0xff]
        %v1276 = vld [vmem:[%s243 + $0x1ed8] sm:$0xff]
        %v1277 = vld [vmem:[%s243 + $0x1ee0] sm:$0xff]
        %v1278 = vld [vmem:[%s243 + $0x1ee8] sm:$0xff]
        %v1279 = vld [vmem:[%s243 + $0x1ef0] sm:$0xff]
        %v1280 = vld [vmem:[%s243 + $0x1ef8] sm:$0xff]
        %v1281 = vld [vmem:[%s243 + $0x1f00] sm:$0xff]
        %v1282 = vld [vmem:[%s243 + $0x1f08] sm:$0xff]
        %v1283 = vld [vmem:[%s243 + $0x1f10] sm:$0xff]
        %v1284 = vld [vmem:[%s243 + $0x1f18] sm:$0xff]
        %v1285 = vld [vmem:[%s243 + $0x1f20] sm:$0xff]
        %v1286 = vld [vmem:[%s243 + $0x1f28] sm:$0xff]
        %v1287 = vld [vmem:[%s243 + $0x1f30] sm:$0xff]
        %v1288 = vld [vmem:[%s243 + $0x1f38] sm:$0xff]
        %v1289 = vld [vmem:[%s243 + $0x1f40] sm:$0xff]
        %v1290 = vld [vmem:[%s243 + $0x1f48] sm:$0xff]
        %v1291 = vld [vmem:[%s243 + $0x1f50] sm:$0xff]
        %v1292 = vld [vmem:[%s243 + $0x1f58] sm:$0xff]
        %v1293 = vld [vmem:[%s243 + $0x1f60] sm:$0xff]
        %v1294 = vld [vmem:[%s243 + $0x1f68] sm:$0xff]
        %v1295 = vld [vmem:[%s243 + $0x1f70] sm:$0xff]
        %v1296 = vld [vmem:[%s243 + $0x1f78] sm:$0xff]
        %v1297 = vld [vmem:[%s243 + $0x1f80] sm:$0xff]
        %v1298 = vld [vmem:[%s243 + $0x1f88] sm:$0xff]
        %v1299 = vld [vmem:[%s243 + $0x1f90] sm:$0xff]
        %v1300 = vld [vmem:[%s243 + $0x1f98] sm:$0xff]
        %v1301 = vld [vmem:[%s243 + $0x1fa0] sm:$0xff]
        %v1302 = vld [vmem:[%s243 + $0x1fa8] sm:$0xff]
        %v1303 = vld [vmem:[%s243 + $0x1fb0] sm:$0xff]
        %v1304 = vld [vmem:[%s243 + $0x1fb8] sm:$0xff]
        %v1305 = vld [vmem:[%s243 + $0x1fc0] sm:$0xff]
        %v1306 = vld [vmem:[%s243 + $0x1fc8] sm:$0xff]
        %v1307 = vld [vmem:[%s243 + $0x1fd0] sm:$0xff]
        %v1308 = vld [vmem:[%s243 + $0x1fd8] sm:$0xff]
        %v1309 = vld [vmem:[%s243 + $0x1fe0] sm:$0xff]
        %v1310 = vld [vmem:[%s243 + $0x1fe8] sm:$0xff]
        %v1311 = vld [vmem:[%s243 + $0x1ff0] sm:$0xff]
        %v1312 = vld [vmem:[%s243 + $0x1ff8] sm:$0xff]
        %v1313 = vld [vmem:[%s252] sm:$0xff]
        %v1314 = vld [vmem:[%s252 + $0x8] sm:$0xff]
        %v1315 = vld [vmem:[%s252 + $0x10] sm:$0xff]
        %v1316 = vld [vmem:[%s252 + $0x18] sm:$0xff]
        %v1321 = vlaneseq
        %v1322 = vshrl.u32 %v1321, 7
        %v1323 = vsub.s32 0, %v1322
        %v1324 = vrot.slane %v1313, %v1323
        %v1325 = vlaneseq
        %v1326 = vshrl.u32 %v1325, 7
        %v1327 = vsub.s32 1, %v1326
        %v1328 = vrot.slane %v1313, %v1327
        %v1329 = vlaneseq
        %v1330 = vshrl.u32 %v1329, 7
        %v1331 = vsub.s32 2, %v1330
        %v1332 = vrot.slane %v1313, %v1331
        %v1333 = vlaneseq
        %v1334 = vshrl.u32 %v1333, 7
        %v1335 = vsub.s32 3, %v1334
        %v1336 = vrot.slane %v1313, %v1335
        %v1337 = vlaneseq
        %v1338 = vshrl.u32 %v1337, 7
        %v1339 = vsub.s32 4, %v1338
        %v1340 = vrot.slane %v1313, %v1339
        %v1341 = vlaneseq
        %v1342 = vshrl.u32 %v1341, 7
        %v1343 = vsub.s32 5, %v1342
        %v1344 = vrot.slane %v1313, %v1343
        %v1345 = vlaneseq
        %v1346 = vshrl.u32 %v1345, 7
        %v1347 = vsub.s32 6, %v1346
        %v1348 = vrot.slane %v1313, %v1347
        %v1349 = vlaneseq
        %v1350 = vshrl.u32 %v1349, 7
        %v1351 = vsub.s32 7, %v1350
        %v1352 = vrot.slane %v1313, %v1351
        %v1353 = vlaneseq
        %v1354 = vshrl.u32 %v1353, 7
        %v1355 = vsub.s32 0, %v1354
        %v1356 = vrot.slane %v1314, %v1355
        %v1357 = vlaneseq
        %v1358 = vshrl.u32 %v1357, 7
        %v1359 = vsub.s32 1, %v1358
        %v1360 = vrot.slane %v1314, %v1359
        %v1361 = vlaneseq
        %v1362 = vshrl.u32 %v1361, 7
        %v1363 = vsub.s32 2, %v1362
        %v1364 = vrot.slane %v1314, %v1363
        %v1365 = vlaneseq
        %v1366 = vshrl.u32 %v1365, 7
        %v1367 = vsub.s32 3, %v1366
        %v1368 = vrot.slane %v1314, %v1367
        %v1369 = vlaneseq
        %v1370 = vshrl.u32 %v1369, 7
        %v1371 = vsub.s32 4, %v1370
        %v1372 = vrot.slane %v1314, %v1371
        %v1373 = vlaneseq
        %v1374 = vshrl.u32 %v1373, 7
        %v1375 = vsub.s32 5, %v1374
        %v1376 = vrot.slane %v1314, %v1375
        %v1377 = vlaneseq
        %v1378 = vshrl.u32 %v1377, 7
        %v1379 = vsub.s32 6, %v1378
        %v1380 = vrot.slane %v1314, %v1379
        %v1381 = vlaneseq
        %v1382 = vshrl.u32 %v1381, 7
        %v1383 = vsub.s32 7, %v1382
        %v1384 = vrot.slane %v1314, %v1383
        %v1385 = vlaneseq
        %v1386 = vshrl.u32 %v1385, 7
        %v1387 = vsub.s32 0, %v1386
        %v1388 = vrot.slane %v1315, %v1387
        %v1389 = vlaneseq
        %v1390 = vshrl.u32 %v1389, 7
        %v1391 = vsub.s32 1, %v1390
        %v1392 = vrot.slane %v1315, %v1391
        %v1393 = vlaneseq
        %v1394 = vshrl.u32 %v1393, 7
        %v1395 = vsub.s32 2, %v1394
        %v1396 = vrot.slane %v1315, %v1395
        %v1397 = vlaneseq
        %v1398 = vshrl.u32 %v1397, 7
        %v1399 = vsub.s32 3, %v1398
        %v1400 = vrot.slane %v1315, %v1399
        %v1401 = vlaneseq
        %v1402 = vshrl.u32 %v1401, 7
        %v1403 = vsub.s32 4, %v1402
        %v1404 = vrot.slane %v1315, %v1403
        %v1405 = vlaneseq
        %v1406 = vshrl.u32 %v1405, 7
        %v1407 = vsub.s32 5, %v1406
        %v1408 = vrot.slane %v1315, %v1407
        %v1409 = vlaneseq
        %v1410 = vshrl.u32 %v1409, 7
        %v1411 = vsub.s32 6, %v1410
        %v1412 = vrot.slane %v1315, %v1411
        %v1413 = vlaneseq
        %v1414 = vshrl.u32 %v1413, 7
        %v1415 = vsub.s32 7, %v1414
        %v1416 = vrot.slane %v1315, %v1415
        %v1417 = vlaneseq
        %v1418 = vshrl.u32 %v1417, 7
        %v1419 = vsub.s32 0, %v1418
        %v1420 = vrot.slane %v1316, %v1419
        %v1421 = vlaneseq
        %v1422 = vshrl.u32 %v1421, 7
        %v1423 = vsub.s32 1, %v1422
        %v1424 = vrot.slane %v1316, %v1423
        %v1425 = vlaneseq
        %v1426 = vshrl.u32 %v1425, 7
        %v1427 = vsub.s32 2, %v1426
        %v1428 = vrot.slane %v1316, %v1427
        %v1429 = vlaneseq
        %v1430 = vshrl.u32 %v1429, 7
        %v1431 = vsub.s32 3, %v1430
        %v1432 = vrot.slane %v1316, %v1431
        %v1433 = vlaneseq
        %v1434 = vshrl.u32 %v1433, 7
        %v1435 = vsub.s32 4, %v1434
        %v1436 = vrot.slane %v1316, %v1435
        %v1437 = vlaneseq
        %v1438 = vshrl.u32 %v1437, 7
        %v1439 = vsub.s32 5, %v1438
        %v1440 = vrot.slane %v1316, %v1439
        %v1441 = vlaneseq
        %v1442 = vshrl.u32 %v1441, 7
        %v1443 = vsub.s32 6, %v1442
        %v1444 = vrot.slane %v1316, %v1443
        %v1445 = vlaneseq
        %v1446 = vshrl.u32 %v1445, 7
        %v1447 = vsub.s32 7, %v1446
        %v1448 = vrot.slane %v1316, %v1447
        %v1483 = vunpack.c.l.s4 1983009808
        %v1484 = vunpack.c.0.s8 %v1483
        %v1485 = vlaneseq
        %v1486 = vshrl.u32 %v1485, 7
        %v1487 = vsub.s32 %v1484, %v1486
        %v1488 = vrot.slane %v288, %v1487
        %v1489 = vcombine.high %v1488, %v1488
        %1492 = vmatprep.subr.mxu0 %v290
        %1493 = vmatpush1.xpose.msra.mxu0 %v289
        %1494 = vmatprep.subr.mxu0 %v292
        %1495 = vmatpush1.xpose.msra.mxu0 %v291
        %1496 = vmatprep.subr.mxu0 %v294
        %1497 = vmatpush1.xpose.msra.mxu0 %v293
        %1498 = vmatprep.subr.mxu0 %v296
        %1499 = vmatpush1.xpose.msra.mxu0 %v295
        %1500 = vmatprep.subr.mxu0 %v298
        %1501 = vmatpush1.xpose.msra.mxu0 %v297
        %1502 = vmatprep.subr.mxu0 %v300
        %1503 = vmatpush1.xpose.msra.mxu0 %v299
        %1504 = vmatprep.subr.mxu0 %v302
        %1505 = vmatpush1.xpose.msra.mxu0 %v301
        %1506 = vmatprep.subr.mxu0 %v304
        %1507 = vmatpush1.xpose.msra.mxu0 %v303
        %1508 = vmatprep.subr.mxu0 %v306
        %1509 = vmatpush1.xpose.msra.mxu0 %v305
        %1510 = vmatprep.subr.mxu0 %v308
        %1511 = vmatpush1.xpose.msra.mxu0 %v307
        %1512 = vmatprep.subr.mxu0 %v310
        %1513 = vmatpush1.xpose.msra.mxu0 %v309
        %1514 = vmatprep.subr.mxu0 %v312
        %1515 = vmatpush1.xpose.msra.mxu0 %v311
        %1516 = vmatprep.subr.mxu0 %v314
        %1517 = vmatpush1.xpose.msra.mxu0 %v313
        %1518 = vmatprep.subr.mxu0 %v316
        %1519 = vmatpush1.xpose.msra.mxu0 %v315
        %1520 = vmatprep.subr.mxu0 %v318
        %1521 = vmatpush1.xpose.msra.mxu0 %v317
        %1522 = vmatprep.subr.mxu0 %v320
        %1523 = vmatpush1.xpose.msra.mxu0 %v319
        %1524 = vmatprep.subr.mxu0 %v322
        %1525 = vmatpush1.xpose.msra.mxu0 %v321
        %1526 = vmatprep.subr.mxu0 %v324
        %1527 = vmatpush1.xpose.msra.mxu0 %v323
        %1528 = vmatprep.subr.mxu0 %v326
        %1529 = vmatpush1.xpose.msra.mxu0 %v325
        %1530 = vmatprep.subr.mxu0 %v328
        %1531 = vmatpush1.xpose.msra.mxu0 %v327
        %1532 = vmatprep.subr.mxu0 %v330
        %1533 = vmatpush1.xpose.msra.mxu0 %v329
        %1534 = vmatprep.subr.mxu0 %v332
        %1535 = vmatpush1.xpose.msra.mxu0 %v331
        %1536 = vmatprep.subr.mxu0 %v334
        %1537 = vmatpush1.xpose.msra.mxu0 %v333
        %1538 = vmatprep.subr.mxu0 %v336
        %1539 = vmatpush1.xpose.msra.mxu0 %v335
        %1540 = vmatprep.subr.mxu0 %v338
        %1541 = vmatpush1.xpose.msra.mxu0 %v337
        %1542 = vmatprep.subr.mxu0 %v340
        %1543 = vmatpush1.xpose.msra.mxu0 %v339
        %1544 = vmatprep.subr.mxu0 %v342
        %1545 = vmatpush1.xpose.msra.mxu0 %v341
        %1546 = vmatprep.subr.mxu0 %v344
        %1547 = vmatpush1.xpose.msra.mxu0 %v343
        %1548 = vmatprep.subr.mxu0 %v346
        %1549 = vmatpush1.xpose.msra.mxu0 %v345
        %1550 = vmatprep.subr.mxu0 %v348
        %1551 = vmatpush1.xpose.msra.mxu0 %v347
        %1552 = vmatprep.subr.mxu0 %v350
        %1553 = vmatpush1.xpose.msra.mxu0 %v349
        %1554 = vmatprep.subr.mxu0 %v352
        %1555 = vmatpush1.xpose.msra.mxu0 %v351
        %1556 = vmatprep.mubr.f32.mxu0 %v1489
        %1557 = vmatmul.mubr.f32.gmra.mrb[0].mxu0 %v1488
        %v1558 = vpop.f32.mrb[0].mxu0
        %v1559 = vadd.f32 %v1324, %v1558
        %v1560 = vpop.f32.mrb[0].mxu0
        %v1561 = vadd.f32 %v1328, %v1560
        %1562 = vdwg.mxu0
        %1563 = vmatprep.subr.mxu0 %v354
        %1564 = vmatpush1.xpose.msra.mxu0 %v353
        %1565 = vmatprep.subr.mxu0 %v356
        %1566 = vmatpush1.xpose.msra.mxu0 %v355
        %1567 = vmatprep.subr.mxu0 %v358
        %1568 = vmatpush1.xpose.msra.mxu0 %v357
        %1569 = vmatprep.subr.mxu0 %v360
        %1570 = vmatpush1.xpose.msra.mxu0 %v359
        %1571 = vmatprep.subr.mxu0 %v362
        %1572 = vmatpush1.xpose.msra.mxu0 %v361
        %1573 = vmatprep.subr.mxu0 %v364
        %1574 = vmatpush1.xpose.msra.mxu0 %v363
        %1575 = vmatprep.subr.mxu0 %v366
        %1576 = vmatpush1.xpose.msra.mxu0 %v365
        %1577 = vmatprep.subr.mxu0 %v368
        %1578 = vmatpush1.xpose.msra.mxu0 %v367
        %1579 = vmatprep.subr.mxu0 %v370
        %1580 = vmatpush1.xpose.msra.mxu0 %v369
        %1581 = vmatprep.subr.mxu0 %v372
        %1582 = vmatpush1.xpose.msra.mxu0 %v371
        %1583 = vmatprep.subr.mxu0 %v374
        %1584 = vmatpush1.xpose.msra.mxu0 %v373
        %1585 = vmatprep.subr.mxu0 %v376
        %1586 = vmatpush1.xpose.msra.mxu0 %v375
        %1587 = vmatprep.subr.mxu0 %v378
        %1588 = vmatpush1.xpose.msra.mxu0 %v377
        %1589 = vmatprep.subr.mxu0 %v380
        %1590 = vmatpush1.xpose.msra.mxu0 %v379
        %1591 = vmatprep.subr.mxu0 %v382
        %1592 = vmatpush1.xpose.msra.mxu0 %v381
        %1593 = vmatprep.subr.mxu0 %v384
        %1594 = vmatpush1.xpose.msra.mxu0 %v383
        %1595 = vmatprep.subr.mxu0 %v386
        %1596 = vmatpush1.xpose.msra.mxu0 %v385
        %1597 = vmatprep.subr.mxu0 %v388
        %1598 = vmatpush1.xpose.msra.mxu0 %v387
        %1599 = vmatprep.subr.mxu0 %v390
        %1600 = vmatpush1.xpose.msra.mxu0 %v389
        %1601 = vmatprep.subr.mxu0 %v392
        %1602 = vmatpush1.xpose.msra.mxu0 %v391
        %1603 = vmatprep.subr.mxu0 %v394
        %1604 = vmatpush1.xpose.msra.mxu0 %v393
        %1605 = vmatprep.subr.mxu0 %v396
        %1606 = vmatpush1.xpose.msra.mxu0 %v395
        %1607 = vmatprep.subr.mxu0 %v398
        %1608 = vmatpush1.xpose.msra.mxu0 %v397
        %1609 = vmatprep.subr.mxu0 %v400
        %1610 = vmatpush1.xpose.msra.mxu0 %v399
        %1611 = vmatprep.subr.mxu0 %v402
        %1612 = vmatpush1.xpose.msra.mxu0 %v401
        %1613 = vmatprep.subr.mxu0 %v404
        %1614 = vmatpush1.xpose.msra.mxu0 %v403
        %1615 = vmatprep.subr.mxu0 %v406
        %1616 = vmatpush1.xpose.msra.mxu0 %v405
        %1617 = vmatprep.subr.mxu0 %v408
        %1618 = vmatpush1.xpose.msra.mxu0 %v407
        %1619 = vmatprep.subr.mxu0 %v410
        %1620 = vmatpush1.xpose.msra.mxu0 %v409
        %1621 = vmatprep.subr.mxu0 %v412
        %1622 = vmatpush1.xpose.msra.mxu0 %v411
        %1623 = vmatprep.subr.mxu0 %v414
        %1624 = vmatpush1.xpose.msra.mxu0 %v413
        %1625 = vmatprep.subr.mxu0 %v416
        %1626 = vmatpush1.xpose.msra.mxu0 %v415
        %1627 = vmatprep.mubr.f32.mxu0 %v1489
        %1628 = vmatmul.mubr.f32.gmra.mrb[0].mxu0 %v1488
        %v1629 = vpop.f32.mrb[0].mxu0
        %v1630 = vadd.f32 %v1332, %v1629
        %v1631 = vpop.f32.mrb[0].mxu0
        %v1632 = vadd.f32 %v1336, %v1631
        %1633 = vdwg.mxu0
        %1634 = vmatprep.subr.mxu0 %v418
        %1635 = vmatpush1.xpose.msra.mxu0 %v417
        %1636 = vmatprep.subr.mxu0 %v420
        %1637 = vmatpush1.xpose.msra.mxu0 %v419
        %1638 = vmatprep.subr.mxu0 %v422
        %1639 = vmatpush1.xpose.msra.mxu0 %v421
        %1640 = vmatprep.subr.mxu0 %v424
        %1641 = vmatpush1.xpose.msra.mxu0 %v423
        %1642 = vmatprep.subr.mxu0 %v426
        %1643 = vmatpush1.xpose.msra.mxu0 %v425
        %1644 = vmatprep.subr.mxu0 %v428
        %1645 = vmatpush1.xpose.msra.mxu0 %v427
        %1646 = vmatprep.subr.mxu0 %v430
        %1647 = vmatpush1.xpose.msra.mxu0 %v429
        %1648 = vmatprep.subr.mxu0 %v432
        %1649 = vmatpush1.xpose.msra.mxu0 %v431
        %1650 = vmatprep.subr.mxu0 %v434
        %1651 = vmatpush1.xpose.msra.mxu0 %v433
        %1652 = vmatprep.subr.mxu0 %v436
        %1653 = vmatpush1.xpose.msra.mxu0 %v435
        %1654 = vmatprep.subr.mxu0 %v438
        %1655 = vmatpush1.xpose.msra.mxu0 %v437
        %1656 = vmatprep.subr.mxu0 %v440
        %1657 = vmatpush1.xpose.msra.mxu0 %v439
        %1658 = vmatprep.subr.mxu0 %v442
        %1659 = vmatpush1.xpose.msra.mxu0 %v441
        %1660 = vmatprep.subr.mxu0 %v444
        %1661 = vmatpush1.xpose.msra.mxu0 %v443
        %1662 = vmatprep.subr.mxu0 %v446
        %1663 = vmatpush1.xpose.msra.mxu0 %v445
        %1664 = vmatprep.subr.mxu0 %v448
        %1665 = vmatpush1.xpose.msra.mxu0 %v447
        %1666 = vmatprep.subr.mxu0 %v450
        %1667 = vmatpush1.xpose.msra.mxu0 %v449
        %1668 = vmatprep.subr.mxu0 %v452
        %1669 = vmatpush1.xpose.msra.mxu0 %v451
        %1670 = vmatprep.subr.mxu0 %v454
        %1671 = vmatpush1.xpose.msra.mxu0 %v453
        %1672 = vmatprep.subr.mxu0 %v456
        %1673 = vmatpush1.xpose.msra.mxu0 %v455
        %1674 = vmatprep.subr.mxu0 %v458
        %1675 = vmatpush1.xpose.msra.mxu0 %v457
        %1676 = vmatprep.subr.mxu0 %v460
        %1677 = vmatpush1.xpose.msra.mxu0 %v459
        %1678 = vmatprep.subr.mxu0 %v462
        %1679 = vmatpush1.xpose.msra.mxu0 %v461
        %1680 = vmatprep.subr.mxu0 %v464
        %1681 = vmatpush1.xpose.msra.mxu0 %v463
        %1682 = vmatprep.subr.mxu0 %v466
        %1683 = vmatpush1.xpose.msra.mxu0 %v465
        %1684 = vmatprep.subr.mxu0 %v468
        %1685 = vmatpush1.xpose.msra.mxu0 %v467
        %1686 = vmatprep.subr.mxu0 %v470
        %1687 = vmatpush1.xpose.msra.mxu0 %v469
        %1688 = vmatprep.subr.mxu0 %v472
        %1689 = vmatpush1.xpose.msra.mxu0 %v471
        %1690 = vmatprep.subr.mxu0 %v474
        %1691 = vmatpush1.xpose.msra.mxu0 %v473
        %1692 = vmatprep.subr.mxu0 %v476
        %1693 = vmatpush1.xpose.msra.mxu0 %v475
        %1694 = vmatprep.subr.mxu0 %v478
        %1695 = vmatpush1.xpose.msra.mxu0 %v477
        %1696 = vmatprep.subr.mxu0 %v480
        %1697 = vmatpush1.xpose.msra.mxu0 %v479
        %1698 = vmatprep.mubr.f32.mxu0 %v1489
        %1699 = vmatmul.mubr.f32.gmra.mrb[0].mxu0 %v1488
        %v1700 = vpop.f32.mrb[0].mxu0
        %v1701 = vadd.f32 %v1340, %v1700
        %v1702 = vpop.f32.mrb[0].mxu0
        %v1703 = vadd.f32 %v1344, %v1702
        %1704 = vdwg.mxu0
        %1705 = vmatprep.subr.mxu0 %v482
        %1706 = vmatpush1.xpose.msra.mxu0 %v481
        %1707 = vmatprep.subr.mxu0 %v484
        %1708 = vmatpush1.xpose.msra.mxu0 %v483
        %1709 = vmatprep.subr.mxu0 %v486
        %1710 = vmatpush1.xpose.msra.mxu0 %v485
        %1711 = vmatprep.subr.mxu0 %v488
        %1712 = vmatpush1.xpose.msra.mxu0 %v487
        %1713 = vmatprep.subr.mxu0 %v490
        %1714 = vmatpush1.xpose.msra.mxu0 %v489
        %1715 = vmatprep.subr.mxu0 %v492
        %1716 = vmatpush1.xpose.msra.mxu0 %v491
        %1717 = vmatprep.subr.mxu0 %v494
        %1718 = vmatpush1.xpose.msra.mxu0 %v493
        %1719 = vmatprep.subr.mxu0 %v496
        %1720 = vmatpush1.xpose.msra.mxu0 %v495
        %1721 = vmatprep.subr.mxu0 %v498
        %1722 = vmatpush1.xpose.msra.mxu0 %v497
        %1723 = vmatprep.subr.mxu0 %v500
        %1724 = vmatpush1.xpose.msra.mxu0 %v499
        %1725 = vmatprep.subr.mxu0 %v502
        %1726 = vmatpush1.xpose.msra.mxu0 %v501
        %1727 = vmatprep.subr.mxu0 %v504
        %1728 = vmatpush1.xpose.msra.mxu0 %v503
        %1729 = vmatprep.subr.mxu0 %v506
        %1730 = vmatpush1.xpose.msra.mxu0 %v505
        %1731 = vmatprep.subr.mxu0 %v508
        %1732 = vmatpush1.xpose.msra.mxu0 %v507
        %1733 = vmatprep.subr.mxu0 %v510
        %1734 = vmatpush1.xpose.msra.mxu0 %v509
        %1735 = vmatprep.subr.mxu0 %v512
        %1736 = vmatpush1.xpose.msra.mxu0 %v511
        %1737 = vmatprep.subr.mxu0 %v514
        %1738 = vmatpush1.xpose.msra.mxu0 %v513
        %1739 = vmatprep.subr.mxu0 %v516
        %1740 = vmatpush1.xpose.msra.mxu0 %v515
        %1741 = vmatprep.subr.mxu0 %v518
        %1742 = vmatpush1.xpose.msra.mxu0 %v517
        %1743 = vmatprep.subr.mxu0 %v520
        %1744 = vmatpush1.xpose.msra.mxu0 %v519
        %1745 = vmatprep.subr.mxu0 %v522
        %1746 = vmatpush1.xpose.msra.mxu0 %v521
        %1747 = vmatprep.subr.mxu0 %v524
        %1748 = vmatpush1.xpose.msra.mxu0 %v523
        %1749 = vmatprep.subr.mxu0 %v526
        %1750 = vmatpush1.xpose.msra.mxu0 %v525
        %1751 = vmatprep.subr.mxu0 %v528
        %1752 = vmatpush1.xpose.msra.mxu0 %v527
        %1753 = vmatprep.subr.mxu0 %v530
        %1754 = vmatpush1.xpose.msra.mxu0 %v529
        %1755 = vmatprep.subr.mxu0 %v532
        %1756 = vmatpush1.xpose.msra.mxu0 %v531
        %1757 = vmatprep.subr.mxu0 %v534
        %1758 = vmatpush1.xpose.msra.mxu0 %v533
        %1759 = vmatprep.subr.mxu0 %v536
        %1760 = vmatpush1.xpose.msra.mxu0 %v535
        %1761 = vmatprep.subr.mxu0 %v538
        %1762 = vmatpush1.xpose.msra.mxu0 %v537
        %1763 = vmatprep.subr.mxu0 %v540
        %1764 = vmatpush1.xpose.msra.mxu0 %v539
        %1765 = vmatprep.subr.mxu0 %v542
        %1766 = vmatpush1.xpose.msra.mxu0 %v541
        %1767 = vmatprep.subr.mxu0 %v544
        %1768 = vmatpush1.xpose.msra.mxu0 %v543
        %1769 = vmatprep.mubr.f32.mxu0 %v1489
        %1770 = vmatmul.mubr.f32.gmra.mrb[0].mxu0 %v1488
        %v1771 = vpop.f32.mrb[0].mxu0
        %v1772 = vadd.f32 %v1348, %v1771
        %v1773 = vpop.f32.mrb[0].mxu0
        %v1774 = vadd.f32 %v1352, %v1773
        %1775 = vdwg.mxu0
        %1776 = vmatprep.subr.mxu0 %v546
        %1777 = vmatpush1.xpose.msra.mxu0 %v545
        %1778 = vmatprep.subr.mxu0 %v548
        %1779 = vmatpush1.xpose.msra.mxu0 %v547
        %1780 = vmatprep.subr.mxu0 %v550
        %1781 = vmatpush1.xpose.msra.mxu0 %v549
        %1782 = vmatprep.subr.mxu0 %v552
        %1783 = vmatpush1.xpose.msra.mxu0 %v551
        %1784 = vmatprep.subr.mxu0 %v554
        %1785 = vmatpush1.xpose.msra.mxu0 %v553
        %1786 = vmatprep.subr.mxu0 %v556
        %1787 = vmatpush1.xpose.msra.mxu0 %v555
        %1788 = vmatprep.subr.mxu0 %v558
        %1789 = vmatpush1.xpose.msra.mxu0 %v557
        %1790 = vmatprep.subr.mxu0 %v560
        %1791 = vmatpush1.xpose.msra.mxu0 %v559
        %1792 = vmatprep.subr.mxu0 %v562
        %1793 = vmatpush1.xpose.msra.mxu0 %v561
        %1794 = vmatprep.subr.mxu0 %v564
        %1795 = vmatpush1.xpose.msra.mxu0 %v563
        %1796 = vmatprep.subr.mxu0 %v566
        %1797 = vmatpush1.xpose.msra.mxu0 %v565
        %1798 = vmatprep.subr.mxu0 %v568
        %1799 = vmatpush1.xpose.msra.mxu0 %v567
        %1800 = vmatprep.subr.mxu0 %v570
        %1801 = vmatpush1.xpose.msra.mxu0 %v569
        %1802 = vmatprep.subr.mxu0 %v572
        %1803 = vmatpush1.xpose.msra.mxu0 %v571
        %1804 = vmatprep.subr.mxu0 %v574
        %1805 = vmatpush1.xpose.msra.mxu0 %v573
        %1806 = vmatprep.subr.mxu0 %v576
        %1807 = vmatpush1.xpose.msra.mxu0 %v575
        %1808 = vmatprep.subr.mxu0 %v578
        %1809 = vmatpush1.xpose.msra.mxu0 %v577
        %1810 = vmatprep.subr.mxu0 %v580
        %1811 = vmatpush1.xpose.msra.mxu0 %v579
        %1812 = vmatprep.subr.mxu0 %v582
        %1813 = vmatpush1.xpose.msra.mxu0 %v581
        %1814 = vmatprep.subr.mxu0 %v584
        %1815 = vmatpush1.xpose.msra.mxu0 %v583
        %1816 = vmatprep.subr.mxu0 %v586
        %1817 = vmatpush1.xpose.msra.mxu0 %v585
        %1818 = vmatprep.subr.mxu0 %v588
        %1819 = vmatpush1.xpose.msra.mxu0 %v587
        %1820 = vmatprep.subr.mxu0 %v590
        %1821 = vmatpush1.xpose.msra.mxu0 %v589
        %1822 = vmatprep.subr.mxu0 %v592
        %1823 = vmatpush1.xpose.msra.mxu0 %v591
        %1824 = vmatprep.subr.mxu0 %v594
        %1825 = vmatpush1.xpose.msra.mxu0 %v593
        %1826 = vmatprep.subr.mxu0 %v596
        %1827 = vmatpush1.xpose.msra.mxu0 %v595
        %1828 = vmatprep.subr.mxu0 %v598
        %1829 = vmatpush1.xpose.msra.mxu0 %v597
        %1830 = vmatprep.subr.mxu0 %v600
        %1831 = vmatpush1.xpose.msra.mxu0 %v599
        %1832 = vmatprep.subr.mxu0 %v602
        %1833 = vmatpush1.xpose.msra.mxu0 %v601
        %1834 = vmatprep.subr.mxu0 %v604
        %1835 = vmatpush1.xpose.msra.mxu0 %v603
        %1836 = vmatprep.subr.mxu0 %v606
        %1837 = vmatpush1.xpose.msra.mxu0 %v605
        %1838 = vmatprep.subr.mxu0 %v608
        %1839 = vmatpush1.xpose.msra.mxu0 %v607
        %1840 = vmatprep.mubr.f32.mxu0 %v1489
        %1841 = vmatmul.mubr.f32.gmra.mrb[0].mxu0 %v1488
        %v1842 = vpop.f32.mrb[0].mxu0
        %v1843 = vadd.f32 %v1356, %v1842
        %v1844 = vpop.f32.mrb[0].mxu0
        %v1845 = vadd.f32 %v1360, %v1844
        %1846 = vdwg.mxu0
        %1847 = vmatprep.subr.mxu0 %v610
        %1848 = vmatpush1.xpose.msra.mxu0 %v609
        %1849 = vmatprep.subr.mxu0 %v612
        %1850 = vmatpush1.xpose.msra.mxu0 %v611
        %1851 = vmatprep.subr.mxu0 %v614
        %1852 = vmatpush1.xpose.msra.mxu0 %v613
        %1853 = vmatprep.subr.mxu0 %v616
        %1854 = vmatpush1.xpose.msra.mxu0 %v615
        %1855 = vmatprep.subr.mxu0 %v618
        %1856 = vmatpush1.xpose.msra.mxu0 %v617
        %1857 = vmatprep.subr.mxu0 %v620
        %1858 = vmatpush1.xpose.msra.mxu0 %v619
        %1859 = vmatprep.subr.mxu0 %v622
        %1860 = vmatpush1.xpose.msra.mxu0 %v621
        %1861 = vmatprep.subr.mxu0 %v624
        %1862 = vmatpush1.xpose.msra.mxu0 %v623
        %1863 = vmatprep.subr.mxu0 %v626
        %1864 = vmatpush1.xpose.msra.mxu0 %v625
        %1865 = vmatprep.subr.mxu0 %v628
        %1866 = vmatpush1.xpose.msra.mxu0 %v627
        %1867 = vmatprep.subr.mxu0 %v630
        %1868 = vmatpush1.xpose.msra.mxu0 %v629
        %1869 = vmatprep.subr.mxu0 %v632
        %1870 = vmatpush1.xpose.msra.mxu0 %v631
        %1871 = vmatprep.subr.mxu0 %v634
        %1872 = vmatpush1.xpose.msra.mxu0 %v633
        %1873 = vmatprep.subr.mxu0 %v636
        %1874 = vmatpush1.xpose.msra.mxu0 %v635
        %1875 = vmatprep.subr.mxu0 %v638
        %1876 = vmatpush1.xpose.msra.mxu0 %v637
        %1877 = vmatprep.subr.mxu0 %v640
        %1878 = vmatpush1.xpose.msra.mxu0 %v639
        %1879 = vmatprep.subr.mxu0 %v642
        %1880 = vmatpush1.xpose.msra.mxu0 %v641
        %1881 = vmatprep.subr.mxu0 %v644
        %1882 = vmatpush1.xpose.msra.mxu0 %v643
        %1883 = vmatprep.subr.mxu0 %v646
        %1884 = vmatpush1.xpose.msra.mxu0 %v645
        %1885 = vmatprep.subr.mxu0 %v648
        %1886 = vmatpush1.xpose.msra.mxu0 %v647
        %1887 = vmatprep.subr.mxu0 %v650
        %1888 = vmatpush1.xpose.msra.mxu0 %v649
        %1889 = vmatprep.subr.mxu0 %v652
        %1890 = vmatpush1.xpose.msra.mxu0 %v651
        %1891 = vmatprep.subr.mxu0 %v654
        %1892 = vmatpush1.xpose.msra.mxu0 %v653
        %1893 = vmatprep.subr.mxu0 %v656
        %1894 = vmatpush1.xpose.msra.mxu0 %v655
        %1895 = vmatprep.subr.mxu0 %v658
        %1896 = vmatpush1.xpose.msra.mxu0 %v657
        %1897 = vmatprep.subr.mxu0 %v660
        %1898 = vmatpush1.xpose.msra.mxu0 %v659
        %1899 = vmatprep.subr.mxu0 %v662
        %1900 = vmatpush1.xpose.msra.mxu0 %v661
        %1901 = vmatprep.subr.mxu0 %v664
        %1902 = vmatpush1.xpose.msra.mxu0 %v663
        %1903 = vmatprep.subr.mxu0 %v666
        %1904 = vmatpush1.xpose.msra.mxu0 %v665
        %1905 = vmatprep.subr.mxu0 %v668
        %1906 = vmatpush1.xpose.msra.mxu0 %v667
        %1907 = vmatprep.subr.mxu0 %v670
        %1908 = vmatpush1.xpose.msra.mxu0 %v669
        %1909 = vmatprep.subr.mxu0 %v672
        %1910 = vmatpush1.xpose.msra.mxu0 %v671
        %1911 = vmatprep.mubr.f32.mxu0 %v1489
        %1912 = vmatmul.mubr.f32.gmra.mrb[0].mxu0 %v1488
        %v1913 = vpop.f32.mrb[0].mxu0
        %v1914 = vadd.f32 %v1364, %v1913
        %v1915 = vpop.f32.mrb[0].mxu0
        %v1916 = vadd.f32 %v1368, %v1915
        %1917 = vdwg.mxu0
        %1918 = vmatprep.subr.mxu0 %v674
        %1919 = vmatpush1.xpose.msra.mxu0 %v673
        %1920 = vmatprep.subr.mxu0 %v676
        %1921 = vmatpush1.xpose.msra.mxu0 %v675
        %1922 = vmatprep.subr.mxu0 %v678
        %1923 = vmatpush1.xpose.msra.mxu0 %v677
        %1924 = vmatprep.subr.mxu0 %v680
        %1925 = vmatpush1.xpose.msra.mxu0 %v679
        %1926 = vmatprep.subr.mxu0 %v682
        %1927 = vmatpush1.xpose.msra.mxu0 %v681
        %1928 = vmatprep.subr.mxu0 %v684
        %1929 = vmatpush1.xpose.msra.mxu0 %v683
        %1930 = vmatprep.subr.mxu0 %v686
        %1931 = vmatpush1.xpose.msra.mxu0 %v685
        %1932 = vmatprep.subr.mxu0 %v688
        %1933 = vmatpush1.xpose.msra.mxu0 %v687
        %1934 = vmatprep.subr.mxu0 %v690
        %1935 = vmatpush1.xpose.msra.mxu0 %v689
        %1936 = vmatprep.subr.mxu0 %v692
        %1937 = vmatpush1.xpose.msra.mxu0 %v691
        %1938 = vmatprep.subr.mxu0 %v694
        %1939 = vmatpush1.xpose.msra.mxu0 %v693
        %1940 = vmatprep.subr.mxu0 %v696
        %1941 = vmatpush1.xpose.msra.mxu0 %v695
        %1942 = vmatprep.subr.mxu0 %v698
        %1943 = vmatpush1.xpose.msra.mxu0 %v697
        %1944 = vmatprep.subr.mxu0 %v700
        %1945 = vmatpush1.xpose.msra.mxu0 %v699
        %1946 = vmatprep.subr.mxu0 %v702
        %1947 = vmatpush1.xpose.msra.mxu0 %v701
        %1948 = vmatprep.subr.mxu0 %v704
        %1949 = vmatpush1.xpose.msra.mxu0 %v703
        %1950 = vmatprep.subr.mxu0 %v706
        %1951 = vmatpush1.xpose.msra.mxu0 %v705
        %1952 = vmatprep.subr.mxu0 %v708
        %1953 = vmatpush1.xpose.msra.mxu0 %v707
        %1954 = vmatprep.subr.mxu0 %v710
        %1955 = vmatpush1.xpose.msra.mxu0 %v709
        %1956 = vmatprep.subr.mxu0 %v712
        %1957 = vmatpush1.xpose.msra.mxu0 %v711
        %1958 = vmatprep.subr.mxu0 %v714
        %1959 = vmatpush1.xpose.msra.mxu0 %v713
        %1960 = vmatprep.subr.mxu0 %v716
        %1961 = vmatpush1.xpose.msra.mxu0 %v715
        %1962 = vmatprep.subr.mxu0 %v718
        %1963 = vmatpush1.xpose.msra.mxu0 %v717
        %1964 = vmatprep.subr.mxu0 %v720
        %1965 = vmatpush1.xpose.msra.mxu0 %v719
        %1966 = vmatprep.subr.mxu0 %v722
        %1967 = vmatpush1.xpose.msra.mxu0 %v721
        %1968 = vmatprep.subr.mxu0 %v724
        %1969 = vmatpush1.xpose.msra.mxu0 %v723
        %1970 = vmatprep.subr.mxu0 %v726
        %1971 = vmatpush1.xpose.msra.mxu0 %v725
        %1972 = vmatprep.subr.mxu0 %v728
        %1973 = vmatpush1.xpose.msra.mxu0 %v727
        %1974 = vmatprep.subr.mxu0 %v730
        %1975 = vmatpush1.xpose.msra.mxu0 %v729
        %1976 = vmatprep.subr.mxu0 %v732
        %1977 = vmatpush1.xpose.msra.mxu0 %v731
        %1978 = vmatprep.subr.mxu0 %v734
        %1979 = vmatpush1.xpose.msra.mxu0 %v733
        %1980 = vmatprep.subr.mxu0 %v736
        %1981 = vmatpush1.xpose.msra.mxu0 %v735
        %1982 = vmatprep.mubr.f32.mxu0 %v1489
        %1983 = vmatmul.mubr.f32.gmra.mrb[0].mxu0 %v1488
        %v1984 = vpop.f32.mrb[0].mxu0
        %v1985 = vadd.f32 %v1372, %v1984
        %v1986 = vpop.f32.mrb[0].mxu0
        %v1987 = vadd.f32 %v1376, %v1986
        %1988 = vdwg.mxu0
        %1989 = vmatprep.subr.mxu0 %v738
        %1990 = vmatpush1.xpose.msra.mxu0 %v737
        %1991 = vmatprep.subr.mxu0 %v740
        %1992 = vmatpush1.xpose.msra.mxu0 %v739
        %1993 = vmatprep.subr.mxu0 %v742
        %1994 = vmatpush1.xpose.msra.mxu0 %v741
        %1995 = vmatprep.subr.mxu0 %v744
        %1996 = vmatpush1.xpose.msra.mxu0 %v743
        %1997 = vmatprep.subr.mxu0 %v746
        %1998 = vmatpush1.xpose.msra.mxu0 %v745
        %1999 = vmatprep.subr.mxu0 %v748
        %2000 = vmatpush1.xpose.msra.mxu0 %v747
        %2001 = vmatprep.subr.mxu0 %v750
        %2002 = vmatpush1.xpose.msra.mxu0 %v749
        %2003 = vmatprep.subr.mxu0 %v752
        %2004 = vmatpush1.xpose.msra.mxu0 %v751
        %2005 = vmatprep.subr.mxu0 %v754
        %2006 = vmatpush1.xpose.msra.mxu0 %v753
        %2007 = vmatprep.subr.mxu0 %v756
        %2008 = vmatpush1.xpose.msra.mxu0 %v755
        %2009 = vmatprep.subr.mxu0 %v758
        %2010 = vmatpush1.xpose.msra.mxu0 %v757
        %2011 = vmatprep.subr.mxu0 %v760
        %2012 = vmatpush1.xpose.msra.mxu0 %v759
        %2013 = vmatprep.subr.mxu0 %v762
        %2014 = vmatpush1.xpose.msra.mxu0 %v761
        %2015 = vmatprep.subr.mxu0 %v764
        %2016 = vmatpush1.xpose.msra.mxu0 %v763
        %2017 = vmatprep.subr.mxu0 %v766
        %2018 = vmatpush1.xpose.msra.mxu0 %v765
        %2019 = vmatprep.subr.mxu0 %v768
        %2020 = vmatpush1.xpose.msra.mxu0 %v767
        %2021 = vmatprep.subr.mxu0 %v770
        %2022 = vmatpush1.xpose.msra.mxu0 %v769
        %2023 = vmatprep.subr.mxu0 %v772
        %2024 = vmatpush1.xpose.msra.mxu0 %v771
        %2025 = vmatprep.subr.mxu0 %v774
        %2026 = vmatpush1.xpose.msra.mxu0 %v773
        %2027 = vmatprep.subr.mxu0 %v776
        %2028 = vmatpush1.xpose.msra.mxu0 %v775
        %2029 = vmatprep.subr.mxu0 %v778
        %2030 = vmatpush1.xpose.msra.mxu0 %v777
        %2031 = vmatprep.subr.mxu0 %v780
        %2032 = vmatpush1.xpose.msra.mxu0 %v779
        %2033 = vmatprep.subr.mxu0 %v782
        %2034 = vmatpush1.xpose.msra.mxu0 %v781
        %2035 = vmatprep.subr.mxu0 %v784
        %2036 = vmatpush1.xpose.msra.mxu0 %v783
        %2037 = vmatprep.subr.mxu0 %v786
        %2038 = vmatpush1.xpose.msra.mxu0 %v785
        %2039 = vmatprep.subr.mxu0 %v788
        %2040 = vmatpush1.xpose.msra.mxu0 %v787
        %2041 = vmatprep.subr.mxu0 %v790
        %2042 = vmatpush1.xpose.msra.mxu0 %v789
        %2043 = vmatprep.subr.mxu0 %v792
        %2044 = vmatpush1.xpose.msra.mxu0 %v791
        %2045 = vmatprep.subr.mxu0 %v794
        %2046 = vmatpush1.xpose.msra.mxu0 %v793
        %2047 = vmatprep.subr.mxu0 %v796
        %2048 = vmatpush1.xpose.msra.mxu0 %v795
        %2049 = vmatprep.subr.mxu0 %v798
        %2050 = vmatpush1.xpose.msra.mxu0 %v797
        %2051 = vmatprep.subr.mxu0 %v800
        %2052 = vmatpush1.xpose.msra.mxu0 %v799
        %2053 = vmatprep.mubr.f32.mxu0 %v1489
        %2054 = vmatmul.mubr.f32.gmra.mrb[0].mxu0 %v1488
        %v2055 = vpop.f32.mrb[0].mxu0
        %v2056 = vadd.f32 %v1380, %v2055
        %v2057 = vpop.f32.mrb[0].mxu0
        %v2058 = vadd.f32 %v1384, %v2057
        %2059 = vdwg.mxu0
        %2060 = vmatprep.subr.mxu0 %v802
        %2061 = vmatpush1.xpose.msra.mxu0 %v801
        %2062 = vmatprep.subr.mxu0 %v804
        %2063 = vmatpush1.xpose.msra.mxu0 %v803
        %2064 = vmatprep.subr.mxu0 %v806
        %2065 = vmatpush1.xpose.msra.mxu0 %v805
        %2066 = vmatprep.subr.mxu0 %v808
        %2067 = vmatpush1.xpose.msra.mxu0 %v807
        %2068 = vmatprep.subr.mxu0 %v810
        %2069 = vmatpush1.xpose.msra.mxu0 %v809
        %2070 = vmatprep.subr.mxu0 %v812
        %2071 = vmatpush1.xpose.msra.mxu0 %v811
        %2072 = vmatprep.subr.mxu0 %v814
        %2073 = vmatpush1.xpose.msra.mxu0 %v813
        %2074 = vmatprep.subr.mxu0 %v816
        %2075 = vmatpush1.xpose.msra.mxu0 %v815
        %2076 = vmatprep.subr.mxu0 %v818
        %2077 = vmatpush1.xpose.msra.mxu0 %v817
        %2078 = vmatprep.subr.mxu0 %v820
        %2079 = vmatpush1.xpose.msra.mxu0 %v819
        %2080 = vmatprep.subr.mxu0 %v822
        %2081 = vmatpush1.xpose.msra.mxu0 %v821
        %2082 = vmatprep.subr.mxu0 %v824
        %2083 = vmatpush1.xpose.msra.mxu0 %v823
        %2084 = vmatprep.subr.mxu0 %v826
        %2085 = vmatpush1.xpose.msra.mxu0 %v825
        %2086 = vmatprep.subr.mxu0 %v828
        %2087 = vmatpush1.xpose.msra.mxu0 %v827
        %2088 = vmatprep.subr.mxu0 %v830
        %2089 = vmatpush1.xpose.msra.mxu0 %v829
        %2090 = vmatprep.subr.mxu0 %v832
        %2091 = vmatpush1.xpose.msra.mxu0 %v831
        %2092 = vmatprep.subr.mxu0 %v834
        %2093 = vmatpush1.xpose.msra.mxu0 %v833
        %2094 = vmatprep.subr.mxu0 %v836
        %2095 = vmatpush1.xpose.msra.mxu0 %v835
        %2096 = vmatprep.subr.mxu0 %v838
        %2097 = vmatpush1.xpose.msra.mxu0 %v837
        %2098 = vmatprep.subr.mxu0 %v840
        %2099 = vmatpush1.xpose.msra.mxu0 %v839
        %2100 = vmatprep.subr.mxu0 %v842
        %2101 = vmatpush1.xpose.msra.mxu0 %v841
        %2102 = vmatprep.subr.mxu0 %v844
        %2103 = vmatpush1.xpose.msra.mxu0 %v843
        %2104 = vmatprep.subr.mxu0 %v846
        %2105 = vmatpush1.xpose.msra.mxu0 %v845
        %2106 = vmatprep.subr.mxu0 %v848
        %2107 = vmatpush1.xpose.msra.mxu0 %v847
        %2108 = vmatprep.subr.mxu0 %v850
        %2109 = vmatpush1.xpose.msra.mxu0 %v849
        %2110 = vmatprep.subr.mxu0 %v852
        %2111 = vmatpush1.xpose.msra.mxu0 %v851
        %2112 = vmatprep.subr.mxu0 %v854
        %2113 = vmatpush1.xpose.msra.mxu0 %v853
        %2114 = vmatprep.subr.mxu0 %v856
        %2115 = vmatpush1.xpose.msra.mxu0 %v855
        %2116 = vmatprep.subr.mxu0 %v858
        %2117 = vmatpush1.xpose.msra.mxu0 %v857
        %2118 = vmatprep.subr.mxu0 %v860
        %2119 = vmatpush1.xpose.msra.mxu0 %v859
        %2120 = vmatprep.subr.mxu0 %v862
        %2121 = vmatpush1.xpose.msra.mxu0 %v861
        %2122 = vmatprep.subr.mxu0 %v864
        %2123 = vmatpush1.xpose.msra.mxu0 %v863
        %2124 = vmatprep.mubr.f32.mxu0 %v1489
        %2125 = vmatmul.mubr.f32.gmra.mrb[0].mxu0 %v1488
        %v2126 = vpop.f32.mrb[0].mxu0
        %v2127 = vadd.f32 %v1388, %v2126
        %v2128 = vpop.f32.mrb[0].mxu0
        %v2129 = vadd.f32 %v1392, %v2128
        %2130 = vdwg.mxu0
        %2131 = vmatprep.subr.mxu0 %v866
        %2132 = vmatpush1.xpose.msra.mxu0 %v865
        %2133 = vmatprep.subr.mxu0 %v868
        %2134 = vmatpush1.xpose.msra.mxu0 %v867
        %2135 = vmatprep.subr.mxu0 %v870
        %2136 = vmatpush1.xpose.msra.mxu0 %v869
        %2137 = vmatprep.subr.mxu0 %v872
        %2138 = vmatpush1.xpose.msra.mxu0 %v871
        %2139 = vmatprep.subr.mxu0 %v874
        %2140 = vmatpush1.xpose.msra.mxu0 %v873
        %2141 = vmatprep.subr.mxu0 %v876
        %2142 = vmatpush1.xpose.msra.mxu0 %v875
        %2143 = vmatprep.subr.mxu0 %v878
        %2144 = vmatpush1.xpose.msra.mxu0 %v877
        %2145 = vmatprep.subr.mxu0 %v880
        %2146 = vmatpush1.xpose.msra.mxu0 %v879
        %2147 = vmatprep.subr.mxu0 %v882
        %2148 = vmatpush1.xpose.msra.mxu0 %v881
        %2149 = vmatprep.subr.mxu0 %v884
        %2150 = vmatpush1.xpose.msra.mxu0 %v883
        %2151 = vmatprep.subr.mxu0 %v886
        %2152 = vmatpush1.xpose.msra.mxu0 %v885
        %2153 = vmatprep.subr.mxu0 %v888
        %2154 = vmatpush1.xpose.msra.mxu0 %v887
        %2155 = vmatprep.subr.mxu0 %v890
        %2156 = vmatpush1.xpose.msra.mxu0 %v889
        %2157 = vmatprep.subr.mxu0 %v892
        %2158 = vmatpush1.xpose.msra.mxu0 %v891
        %2159 = vmatprep.subr.mxu0 %v894
        %2160 = vmatpush1.xpose.msra.mxu0 %v893
        %2161 = vmatprep.subr.mxu0 %v896
        %2162 = vmatpush1.xpose.msra.mxu0 %v895
        %2163 = vmatprep.subr.mxu0 %v898
        %2164 = vmatpush1.xpose.msra.mxu0 %v897
        %2165 = vmatprep.subr.mxu0 %v900
        %2166 = vmatpush1.xpose.msra.mxu0 %v899
        %2167 = vmatprep.subr.mxu0 %v902
        %2168 = vmatpush1.xpose.msra.mxu0 %v901
        %2169 = vmatprep.subr.mxu0 %v904
        %2170 = vmatpush1.xpose.msra.mxu0 %v903
        %2171 = vmatprep.subr.mxu0 %v906
        %2172 = vmatpush1.xpose.msra.mxu0 %v905
        %2173 = vmatprep.subr.mxu0 %v908
        %2174 = vmatpush1.xpose.msra.mxu0 %v907
        %2175 = vmatprep.subr.mxu0 %v910
        %2176 = vmatpush1.xpose.msra.mxu0 %v909
        %2177 = vmatprep.subr.mxu0 %v912
        %2178 = vmatpush1.xpose.msra.mxu0 %v911
        %2179 = vmatprep.subr.mxu0 %v914
        %2180 = vmatpush1.xpose.msra.mxu0 %v913
        %2181 = vmatprep.subr.mxu0 %v916
        %2182 = vmatpush1.xpose.msra.mxu0 %v915
        %2183 = vmatprep.subr.mxu0 %v918
        %2184 = vmatpush1.xpose.msra.mxu0 %v917
        %2185 = vmatprep.subr.mxu0 %v920
        %2186 = vmatpush1.xpose.msra.mxu0 %v919
        %2187 = vmatprep.subr.mxu0 %v922
        %2188 = vmatpush1.xpose.msra.mxu0 %v921
        %2189 = vmatprep.subr.mxu0 %v924
        %2190 = vmatpush1.xpose.msra.mxu0 %v923
        %2191 = vmatprep.subr.mxu0 %v926
        %2192 = vmatpush1.xpose.msra.mxu0 %v925
        %2193 = vmatprep.subr.mxu0 %v928
        %2194 = vmatpush1.xpose.msra.mxu0 %v927
        %2195 = vmatprep.mubr.f32.mxu0 %v1489
        %2196 = vmatmul.mubr.f32.gmra.mrb[0].mxu0 %v1488
        %v2197 = vpop.f32.mrb[0].mxu0
        %v2198 = vadd.f32 %v1396, %v2197
        %v2199 = vpop.f32.mrb[0].mxu0
        %v2200 = vadd.f32 %v1400, %v2199
        %2201 = vdwg.mxu0
        %2202 = vmatprep.subr.mxu0 %v930
        %2203 = vmatpush1.xpose.msra.mxu0 %v929
        %2204 = vmatprep.subr.mxu0 %v932
        %2205 = vmatpush1.xpose.msra.mxu0 %v931
        %2206 = vmatprep.subr.mxu0 %v934
        %2207 = vmatpush1.xpose.msra.mxu0 %v933
        %2208 = vmatprep.subr.mxu0 %v936
        %2209 = vmatpush1.xpose.msra.mxu0 %v935
        %2210 = vmatprep.subr.mxu0 %v938
        %2211 = vmatpush1.xpose.msra.mxu0 %v937
        %2212 = vmatprep.subr.mxu0 %v940
        %2213 = vmatpush1.xpose.msra.mxu0 %v939
        %2214 = vmatprep.subr.mxu0 %v942
        %2215 = vmatpush1.xpose.msra.mxu0 %v941
        %2216 = vmatprep.subr.mxu0 %v944
        %2217 = vmatpush1.xpose.msra.mxu0 %v943
        %2218 = vmatprep.subr.mxu0 %v946
        %2219 = vmatpush1.xpose.msra.mxu0 %v945
        %2220 = vmatprep.subr.mxu0 %v948
        %2221 = vmatpush1.xpose.msra.mxu0 %v947
        %2222 = vmatprep.subr.mxu0 %v950
        %2223 = vmatpush1.xpose.msra.mxu0 %v949
        %2224 = vmatprep.subr.mxu0 %v952
        %2225 = vmatpush1.xpose.msra.mxu0 %v951
        %2226 = vmatprep.subr.mxu0 %v954
        %2227 = vmatpush1.xpose.msra.mxu0 %v953
        %2228 = vmatprep.subr.mxu0 %v956
        %2229 = vmatpush1.xpose.msra.mxu0 %v955
        %2230 = vmatprep.subr.mxu0 %v958
        %2231 = vmatpush1.xpose.msra.mxu0 %v957
        %2232 = vmatprep.subr.mxu0 %v960
        %2233 = vmatpush1.xpose.msra.mxu0 %v959
        %2234 = vmatprep.subr.mxu0 %v962
        %2235 = vmatpush1.xpose.msra.mxu0 %v961
        %2236 = vmatprep.subr.mxu0 %v964
        %2237 = vmatpush1.xpose.msra.mxu0 %v963
        %2238 = vmatprep.subr.mxu0 %v966
        %2239 = vmatpush1.xpose.msra.mxu0 %v965
        %2240 = vmatprep.subr.mxu0 %v968
        %2241 = vmatpush1.xpose.msra.mxu0 %v967
        %2242 = vmatprep.subr.mxu0 %v970
        %2243 = vmatpush1.xpose.msra.mxu0 %v969
        %2244 = vmatprep.subr.mxu0 %v972
        %2245 = vmatpush1.xpose.msra.mxu0 %v971
        %2246 = vmatprep.subr.mxu0 %v974
        %2247 = vmatpush1.xpose.msra.mxu0 %v973
        %2248 = vmatprep.subr.mxu0 %v976
        %2249 = vmatpush1.xpose.msra.mxu0 %v975
        %2250 = vmatprep.subr.mxu0 %v978
        %2251 = vmatpush1.xpose.msra.mxu0 %v977
        %2252 = vmatprep.subr.mxu0 %v980
        %2253 = vmatpush1.xpose.msra.mxu0 %v979
        %2254 = vmatprep.subr.mxu0 %v982
        %2255 = vmatpush1.xpose.msra.mxu0 %v981
        %2256 = vmatprep.subr.mxu0 %v984
        %2257 = vmatpush1.xpose.msra.mxu0 %v983
        %2258 = vmatprep.subr.mxu0 %v986
        %2259 = vmatpush1.xpose.msra.mxu0 %v985
        %2260 = vmatprep.subr.mxu0 %v988
        %2261 = vmatpush1.xpose.msra.mxu0 %v987
        %2262 = vmatprep.subr.mxu0 %v990
        %2263 = vmatpush1.xpose.msra.mxu0 %v989
        %2264 = vmatprep.subr.mxu0 %v992
        %2265 = vmatpush1.xpose.msra.mxu0 %v991
        %2266 = vmatprep.mubr.f32.mxu0 %v1489
        %2267 = vmatmul.mubr.f32.gmra.mrb[0].mxu0 %v1488
        %v2268 = vpop.f32.mrb[0].mxu0
        %v2269 = vadd.f32 %v1404, %v2268
        %v2270 = vpop.f32.mrb[0].mxu0
        %v2271 = vadd.f32 %v1408, %v2270
        %2272 = vdwg.mxu0
        %2273 = vmatprep.subr.mxu0 %v994
        %2274 = vmatpush1.xpose.msra.mxu0 %v993
        %2275 = vmatprep.subr.mxu0 %v996
        %2276 = vmatpush1.xpose.msra.mxu0 %v995
        %2277 = vmatprep.subr.mxu0 %v998
        %2278 = vmatpush1.xpose.msra.mxu0 %v997
        %2279 = vmatprep.subr.mxu0 %v1000
        %2280 = vmatpush1.xpose.msra.mxu0 %v999
        %2281 = vmatprep.subr.mxu0 %v1002
        %2282 = vmatpush1.xpose.msra.mxu0 %v1001
        %2283 = vmatprep.subr.mxu0 %v1004
        %2284 = vmatpush1.xpose.msra.mxu0 %v1003
        %2285 = vmatprep.subr.mxu0 %v1006
        %2286 = vmatpush1.xpose.msra.mxu0 %v1005
        %2287 = vmatprep.subr.mxu0 %v1008
        %2288 = vmatpush1.xpose.msra.mxu0 %v1007
        %2289 = vmatprep.subr.mxu0 %v1010
        %2290 = vmatpush1.xpose.msra.mxu0 %v1009
        %2291 = vmatprep.subr.mxu0 %v1012
        %2292 = vmatpush1.xpose.msra.mxu0 %v1011
        %2293 = vmatprep.subr.mxu0 %v1014
        %2294 = vmatpush1.xpose.msra.mxu0 %v1013
        %2295 = vmatprep.subr.mxu0 %v1016
        %2296 = vmatpush1.xpose.msra.mxu0 %v1015
        %2297 = vmatprep.subr.mxu0 %v1018
        %2298 = vmatpush1.xpose.msra.mxu0 %v1017
        %2299 = vmatprep.subr.mxu0 %v1020
        %2300 = vmatpush1.xpose.msra.mxu0 %v1019
        %2301 = vmatprep.subr.mxu0 %v1022
        %2302 = vmatpush1.xpose.msra.mxu0 %v1021
        %2303 = vmatprep.subr.mxu0 %v1024
        %2304 = vmatpush1.xpose.msra.mxu0 %v1023
        %2305 = vmatprep.subr.mxu0 %v1026
        %2306 = vmatpush1.xpose.msra.mxu0 %v1025
        %2307 = vmatprep.subr.mxu0 %v1028
        %2308 = vmatpush1.xpose.msra.mxu0 %v1027
        %2309 = vmatprep.subr.mxu0 %v1030
        %2310 = vmatpush1.xpose.msra.mxu0 %v1029
        %2311 = vmatprep.subr.mxu0 %v1032
        %2312 = vmatpush1.xpose.msra.mxu0 %v1031
        %2313 = vmatprep.subr.mxu0 %v1034
        %2314 = vmatpush1.xpose.msra.mxu0 %v1033
        %2315 = vmatprep.subr.mxu0 %v1036
        %2316 = vmatpush1.xpose.msra.mxu0 %v1035
        %2317 = vmatprep.subr.mxu0 %v1038
        %2318 = vmatpush1.xpose.msra.mxu0 %v1037
        %2319 = vmatprep.subr.mxu0 %v1040
        %2320 = vmatpush1.xpose.msra.mxu0 %v1039
        %2321 = vmatprep.subr.mxu0 %v1042
        %2322 = vmatpush1.xpose.msra.mxu0 %v1041
        %2323 = vmatprep.subr.mxu0 %v1044
        %2324 = vmatpush1.xpose.msra.mxu0 %v1043
        %2325 = vmatprep.subr.mxu0 %v1046
        %2326 = vmatpush1.xpose.msra.mxu0 %v1045
        %2327 = vmatprep.subr.mxu0 %v1048
        %2328 = vmatpush1.xpose.msra.mxu0 %v1047
        %2329 = vmatprep.subr.mxu0 %v1050
        %2330 = vmatpush1.xpose.msra.mxu0 %v1049
        %2331 = vmatprep.subr.mxu0 %v1052
        %2332 = vmatpush1.xpose.msra.mxu0 %v1051
        %2333 = vmatprep.subr.mxu0 %v1054
        %2334 = vmatpush1.xpose.msra.mxu0 %v1053
        %2335 = vmatprep.subr.mxu0 %v1056
        %2336 = vmatpush1.xpose.msra.mxu0 %v1055
        %2337 = vmatprep.mubr.f32.mxu0 %v1489
        %2338 = vmatmul.mubr.f32.gmra.mrb[0].mxu0 %v1488
        %v2339 = vpop.f32.mrb[0].mxu0
        %v2340 = vadd.f32 %v1412, %v2339
        %v2341 = vpop.f32.mrb[0].mxu0
        %v2342 = vadd.f32 %v1416, %v2341
        %2343 = vdwg.mxu0
        %2344 = vmatprep.subr.mxu0 %v1058
        %2345 = vmatpush1.xpose.msra.mxu0 %v1057
        %2346 = vmatprep.subr.mxu0 %v1060
        %2347 = vmatpush1.xpose.msra.mxu0 %v1059
        %2348 = vmatprep.subr.mxu0 %v1062
        %2349 = vmatpush1.xpose.msra.mxu0 %v1061
        %2350 = vmatprep.subr.mxu0 %v1064
        %2351 = vmatpush1.xpose.msra.mxu0 %v1063
        %2352 = vmatprep.subr.mxu0 %v1066
        %2353 = vmatpush1.xpose.msra.mxu0 %v1065
        %2354 = vmatprep.subr.mxu0 %v1068
        %2355 = vmatpush1.xpose.msra.mxu0 %v1067
        %2356 = vmatprep.subr.mxu0 %v1070
        %2357 = vmatpush1.xpose.msra.mxu0 %v1069
        %2358 = vmatprep.subr.mxu0 %v1072
        %2359 = vmatpush1.xpose.msra.mxu0 %v1071
        %2360 = vmatprep.subr.mxu0 %v1074
        %2361 = vmatpush1.xpose.msra.mxu0 %v1073
        %2362 = vmatprep.subr.mxu0 %v1076
        %2363 = vmatpush1.xpose.msra.mxu0 %v1075
        %2364 = vmatprep.subr.mxu0 %v1078
        %2365 = vmatpush1.xpose.msra.mxu0 %v1077
        %2366 = vmatprep.subr.mxu0 %v1080
        %2367 = vmatpush1.xpose.msra.mxu0 %v1079
        %2368 = vmatprep.subr.mxu0 %v1082
        %2369 = vmatpush1.xpose.msra.mxu0 %v1081
        %2370 = vmatprep.subr.mxu0 %v1084
        %2371 = vmatpush1.xpose.msra.mxu0 %v1083
        %2372 = vmatprep.subr.mxu0 %v1086
        %2373 = vmatpush1.xpose.msra.mxu0 %v1085
        %2374 = vmatprep.subr.mxu0 %v1088
        %2375 = vmatpush1.xpose.msra.mxu0 %v1087
        %2376 = vmatprep.subr.mxu0 %v1090
        %2377 = vmatpush1.xpose.msra.mxu0 %v1089
        %2378 = vmatprep.subr.mxu0 %v1092
        %2379 = vmatpush1.xpose.msra.mxu0 %v1091
        %2380 = vmatprep.subr.mxu0 %v1094
        %2381 = vmatpush1.xpose.msra.mxu0 %v1093
        %2382 = vmatprep.subr.mxu0 %v1096
        %2383 = vmatpush1.xpose.msra.mxu0 %v1095
        %2384 = vmatprep.subr.mxu0 %v1098
        %2385 = vmatpush1.xpose.msra.mxu0 %v1097
        %2386 = vmatprep.subr.mxu0 %v1100
        %2387 = vmatpush1.xpose.msra.mxu0 %v1099
        %2388 = vmatprep.subr.mxu0 %v1102
        %2389 = vmatpush1.xpose.msra.mxu0 %v1101
        %2390 = vmatprep.subr.mxu0 %v1104
        %2391 = vmatpush1.xpose.msra.mxu0 %v1103
        %2392 = vmatprep.subr.mxu0 %v1106
        %2393 = vmatpush1.xpose.msra.mxu0 %v1105
        %2394 = vmatprep.subr.mxu0 %v1108
        %2395 = vmatpush1.xpose.msra.mxu0 %v1107
        %2396 = vmatprep.subr.mxu0 %v1110
        %2397 = vmatpush1.xpose.msra.mxu0 %v1109
        %2398 = vmatprep.subr.mxu0 %v1112
        %2399 = vmatpush1.xpose.msra.mxu0 %v1111
        %2400 = vmatprep.subr.mxu0 %v1114
        %2401 = vmatpush1.xpose.msra.mxu0 %v1113
        %2402 = vmatprep.subr.mxu0 %v1116
        %2403 = vmatpush1.xpose.msra.mxu0 %v1115
        %2404 = vmatprep.subr.mxu0 %v1118
        %2405 = vmatpush1.xpose.msra.mxu0 %v1117
        %2406 = vmatprep.subr.mxu0 %v1120
        %2407 = vmatpush1.xpose.msra.mxu0 %v1119
        %2408 = vmatprep.mubr.f32.mxu0 %v1489
        %2409 = vmatmul.mubr.f32.gmra.mrb[0].mxu0 %v1488
        %v2410 = vpop.f32.mrb[0].mxu0
        %v2411 = vadd.f32 %v1420, %v2410
        %v2412 = vpop.f32.mrb[0].mxu0
        %v2413 = vadd.f32 %v1424, %v2412
        %2414 = vdwg.mxu0
        %2415 = vmatprep.subr.mxu0 %v1122
        %2416 = vmatpush1.xpose.msra.mxu0 %v1121
        %2417 = vmatprep.subr.mxu0 %v1124
        %2418 = vmatpush1.xpose.msra.mxu0 %v1123
        %2419 = vmatprep.subr.mxu0 %v1126
        %2420 = vmatpush1.xpose.msra.mxu0 %v1125
        %2421 = vmatprep.subr.mxu0 %v1128
        %2422 = vmatpush1.xpose.msra.mxu0 %v1127
        %2423 = vmatprep.subr.mxu0 %v1130
        %2424 = vmatpush1.xpose.msra.mxu0 %v1129
        %2425 = vmatprep.subr.mxu0 %v1132
        %2426 = vmatpush1.xpose.msra.mxu0 %v1131
        %2427 = vmatprep.subr.mxu0 %v1134
        %2428 = vmatpush1.xpose.msra.mxu0 %v1133
        %2429 = vmatprep.subr.mxu0 %v1136
        %2430 = vmatpush1.xpose.msra.mxu0 %v1135
        %2431 = vmatprep.subr.mxu0 %v1138
        %2432 = vmatpush1.xpose.msra.mxu0 %v1137
        %2433 = vmatprep.subr.mxu0 %v1140
        %2434 = vmatpush1.xpose.msra.mxu0 %v1139
        %2435 = vmatprep.subr.mxu0 %v1142
        %2436 = vmatpush1.xpose.msra.mxu0 %v1141
        %2437 = vmatprep.subr.mxu0 %v1144
        %2438 = vmatpush1.xpose.msra.mxu0 %v1143
        %2439 = vmatprep.subr.mxu0 %v1146
        %2440 = vmatpush1.xpose.msra.mxu0 %v1145
        %2441 = vmatprep.subr.mxu0 %v1148
        %2442 = vmatpush1.xpose.msra.mxu0 %v1147
        %2443 = vmatprep.subr.mxu0 %v1150
        %2444 = vmatpush1.xpose.msra.mxu0 %v1149
        %2445 = vmatprep.subr.mxu0 %v1152
        %2446 = vmatpush1.xpose.msra.mxu0 %v1151
        %2447 = vmatprep.subr.mxu0 %v1154
        %2448 = vmatpush1.xpose.msra.mxu0 %v1153
        %2449 = vmatprep.subr.mxu0 %v1156
        %2450 = vmatpush1.xpose.msra.mxu0 %v1155
        %2451 = vmatprep.subr.mxu0 %v1158
        %2452 = vmatpush1.xpose.msra.mxu0 %v1157
        %2453 = vmatprep.subr.mxu0 %v1160
        %2454 = vmatpush1.xpose.msra.mxu0 %v1159
        %2455 = vmatprep.subr.mxu0 %v1162
        %2456 = vmatpush1.xpose.msra.mxu0 %v1161
        %2457 = vmatprep.subr.mxu0 %v1164
        %2458 = vmatpush1.xpose.msra.mxu0 %v1163
        %2459 = vmatprep.subr.mxu0 %v1166
        %2460 = vmatpush1.xpose.msra.mxu0 %v1165
        %2461 = vmatprep.subr.mxu0 %v1168
        %2462 = vmatpush1.xpose.msra.mxu0 %v1167
        %2463 = vmatprep.subr.mxu0 %v1170
        %2464 = vmatpush1.xpose.msra.mxu0 %v1169
        %2465 = vmatprep.subr.mxu0 %v1172
        %2466 = vmatpush1.xpose.msra.mxu0 %v1171
        %2467 = vmatprep.subr.mxu0 %v1174
        %2468 = vmatpush1.xpose.msra.mxu0 %v1173
        %2469 = vmatprep.subr.mxu0 %v1176
        %2470 = vmatpush1.xpose.msra.mxu0 %v1175
        %2471 = vmatprep.subr.mxu0 %v1178
        %2472 = vmatpush1.xpose.msra.mxu0 %v1177
        %2473 = vmatprep.subr.mxu0 %v1180
        %2474 = vmatpush1.xpose.msra.mxu0 %v1179
        %2475 = vmatprep.subr.mxu0 %v1182
        %2476 = vmatpush1.xpose.msra.mxu0 %v1181
        %2477 = vmatprep.subr.mxu0 %v1184
        %2478 = vmatpush1.xpose.msra.mxu0 %v1183
        %2479 = vmatprep.mubr.f32.mxu0 %v1489
        %2480 = vmatmul.mubr.f32.gmra.mrb[0].mxu0 %v1488
        %v2481 = vpop.f32.mrb[0].mxu0
        %v2482 = vadd.f32 %v1428, %v2481
        %v2483 = vpop.f32.mrb[0].mxu0
        %v2484 = vadd.f32 %v1432, %v2483
        %2485 = vdwg.mxu0
        %2486 = vmatprep.subr.mxu0 %v1186
        %2487 = vmatpush1.xpose.msra.mxu0 %v1185
        %2488 = vmatprep.subr.mxu0 %v1188
        %2489 = vmatpush1.xpose.msra.mxu0 %v1187
        %2490 = vmatprep.subr.mxu0 %v1190
        %2491 = vmatpush1.xpose.msra.mxu0 %v1189
        %2492 = vmatprep.subr.mxu0 %v1192
        %2493 = vmatpush1.xpose.msra.mxu0 %v1191
        %2494 = vmatprep.subr.mxu0 %v1194
        %2495 = vmatpush1.xpose.msra.mxu0 %v1193
        %2496 = vmatprep.subr.mxu0 %v1196
        %2497 = vmatpush1.xpose.msra.mxu0 %v1195
        %2498 = vmatprep.subr.mxu0 %v1198
        %2499 = vmatpush1.xpose.msra.mxu0 %v1197
        %2500 = vmatprep.subr.mxu0 %v1200
        %2501 = vmatpush1.xpose.msra.mxu0 %v1199
        %2502 = vmatprep.subr.mxu0 %v1202
        %2503 = vmatpush1.xpose.msra.mxu0 %v1201
        %2504 = vmatprep.subr.mxu0 %v1204
        %2505 = vmatpush1.xpose.msra.mxu0 %v1203
        %2506 = vmatprep.subr.mxu0 %v1206
        %2507 = vmatpush1.xpose.msra.mxu0 %v1205
        %2508 = vmatprep.subr.mxu0 %v1208
        %2509 = vmatpush1.xpose.msra.mxu0 %v1207
        %2510 = vmatprep.subr.mxu0 %v1210
        %2511 = vmatpush1.xpose.msra.mxu0 %v1209
        %2512 = vmatprep.subr.mxu0 %v1212
        %2513 = vmatpush1.xpose.msra.mxu0 %v1211
        %2514 = vmatprep.subr.mxu0 %v1214
        %2515 = vmatpush1.xpose.msra.mxu0 %v1213
        %2516 = vmatprep.subr.mxu0 %v1216
        %2517 = vmatpush1.xpose.msra.mxu0 %v1215
        %2518 = vmatprep.subr.mxu0 %v1218
        %2519 = vmatpush1.xpose.msra.mxu0 %v1217
        %2520 = vmatprep.subr.mxu0 %v1220
        %2521 = vmatpush1.xpose.msra.mxu0 %v1219
        %2522 = vmatprep.subr.mxu0 %v1222
        %2523 = vmatpush1.xpose.msra.mxu0 %v1221
        %2524 = vmatprep.subr.mxu0 %v1224
        %2525 = vmatpush1.xpose.msra.mxu0 %v1223
        %2526 = vmatprep.subr.mxu0 %v1226
        %2527 = vmatpush1.xpose.msra.mxu0 %v1225
        %2528 = vmatprep.subr.mxu0 %v1228
        %2529 = vmatpush1.xpose.msra.mxu0 %v1227
        %2530 = vmatprep.subr.mxu0 %v1230
        %2531 = vmatpush1.xpose.msra.mxu0 %v1229
        %2532 = vmatprep.subr.mxu0 %v1232
        %2533 = vmatpush1.xpose.msra.mxu0 %v1231
        %2534 = vmatprep.subr.mxu0 %v1234
        %2535 = vmatpush1.xpose.msra.mxu0 %v1233
        %2536 = vmatprep.subr.mxu0 %v1236
        %2537 = vmatpush1.xpose.msra.mxu0 %v1235
        %2538 = vmatprep.subr.mxu0 %v1238
        %2539 = vmatpush1.xpose.msra.mxu0 %v1237
        %2540 = vmatprep.subr.mxu0 %v1240
        %2541 = vmatpush1.xpose.msra.mxu0 %v1239
        %2542 = vmatprep.subr.mxu0 %v1242
        %2543 = vmatpush1.xpose.msra.mxu0 %v1241
        %2544 = vmatprep.subr.mxu0 %v1244
        %2545 = vmatpush1.xpose.msra.mxu0 %v1243
        %2546 = vmatprep.subr.mxu0 %v1246
        %2547 = vmatpush1.xpose.msra.mxu0 %v1245
        %2548 = vmatprep.subr.mxu0 %v1248
        %2549 = vmatpush1.xpose.msra.mxu0 %v1247
        %2550 = vmatprep.mubr.f32.mxu0 %v1489
        %2551 = vmatmul.mubr.f32.gmra.mrb[0].mxu0 %v1488
        %v2552 = vpop.f32.mrb[0].mxu0
        %v2553 = vadd.f32 %v1436, %v2552
        %v2554 = vpop.f32.mrb[0].mxu0
        %v2555 = vadd.f32 %v1440, %v2554
        %2556 = vdwg.mxu0
        %2557 = vmatprep.subr.mxu0 %v1250
        %2558 = vmatpush1.xpose.msra.mxu0 %v1249
        %2559 = vmatprep.subr.mxu0 %v1252
        %2560 = vmatpush1.xpose.msra.mxu0 %v1251
        %2561 = vmatprep.subr.mxu0 %v1254
        %2562 = vmatpush1.xpose.msra.mxu0 %v1253
        %2563 = vmatprep.subr.mxu0 %v1256
        %2564 = vmatpush1.xpose.msra.mxu0 %v1255
        %2565 = vmatprep.subr.mxu0 %v1258
        %2566 = vmatpush1.xpose.msra.mxu0 %v1257
        %2567 = vmatprep.subr.mxu0 %v1260
        %2568 = vmatpush1.xpose.msra.mxu0 %v1259
        %2569 = vmatprep.subr.mxu0 %v1262
        %2570 = vmatpush1.xpose.msra.mxu0 %v1261
        %2571 = vmatprep.subr.mxu0 %v1264
        %2572 = vmatpush1.xpose.msra.mxu0 %v1263
        %2573 = vmatprep.subr.mxu0 %v1266
        %2574 = vmatpush1.xpose.msra.mxu0 %v1265
        %2575 = vmatprep.subr.mxu0 %v1268
        %2576 = vmatpush1.xpose.msra.mxu0 %v1267
        %2577 = vmatprep.subr.mxu0 %v1270
        %2578 = vmatpush1.xpose.msra.mxu0 %v1269
        %2579 = vmatprep.subr.mxu0 %v1272
        %2580 = vmatpush1.xpose.msra.mxu0 %v1271
        %2581 = vmatprep.subr.mxu0 %v1274
        %2582 = vmatpush1.xpose.msra.mxu0 %v1273
        %2583 = vmatprep.subr.mxu0 %v1276
        %2584 = vmatpush1.xpose.msra.mxu0 %v1275
        %2585 = vmatprep.subr.mxu0 %v1278
        %2586 = vmatpush1.xpose.msra.mxu0 %v1277
        %2587 = vmatprep.subr.mxu0 %v1280
        %2588 = vmatpush1.xpose.msra.mxu0 %v1279
        %2589 = vmatprep.subr.mxu0 %v1282
        %2590 = vmatpush1.xpose.msra.mxu0 %v1281
        %2591 = vmatprep.subr.mxu0 %v1284
        %2592 = vmatpush1.xpose.msra.mxu0 %v1283
        %2593 = vmatprep.subr.mxu0 %v1286
        %2594 = vmatpush1.xpose.msra.mxu0 %v1285
        %2595 = vmatprep.subr.mxu0 %v1288
        %2596 = vmatpush1.xpose.msra.mxu0 %v1287
        %2597 = vmatprep.subr.mxu0 %v1290
        %2598 = vmatpush1.xpose.msra.mxu0 %v1289
        %2599 = vmatprep.subr.mxu0 %v1292
        %2600 = vmatpush1.xpose.msra.mxu0 %v1291
        %2601 = vmatprep.subr.mxu0 %v1294
        %2602 = vmatpush1.xpose.msra.mxu0 %v1293
        %2603 = vmatprep.subr.mxu0 %v1296
        %2604 = vmatpush1.xpose.msra.mxu0 %v1295
        %2605 = vmatprep.subr.mxu0 %v1298
        %2606 = vmatpush1.xpose.msra.mxu0 %v1297
        %2607 = vmatprep.subr.mxu0 %v1300
        %2608 = vmatpush1.xpose.msra.mxu0 %v1299
        %2609 = vmatprep.subr.mxu0 %v1302
        %2610 = vmatpush1.xpose.msra.mxu0 %v1301
        %2611 = vmatprep.subr.mxu0 %v1304
        %2612 = vmatpush1.xpose.msra.mxu0 %v1303
        %2613 = vmatprep.subr.mxu0 %v1306
        %2614 = vmatpush1.xpose.msra.mxu0 %v1305
        %2615 = vmatprep.subr.mxu0 %v1308
        %2616 = vmatpush1.xpose.msra.mxu0 %v1307
        %2617 = vmatprep.subr.mxu0 %v1310
        %2618 = vmatpush1.xpose.msra.mxu0 %v1309
        %2619 = vmatprep.subr.mxu0 %v1312
        %2620 = vmatpush1.xpose.msra.mxu0 %v1311
        %2621 = vmatprep.mubr.f32.mxu0 %v1489
        %2622 = vmatmul.mubr.f32.gmra.mrb[0].mxu0 %v1488
        %v2623 = vpop.f32.mrb[0].mxu0
        %v2624 = vadd.f32 %v1444, %v2623
        %v2625 = vpop.f32.mrb[0].mxu0
        %v2626 = vadd.f32 %v1448, %v2625
        %2627 = vdwg.mxu0
        %v2660 = vcombine.low %v1559, %v1561
        %v2661 = vcombine.low %v1630, %v1632
        %v2663 = vunpack.c.l.s4 1983009808
        %v2664 = vunpack.c.0.s8 %v2663
        %v2665 = vlaneseq
        %v2666 = vshrl.u32 %v2665, 7
        %v2667 = vsub.s32 %v2664, %v2666
        %v2668 = vrot.slane %v2660, %v2667
        %v2670 = vunpack.c.l.s4 1983009808
        %v2671 = vunpack.c.0.s8 %v2670
        %v2672 = vlaneseq
        %v2673 = vshrl.u32 %v2672, 7
        %v2674 = vsub.s32 %v2671, %v2673
        %v2675 = vrot.slane %v2661, %v2674
        %v2676 = vcombine.low %v2668, %v2675
        %v2677 = vcombine.low %v1701, %v1703
        %v2678 = vcombine.low %v1772, %v1774
        %v2680 = vunpack.c.l.s4 1983009808
        %v2681 = vunpack.c.0.s8 %v2680
        %v2682 = vlaneseq
        %v2683 = vshrl.u32 %v2682, 7
        %v2684 = vsub.s32 %v2681, %v2683
        %v2685 = vrot.slane %v2677, %v2684
        %v2687 = vunpack.c.l.s4 1983009808
        %v2688 = vunpack.c.0.s8 %v2687
        %v2689 = vlaneseq
        %v2690 = vshrl.u32 %v2689, 7
        %v2691 = vsub.s32 %v2688, %v2690
        %v2692 = vrot.slane %v2678, %v2691
        %v2693 = vcombine.low %v2685, %v2692
        %v2694 = vcombine.low %v1843, %v1845
        %v2695 = vcombine.low %v1914, %v1916
        %v2697 = vunpack.c.l.s4 1983009808
        %v2698 = vunpack.c.0.s8 %v2697
        %v2699 = vlaneseq
        %v2700 = vshrl.u32 %v2699, 7
        %v2701 = vsub.s32 %v2698, %v2700
        %v2702 = vrot.slane %v2694, %v2701
        %v2704 = vunpack.c.l.s4 1983009808
        %v2705 = vunpack.c.0.s8 %v2704
        %v2706 = vlaneseq
        %v2707 = vshrl.u32 %v2706, 7
        %v2708 = vsub.s32 %v2705, %v2707
        %v2709 = vrot.slane %v2695, %v2708
        %v2710 = vcombine.low %v2702, %v2709
        %v2711 = vcombine.low %v1985, %v1987
        %v2712 = vcombine.low %v2056, %v2058
        %v2714 = vunpack.c.l.s4 1983009808
        %v2715 = vunpack.c.0.s8 %v2714
        %v2716 = vlaneseq
        %v2717 = vshrl.u32 %v2716, 7
        %v2718 = vsub.s32 %v2715, %v2717
        %v2719 = vrot.slane %v2711, %v2718
        %v2721 = vunpack.c.l.s4 1983009808
        %v2722 = vunpack.c.0.s8 %v2721
        %v2723 = vlaneseq
        %v2724 = vshrl.u32 %v2723, 7
        %v2725 = vsub.s32 %v2722, %v2724
        %v2726 = vrot.slane %v2712, %v2725
        %v2727 = vcombine.low %v2719, %v2726
        %v2728 = vcombine.low %v2127, %v2129
        %v2729 = vcombine.low %v2198, %v2200
        %v2731 = vunpack.c.l.s4 1983009808
        %v2732 = vunpack.c.0.s8 %v2731
        %v2733 = vlaneseq
        %v2734 = vshrl.u32 %v2733, 7
        %v2735 = vsub.s32 %v2732, %v2734
        %v2736 = vrot.slane %v2728, %v2735
        %v2738 = vunpack.c.l.s4 1983009808
        %v2739 = vunpack.c.0.s8 %v2738
        %v2740 = vlaneseq
        %v2741 = vshrl.u32 %v2740, 7
        %v2742 = vsub.s32 %v2739, %v2741
        %v2743 = vrot.slane %v2729, %v2742
        %v2744 = vcombine.low %v2736, %v2743
        %v2745 = vcombine.low %v2269, %v2271
        %v2746 = vcombine.low %v2340, %v2342
        %v2748 = vunpack.c.l.s4 1983009808
        %v2749 = vunpack.c.0.s8 %v2748
        %v2750 = vlaneseq
        %v2751 = vshrl.u32 %v2750, 7
        %v2752 = vsub.s32 %v2749, %v2751
        %v2753 = vrot.slane %v2745, %v2752
        %v2755 = vunpack.c.l.s4 1983009808
        %v2756 = vunpack.c.0.s8 %v2755
        %v2757 = vlaneseq
        %v2758 = vshrl.u32 %v2757, 7
        %v2759 = vsub.s32 %v2756, %v2758
        %v2760 = vrot.slane %v2746, %v2759
        %v2761 = vcombine.low %v2753, %v2760
        %v2762 = vcombine.low %v2411, %v2413
        %v2763 = vcombine.low %v2482, %v2484
        %v2765 = vunpack.c.l.s4 1983009808
        %v2766 = vunpack.c.0.s8 %v2765
        %v2767 = vlaneseq
        %v2768 = vshrl.u32 %v2767, 7
        %v2769 = vsub.s32 %v2766, %v2768
        %v2770 = vrot.slane %v2762, %v2769
        %v2772 = vunpack.c.l.s4 1983009808
        %v2773 = vunpack.c.0.s8 %v2772
        %v2774 = vlaneseq
        %v2775 = vshrl.u32 %v2774, 7
        %v2776 = vsub.s32 %v2773, %v2775
        %v2777 = vrot.slane %v2763, %v2776
        %v2778 = vcombine.low %v2770, %v2777
        %v2779 = vcombine.low %v2553, %v2555
        %v2780 = vcombine.low %v2624, %v2626
        %v2782 = vunpack.c.l.s4 1983009808
        %v2783 = vunpack.c.0.s8 %v2782
        %v2784 = vlaneseq
        %v2785 = vshrl.u32 %v2784, 7
        %v2786 = vsub.s32 %v2783, %v2785
        %v2787 = vrot.slane %v2779, %v2786
        %v2789 = vunpack.c.l.s4 1983009808
        %v2790 = vunpack.c.0.s8 %v2789
        %v2791 = vlaneseq
        %v2792 = vshrl.u32 %v2791, 7
        %v2793 = vsub.s32 %v2790, %v2792
        %v2794 = vrot.slane %v2780, %v2793
        %v2795 = vcombine.low %v2787, %v2794
        %2804 = vst [vmem:[%s284] sm:$0xff] %v2676
        %2805 = vst [vmem:[%s284 + $0x8] sm:$0xff] %v2693
        %2806 = vst [vmem:[%s284 + $0x10] sm:$0xff] %v2710
        %2807 = vst [vmem:[%s284 + $0x18] sm:$0xff] %v2727
        %2808 = vst [vmem:[%s284 + $0x20] sm:$0xff] %v2744
        %2809 = vst [vmem:[%s284 + $0x28] sm:$0xff] %v2761
        %2810 = vst [vmem:[%s284 + $0x30] sm:$0xff] %v2778
        %2811 = vst [vmem:[%s284 + $0x38] sm:$0xff] %v2795
        %s2812 = sand.u32 %s127, 1
        %s2813 = scalar_lea.sflag [#allocation4], %s2812
        %s2814 = sand.u32 %s127, 1
        %s2815 = smul.addr %s2814, 64
        %s2816 = scalar_lea.vmem [#allocation8], %s2815
        // Predicated region
        $region45: #{tpu_custom_call.1} parent=31 // pred_check
          %p2817 = pneg %p137
        $region46: #{tpu_custom_call.1} parent=31 // pred_check_branch
          %2819 = sbr.rel (%p2817) target = $region48
        $region47: #{tpu_custom_call.1} parent=31 // pred_region
          %s2820 = smul.u32 32, %s28
          %s2822 = ssub.s32 1024, 1024
          %2823 = vsyncadd %s2813, %s2822
          %s2824 = smul.addr %s27, 128
          %s2825 = sadd.s32 %s2820, %s2824
          %s2826 = smul.addr %s2825, 32
          %s2827 = scalar_lea.hbm %s3, %s2826
          %s2829 = sshll.u32 %s2816, 4
          %s2830 = int_to_ptr.vmem [resolvable:$true] %s2829
          %2832 = dma.vmem_to_hbm [thread:$0]  %s2830, 1024, %s2827, %s2813
        $region48: #{tpu_custom_call.1} parent=31 // pred_fallthru
          _
      $region32: #{tpu_custom_call.1} parent=5 // pred_fallthru
        _
      %p2833 = scmp.le.s32.totalorder 2, %s18
      // Predicated region
      $region49: #{tpu_custom_call.1} parent=5 // pred_check
        %p2834 = pneg %p2833
      $region50: #{tpu_custom_call.1} parent=5 // pred_check_branch
        %2836 = sbr.rel (%p2834) target = $region52
      $region51: #{tpu_custom_call.1} parent=5 // pred_region
        %s2837 = ssub.s32 %s18, 2
        // Predicated region
        $region53: #{tpu_custom_call.1} parent=51 // pred_check
          %p2838 = pneg %p143
        $region54: #{tpu_custom_call.1} parent=51 // pred_check_branch
          %2840 = sbr.rel (%p2838) target = $region56
        $region55: #{tpu_custom_call.1} parent=51 // pred_region
          %s2841 = sand.u32 %s128, 1
          %s2842 = scalar_lea.sflag [#allocation4], %s2841
          %s2843 = sand.u32 %s128, 1
          %s2844 = smul.addr %s2843, 64
          %s2845 = scalar_lea.vmem [#allocation8], %s2844
          %2846 = dma.done %s2842, 1024
        $region56: #{tpu_custom_call.1} parent=51 // pred_fallthru
          _
      $region52: #{tpu_custom_call.1} parent=5 // pred_fallthru
        _
    $region6: #{tpu_custom_call.1} parent=1 // loop_footer
      %s22 = sadd.s32 1, %s18
    $region7: #{tpu_custom_call.1} parent=1 // loop_footer_branch
      %17 = sbr.rel target = $region3
    $region8: #{tpu_custom_call.1} parent=1 // loop_exit
      _
    %2847 = vsyncpa [#allocation3], 1
    %s2848 = scalar_lea.sflag [#allocation3], 1
    %2849 = vsyncpa %s2848, 1
    %2850 = vsyncpa [#allocation6], 1
    %s2851 = scalar_lea.sflag [#allocation6], 1
    %2852 = vsyncpa %s2851, 1
    %2853 = vsyncpa [#allocation4], 1
    %s2854 = scalar_lea.sflag [#allocation4], 1
    %2855 = vsyncpa %s2854, 1

</llo_original>
